<compile_context>
chip_gen: v6e
topology: v6e:2x2x1
jax: 0.10.0
libtpu: 0.0.40
codegen_flags: <defaults>
</compile_context>

<pallas_src>
import functools
import math

import jax
import jax.numpy as jnp
from jax.experimental import pallas as pl
from jax.experimental.pallas import tpu as pltpu


# ----------------------------------------------------------------------------
# Pallas kernel: one (query tile, key chunk) step of the fused forward pass.
# Grid = (num_q_blocks, num_k_blocks); key axis is the inner ("arbitrary") one.
# ----------------------------------------------------------------------------
def pair_attention_kernel(
    htq_ref,    # (blk_q, D)      f32  query-tile rows of ht (Q proj + residual)
    k_ref,      # (H, blk_k, hd)  bf16 pre-projected, head-grouped key chunk
    v_ref,      # (H, blk_k, hd)  bf16 pre-projected, head-grouped value chunk
    wqh_ref,    # (H, D, hd)      bf16 per-head Q weight (1/sqrt(hd) folded in)
    bqh_ref,    # (H, 1, hd)      f32  per-head Q bias   (1/sqrt(hd) folded in)
    wdh_ref,    # (H, hd, D)      bf16 per-head dense weight
    bd_ref,     # (1, D)          f32  dense bias
    gamma_ref,  # (1, D)          f32  LayerNorm scale
    beta_ref,   # (1, D)          f32  LayerNorm shift
    mask_ref,   # (1, 1, blk_k)   f32  additive attention bias for this chunk
    out_ref,    # (blk_q, D)      f32
    q_sc,       # (H, blk_q, hd)  bf16 scratch: projected query tile
    m_sc,       # (H, blk_q, 1)   f32  running max
    l_sc,       # (H, blk_q, 1)   f32  running denominator
    acc_sc,     # (H, blk_q, hd)  f32  running numerator
    *,
    num_heads: int,
    head_dim: int,
    ln_eps: float,
):
    H, hd = num_heads, head_dim
    blk_q, D = htq_ref.shape
    ki = pl.program_id(1)

    # ---- first key chunk for this query tile: project Q, reset running stats
    @pl.when(ki == 0)
    def _init():
        x_bf = htq_ref[...].astype(jnp.bfloat16)
        # heads come from the weight layout (H, D, hd): no lane-boundary
        # slicing of activations inside the kernel.
        q_h = [
            jnp.dot(x_bf, wqh_ref[h], preferred_element_type=jnp.float32)
            + bqh_ref[h]
            for h in range(H)
        ]
        q_sc[...] = jnp.stack(q_h, axis=0).astype(jnp.bfloat16)
        m_sc[...] = jnp.full(m_sc.shape, -jnp.inf, jnp.float32)
        l_sc[...] = jnp.zeros(l_sc.shape, jnp.float32)
        acc_sc[...] = jnp.zeros(acc_sc.shape, jnp.float32)

    # ---- online-softmax attention over this key chunk (flash style) --------
    s = jnp.einsum("hqd,hkd->hqk", q_sc[...], k_ref[...],
                   preferred_element_type=jnp.float32)      # (H, blk_q, blk_k)
    s = s + mask_ref[...]          # (1,1,blk_k) additive bias (mask + padding)

    m_prev = m_sc[...]
    m_new = jnp.maximum(m_prev, jnp.max(s, axis=-1, keepdims=True))
    alpha = jnp.exp(m_prev - m_new)
    # TODO(synk): on v6e/v7x compute exp / p in bf16 (single EUP slot); keep
    #             f32 on v5e (no bf16 EUP/VPU).
    p = jnp.exp(s - m_new)
    l_sc[...] = alpha * l_sc[...] + jnp.sum(p, axis=-1, keepdims=True)
    acc_sc[...] = alpha * acc_sc[...] + jnp.einsum(
        "hqk,hkd->hqd", p.astype(jnp.bfloat16), v_ref[...],
        preferred_element_type=jnp.float32)
    m_sc[...] = m_new

    # ---- last key chunk: normalize, dense(tanh) + residual + LayerNorm -----
    @pl.when(ki == pl.num_programs(1) - 1)
    def _finalize():
        ctx = acc_sc[...] * pl.reciprocal(l_sc[...], approx=True)  # (H,blk_q,hd)
        ctx_bf = ctx.astype(jnp.bfloat16)

        # dense: concat_h(ctx_h) @ Wd == sum_h ctx_h @ Wd[h]; accumulate the
        # per-head matmuls in f32 -> no (H, blk_q, D) f32 intermediate.
        acc = jnp.dot(ctx_bf[0], wdh_ref[0], preferred_element_type=jnp.float32)
        for h in range(1, H):
            acc = acc + jnp.dot(ctx_bf[h], wdh_ref[h],
                                preferred_element_type=jnp.float32)
        dense = jnp.tanh(acc + bd_ref[...])

        # dropout(p = 0) is the identity; residual + LayerNorm
        resid = dense + htq_ref[...]
        mean = jnp.mean(resid, axis=-1, keepdims=True)
        var = jnp.mean(jnp.square(resid - mean), axis=-1, keepdims=True)
        normed = (resid - mean) * jax.lax.rsqrt(var + ln_eps)
        out_ref[...] = (normed * gamma_ref[...] + beta_ref[...]).astype(out_ref.dtype)


# ----------------------------------------------------------------------------
# Tiling / VMEM-budget helpers.
# ----------------------------------------------------------------------------
def _choose_blocks(S, block_q, block_k):
    """Returns (blk_q, blk_k, S_pad) satisfying the (8,128)/full-dim rules."""
    if S <= block_q and S <= block_k:
        return S, S, S                          # single tile on both axes
    blk_q = max(8, (min(block_q, S) // 8) * 8)  # sublane rule: multiple of 8
    blk_k = max(8, (min(block_k, S) // 8) * 8)
    lcm = blk_q * blk_k // math.gcd(blk_q, blk_k)
    S_pad = pl.cdiv(S, lcm) * lcm
    return blk_q, blk_k, S_pad


def _pick_vmem_limit_bytes():
    """Derive the scoped-VMEM budget from the actual chip, with headroom."""
    cap = None
    try:
        cap = int(pltpu.get_tpu_info().vmem_capacity_bytes)
    except Exception:
        cap = None
    if not cap or cap <= 0:
        cap = 64 * 1024 * 1024  # conservative: v7x per-TensorCore VMEM
    # ~15% headroom for Mosaic-internal scratch, cap well below v5e/v6e 128 MiB
    return int(max(32 * 1024 * 1024, min(int(cap * 0.85), 100 * 1024 * 1024)))


# ----------------------------------------------------------------------------
# Wrapper: K/V hoisting, weight layout, padding, pallas_call.
# ----------------------------------------------------------------------------
def pair_attention_forward(ht, params, *, num_heads, attention_mask=None,
                           block_q=512, block_k=512):
    S, D = ht.shape
    H = num_heads
    assert D % H == 0, "hidden size must be divisible by num_heads"
    hd = D // H
    assert params["wd_t"].shape[1] == D, "residual add requires output_dim == input_dim"

    blk_q, blk_k, S_pad = _choose_blocks(S, block_q, block_k)
    num_q = S_pad // blk_q
    num_k = S_pad // blk_k

    ht32 = ht.astype(jnp.float32)
    if S_pad != S:
        ht_pad = jnp.zeros((S_pad, D), jnp.float32).at[:S, :].set(ht32)
    else:
        ht_pad = ht32

    # additive attention bias over (padded) keys, pre-split into key chunks so
    # every block keeps a lane dimension equal to its full array extent.
    if attention_mask is None:
        bias = jnp.zeros((1, S), jnp.float32)
    else:
        bias = (1.0 - attention_mask.reshape(1, S).astype(jnp.float32)) * -10000.0
    if S_pad != S:
        bias = jnp.concatenate(
            [bias, jnp.full((1, S_pad - S), -1e9, jnp.float32)], axis=1)
    mask_blocks = bias.reshape(num_k, blk_k)[:, None, :]       # (num_k, 1, blk_k)

    # ---- K/V projection hoisted out of the kernel (computed once, f32 GEMM,
    #      then head-grouped bf16) ------------------------------------------
    k_full = ht_pad @ params["wk_t"].astype(jnp.float32) + params["bk"].astype(jnp.float32)
    v_full = ht_pad @ params["wv_t"].astype(jnp.float32) + params["bv"].astype(jnp.float32)
    k3 = jnp.transpose(k_full.reshape(S_pad, H, hd), (1, 0, 2)).astype(jnp.bfloat16)
    v3 = jnp.transpose(v_full.reshape(S_pad, H, hd), (1, 0, 2)).astype(jnp.bfloat16)

    # ---- Q / dense weights: per-head layout, scale folded, bf16 ------------
    scale = 1.0 / math.sqrt(hd)
    wqh = jnp.transpose(
        (params["wq_t"].astype(jnp.float32) * scale).reshape(D, H, hd),
        (1, 0, 2)).astype(jnp.bfloat16)                         # (H, D, hd)
    bqh = jnp.transpose(
        (params["bq"].astype(jnp.float32) * scale).reshape(1, H, hd),
        (1, 0, 2))                                              # (H, 1, hd) f32
    wdh = params["wd_t"].astype(jnp.bfloat16).reshape(H, hd, D)  # (H, hd, D)
    bd = params["bd"].astype(jnp.float32)
    gamma = params["ln_gamma"].astype(jnp.float32)
    beta = params["ln_beta"].astype(jnp.float32)

    kernel = functools.partial(
        pair_attention_kernel, num_heads=H, head_dim=hd, ln_eps=1e-5)

    # advisory cost estimate for XLA's scheduler
    flops = (num_q * num_k * 4 * blk_q * blk_k * D          # scores + probs @ V
             + num_q * 2 * blk_q * D * D                    # Q projection
             + num_q * 2 * blk_q * D * D)                   # head-contracted dense
    transcendentals = (num_q * num_k * (H * blk_q * blk_k + H * blk_q)
                       + num_q * (blk_q * D + H * blk_q + blk_q))
    bytes_accessed = (S_pad * D * 4                         # ht query tiles
                      + num_q * (k3.size + v3.size) * 2     # streamed bf16 K/V
                      + (wqh.size + wdh.size) * 2
                      + (bqh.size + bd.size + gamma.size + beta.size) * 4
                      + mask_blocks.size * 4
                      + S_pad * D * 4)                      # output

    vmem_limit = _pick_vmem_limit_bytes()

    def _build(single_buffer_invariants):
        def inv(shape, index_map):
            # grid-invariant blocks: no point double-buffering them
            if single_buffer_invariants:
                return pl.BlockSpec(shape, index_map, pipeline_mode=pl.Buffered(1))
            return pl.BlockSpec(shape, index_map)

        res2 = lambda qi, ki: (0, 0)
        res3 = lambda qi, ki: (0, 0, 0)
        in_specs = [
            pl.BlockSpec((blk_q, D), lambda qi, ki: (qi, 0)),          # ht tile
            pl.BlockSpec((H, blk_k, hd), lambda qi, ki: (0, ki, 0)),   # K chunk
            pl.BlockSpec((H, blk_k, hd), lambda qi, ki: (0, ki, 0)),   # V chunk
            inv((H, D, hd), res3),                                     # w_q / head
            inv((H, 1, hd), res3),                                     # b_q / head
            inv((H, hd, D), res3),                                     # w_d / head
            inv((1, D), res2),                                         # b_d
            inv((1, D), res2),                                         # gamma
            inv((1, D), res2),                                         # beta
            pl.BlockSpec((1, 1, blk_k), lambda qi, ki: (ki, 0, 0)),    # mask chunk
        ]
        out_specs = pl.BlockSpec((blk_q, D), lambda qi, ki: (qi, 0))
        scratch_shapes = [
            pltpu.VMEM((H, blk_q, hd), jnp.bfloat16),   # q_sc
            pltpu.VMEM((H, blk_q, 1), jnp.float32),     # m_sc
            pltpu.VMEM((H, blk_q, 1), jnp.float32),     # l_sc
            pltpu.VMEM((H, blk_q, hd), jnp.float32),    # acc_sc
        ]
        return pl.pallas_call(
            kernel,
            out_shape=jax.ShapeDtypeStruct((S_pad, D), jnp.float32),
            grid=(num_q, num_k),
            in_specs=in_specs,
            out_specs=out_specs,
            scratch_shapes=scratch_shapes,
            compiler_params=pltpu.CompilerParams(
                # TODO(synk): evaluate pltpu.CORE_PARALLEL on the query axis
                # for v7x (2 TensorCores) once num_q >= 2 in production shapes.
                dimension_semantics=("parallel", "arbitrary"),
                vmem_limit_bytes=vmem_limit,
            ),
            cost_estimate=pl.CostEstimate(
                flops=int(flops),
                transcendentals=int(transcendentals),
                bytes_accessed=int(bytes_accessed),
            ),
        )

    args = (ht_pad, k3, v3, wqh, bqh, wdh, bd, gamma, beta, mask_blocks)
    last_err = None
    for single_buf in (True, False):   # fall back if Buffered(1) is unsupported
        try:
            out = _build(single_buf)(*args)
            out = jax.block_until_ready(out)
            return out[:S]
        except Exception as e:  # noqa: BLE001 - compile-time fallback only
            last_err = e
    raise last_err


# ----------------------------------------------------------------------------
# Deterministic parameter init (mirrors __init__: orthogonal q/k/v/dense
# weights, default Linear bias init, LayerNorm gamma=1 / beta=0).
# ----------------------------------------------------------------------------
def _orthogonal(key, n):
    a = jax.random.normal(key, (n, n), jnp.float32)
    q, r = jnp.linalg.qr(a)
    return q * jnp.sign(jnp.diagonal(r))[None, :]


def init_params(key, input_dim, output_dim):
    assert input_dim == output_dim, "residual add requires output_dim == input_dim"
    keys = jax.random.split(key, 8)
    bound = 1.0 / math.sqrt(input_dim)

    def bias(k, n):
        return jax.random.uniform(k, (1, n), jnp.float32, -bound, bound)

    # torch Linear stores weight as (out, in); we keep the transpose (in, out).
    wq = _orthogonal(keys[0], input_dim)
    wk = _orthogonal(keys[1], input_dim)
    wv = _orthogonal(keys[2], input_dim)
    wd = _orthogonal(keys[3], input_dim)
    return {
        "wq_t": wq.T, "bq": bias(keys[4], input_dim),
        "wk_t": wk.T, "bk": bias(keys[5], input_dim),
        "wv_t": wv.T, "bv": bias(keys[6], input_dim),
        "wd_t": wd.T, "bd": bias(keys[7], output_dim),
        "ln_gamma": jnp.ones((1, input_dim), jnp.float32),
        "ln_beta": jnp.zeros((1, input_dim), jnp.float32),
    }


# ----------------------------------------------------------------------------
# Pure-JAX f32 reference (mirrors the PyTorch forward).
# ----------------------------------------------------------------------------
def reference_forward(ht, params, *, num_heads, attention_mask=None):
    S, D = ht.shape
    hd = D // num_heads
    q = ht @ params["wq_t"] + params["bq"]
    k = ht @ params["wk_t"] + params["bk"]
    v = ht @ params["wv_t"] + params["bv"]
    q = q.reshape(S, num_heads, hd).transpose(1, 0, 2)
    k = k.reshape(S, num_heads, hd).transpose(1, 0, 2)
    v = v.reshape(S, num_heads, hd).transpose(1, 0, 2)
    scores = jnp.einsum("hqd,hkd->hqk", q, k) / jnp.sqrt(jnp.float32(hd))
    if attention_mask is not None:
        scores = scores + (1.0 - attention_mask.reshape(1, 1, S)) * -10000.0
    probs = jax.nn.softmax(scores, axis=-1)
    ctx = jnp.einsum("hqk,hkd->hqd", probs, v).transpose(1, 0, 2).reshape(S, D)
    dense = jnp.tanh(ctx @ params["wd_t"] + params["bd"])
    resid = dense + ht
    mean = jnp.mean(resid, axis=-1, keepdims=True)
    var = jnp.mean((resid - mean) ** 2, axis=-1, keepdims=True)
    return (resid - mean) / jnp.sqrt(var + 1e-5) * params["ln_gamma"] + params["ln_beta"]


if __name__ == "__main__":
    SEQ, HIDDEN, NUM_HEADS = 8, 32, 4
    key = jax.random.PRNGKey(0)
    k_param, k_x = jax.random.split(key)

    params = init_params(k_param, HIDDEN, HIDDEN)
    ht = jax.random.normal(k_x, (SEQ, HIDDEN), jnp.float32)

    # 1) no mask, single query/key tile
    out = pair_attention_forward(ht, params, num_heads=NUM_HEADS)
    out = jax.block_until_ready(out)
    ref = reference_forward(ht, params, num_heads=NUM_HEADS)
    assert out.shape == (SEQ, HIDDEN)
    # bf16 MXU inputs + approx reciprocal -> compare to f32 reference loosely.
    assert jnp.allclose(out, ref, atol=5e-2, rtol=5e-2), (
        f"mismatch vs reference (max abs err {jnp.max(jnp.abs(out - ref)):.4e})")

    # 2) longer sequence with a key mask -> multiple query tiles AND multiple
    #    key chunks (exercises the online-softmax / padding / masking paths).
    SEQ2 = 40
    k_x2, _ = jax.random.split(k_x)
    ht2 = jax.random.normal(k_x2, (SEQ2, HIDDEN), jnp.float32)
    mask2 = (jnp.arange(SEQ2) < 33).astype(jnp.float32)
    out2 = pair_attention_forward(ht2, params, num_heads=NUM_HEADS,
                                  attention_mask=mask2, block_q=16, block_k=16)
    out2 = jax.block_until_ready(out2)
    ref2 = reference_forward(ht2, params, num_heads=NUM_HEADS,
                             attention_mask=mask2)
    assert out2.shape == (SEQ2, HIDDEN)
    assert jnp.allclose(out2, ref2, atol=5e-2, rtol=5e-2), (
        f"mismatch vs reference on tiled path "
        f"(max abs err {jnp.max(jnp.abs(out2 - ref2)):.4e})")

    print("KERNEL_OK")
</pallas_src>

<mosaic_0001>
module attributes {stable_mosaic.version = 11 : i64} {
  func.func @pair_attention_kernel(%arg0: i32, %arg1: i32, %arg2: memref<8x32xf32, #tpu.memory_space<vmem>>, %arg3: memref<4x8x8xbf16, #tpu.memory_space<vmem>>, %arg4: memref<4x8x8xbf16, #tpu.memory_space<vmem>>, %arg5: memref<4x32x8xbf16, #tpu.memory_space<vmem>>, %arg6: memref<4x1x8xf32, #tpu.memory_space<vmem>>, %arg7: memref<4x8x32xbf16, #tpu.memory_space<vmem>>, %arg8: memref<1x32xf32, #tpu.memory_space<vmem>>, %arg9: memref<1x32xf32, #tpu.memory_space<vmem>>, %arg10: memref<1x32xf32, #tpu.memory_space<vmem>>, %arg11: memref<1x1x8xf32, #tpu.memory_space<vmem>>, %arg12: memref<8x32xf32, #tpu.memory_space<vmem>>, %arg13: memref<4x8x8xbf16, #tpu.memory_space<vmem>>, %arg14: memref<4x8x1xf32, #tpu.memory_space<vmem>>, %arg15: memref<4x8x1xf32, #tpu.memory_space<vmem>>, %arg16: memref<4x8x8xf32, #tpu.memory_space<vmem>>) attributes {dimension_semantics = [#tpu.dimension_semantics<parallel>, #tpu.dimension_semantics<arbitrary>], iteration_bounds = array<i64: 1, 1>, scalar_prefetch = 0 : i64, scratch_operands = 4 : i64, tpu.core_type = #tpu.core_type<tc>, window_params = [{transform_indices = @transform_0, window_bounds = array<i64: 8, 32>}, {transform_indices = @transform_1, window_bounds = array<i64: 4, 8, 8>}, {transform_indices = @transform_2, window_bounds = array<i64: 4, 8, 8>}, {pipeline_mode = #tpu.pipeline_mode<synchronous>, transform_indices = @transform_3, window_bounds = array<i64: 4, 32, 8>}, {pipeline_mode = #tpu.pipeline_mode<synchronous>, transform_indices = @transform_4, window_bounds = array<i64: 4, 1, 8>}, {pipeline_mode = #tpu.pipeline_mode<synchronous>, transform_indices = @transform_5, window_bounds = array<i64: 4, 8, 32>}, {pipeline_mode = #tpu.pipeline_mode<synchronous>, transform_indices = @transform_6, window_bounds = array<i64: 1, 32>}, {pipeline_mode = #tpu.pipeline_mode<synchronous>, transform_indices = @transform_7, window_bounds = array<i64: 1, 32>}, {pipeline_mode = #tpu.pipeline_mode<synchronous>, transform_indices = @transform_8, window_bounds = array<i64: 1, 32>}, {transform_indices = @transform_9, window_bounds = array<i64: 1, 1, 8>}, {transform_indices = @transform_10, window_bounds = array<i64: 8, 32>}]} {
    %c0_i32 = arith.constant 0 : i32
    %0 = arith.cmpi eq, %arg1, %c0_i32 : i32
    %1 = arith.extui %0 : i1 to i32
    %c0_i32_0 = arith.constant 0 : i32
    %2 = arith.cmpi ne, %1, %c0_i32_0 : i32
    scf.if %2 {
      %c0_35 = arith.constant 0 : index
      %c0_36 = arith.constant 0 : index
      %36 = vector.load %arg2[%c0_35, %c0_36] : memref<8x32xf32, #tpu.memory_space<vmem>>, vector<8x32xf32>
      %37 = arith.truncf %36 : vector<8x32xf32> to vector<8x32xbf16>
      %c0_37 = arith.constant 0 : index
      %c0_38 = arith.constant 0 : index
      %c0_39 = arith.constant 0 : index
      %38 = vector.load %arg5[%c0_37, %c0_38, %c0_39] : memref<4x32x8xbf16, #tpu.memory_space<vmem>>, vector<1x32x8xbf16>
      %39 = vector.shape_cast %38 : vector<1x32x8xbf16> to vector<32x8xbf16>
      %cst_40 = arith.constant dense<0.000000e+00> : vector<8x8xf32>
      %40 = tpu.matmul %37, %39, %cst_40 {dimension_numbers = #tpu.dot_dimension_numbers<[1], [0], [0], [1], [0, 0, 1, 1], [], []>} : vector<8x32xbf16>, vector<32x8xbf16>, vector<8x8xf32> -> vector<8x8xf32>
      %c0_41 = arith.constant 0 : index
      %c0_42 = arith.constant 0 : index
      %c0_43 = arith.constant 0 : index
      %41 = vector.load %arg6[%c0_41, %c0_42, %c0_43] : memref<4x1x8xf32, #tpu.memory_space<vmem>>, vector<1x1x8xf32>
      %42 = vector.shape_cast %41 : vector<1x1x8xf32> to vector<1x8xf32>
      %43 = vector.broadcast %42 : vector<1x8xf32> to vector<8x8xf32>
      %44 = arith.addf %40, %43 : vector<8x8xf32>
      %c1 = arith.constant 1 : index
      %c0_44 = arith.constant 0 : index
      %c0_45 = arith.constant 0 : index
      %45 = vector.load %arg5[%c1, %c0_44, %c0_45] : memref<4x32x8xbf16, #tpu.memory_space<vmem>>, vector<1x32x8xbf16>
      %46 = vector.shape_cast %45 : vector<1x32x8xbf16> to vector<32x8xbf16>
      %cst_46 = arith.constant dense<0.000000e+00> : vector<8x8xf32>
      %47 = tpu.matmul %37, %46, %cst_46 {dimension_numbers = #tpu.dot_dimension_numbers<[1], [0], [0], [1], [0, 0, 1, 1], [], []>} : vector<8x32xbf16>, vector<32x8xbf16>, vector<8x8xf32> -> vector<8x8xf32>
      %c1_47 = arith.constant 1 : index
      %c0_48 = arith.constant 0 : index
      %c0_49 = arith.constant 0 : index
      %48 = vector.load %arg6[%c1_47, %c0_48, %c0_49] : memref<4x1x8xf32, #tpu.memory_space<vmem>>, vector<1x1x8xf32>
      %49 = vector.shape_cast %48 : vector<1x1x8xf32> to vector<1x8xf32>
      %50 = vector.broadcast %49 : vector<1x8xf32> to vector<8x8xf32>
      %51 = arith.addf %47, %50 : vector<8x8xf32>
      %c2 = arith.constant 2 : index
      %c0_50 = arith.constant 0 : index
      %c0_51 = arith.constant 0 : index
      %52 = vector.load %arg5[%c2, %c0_50, %c0_51] : memref<4x32x8xbf16, #tpu.memory_space<vmem>>, vector<1x32x8xbf16>
      %53 = vector.shape_cast %52 : vector<1x32x8xbf16> to vector<32x8xbf16>
      %cst_52 = arith.constant dense<0.000000e+00> : vector<8x8xf32>
      %54 = tpu.matmul %37, %53, %cst_52 {dimension_numbers = #tpu.dot_dimension_numbers<[1], [0], [0], [1], [0, 0, 1, 1], [], []>} : vector<8x32xbf16>, vector<32x8xbf16>, vector<8x8xf32> -> vector<8x8xf32>
      %c2_53 = arith.constant 2 : index
      %c0_54 = arith.constant 0 : index
      %c0_55 = arith.constant 0 : index
      %55 = vector.load %arg6[%c2_53, %c0_54, %c0_55] : memref<4x1x8xf32, #tpu.memory_space<vmem>>, vector<1x1x8xf32>
      %56 = vector.shape_cast %55 : vector<1x1x8xf32> to vector<1x8xf32>
      %57 = vector.broadcast %56 : vector<1x8xf32> to vector<8x8xf32>
      %58 = arith.addf %54, %57 : vector<8x8xf32>
      %c3 = arith.constant 3 : index
      %c0_56 = arith.constant 0 : index
      %c0_57 = arith.constant 0 : index
      %59 = vector.load %arg5[%c3, %c0_56, %c0_57] : memref<4x32x8xbf16, #tpu.memory_space<vmem>>, vector<1x32x8xbf16>
      %60 = vector.shape_cast %59 : vector<1x32x8xbf16> to vector<32x8xbf16>
      %cst_58 = arith.constant dense<0.000000e+00> : vector<8x8xf32>
      %61 = tpu.matmul %37, %60, %cst_58 {dimension_numbers = #tpu.dot_dimension_numbers<[1], [0], [0], [1], [0, 0, 1, 1], [], []>} : vector<8x32xbf16>, vector<32x8xbf16>, vector<8x8xf32> -> vector<8x8xf32>
      %c3_59 = arith.constant 3 : index
      %c0_60 = arith.constant 0 : index
      %c0_61 = arith.constant 0 : index
      %62 = vector.load %arg6[%c3_59, %c0_60, %c0_61] : memref<4x1x8xf32, #tpu.memory_space<vmem>>, vector<1x1x8xf32>
      %63 = vector.shape_cast %62 : vector<1x1x8xf32> to vector<1x8xf32>
      %64 = vector.broadcast %63 : vector<1x8xf32> to vector<8x8xf32>
      %65 = arith.addf %61, %64 : vector<8x8xf32>
      %66 = vector.shape_cast %44 : vector<8x8xf32> to vector<1x8x8xf32>
      %67 = vector.shape_cast %51 : vector<8x8xf32> to vector<1x8x8xf32>
      %68 = vector.shape_cast %58 : vector<8x8xf32> to vector<1x8x8xf32>
      %69 = vector.shape_cast %65 : vector<8x8xf32> to vector<1x8x8xf32>
      %70 = tpu.concatenate %66, %67, %68, %69 in 0 : vector<1x8x8xf32>, vector<1x8x8xf32>, vector<1x8x8xf32>, vector<1x8x8xf32> -> vector<4x8x8xf32>
      %71 = arith.truncf %70 : vector<4x8x8xf32> to vector<4x8x8xbf16>
      %c0_62 = arith.constant 0 : index
      %c0_63 = arith.constant 0 : index
      %c0_64 = arith.constant 0 : index
      %72 = vector.load %arg13[%c0_62, %c0_63, %c0_64] : memref<4x8x8xbf16, #tpu.memory_space<vmem>>, vector<4x8x8xbf16>
      tpu.vector_store %arg13[%c0_62, %c0_63, %c0_64], %71 {strides = array<i32>} : memref<4x8x8xbf16, #tpu.memory_space<vmem>>, vector<4x8x8xbf16>,
      %cst_65 = arith.constant 0xFF800000 : f32
      %73 = vector.broadcast %cst_65 : f32 to vector<4x8x1xf32>
      %c0_66 = arith.constant 0 : index
      %c0_67 = arith.constant 0 : index
      %c0_68 = arith.constant 0 : index
      %74 = vector.load %arg14[%c0_66, %c0_67, %c0_68] : memref<4x8x1xf32, #tpu.memory_space<vmem>>, vector<4x8x1xf32>
      tpu.vector_store %arg14[%c0_66, %c0_67, %c0_68], %73 {strides = array<i32>} : memref<4x8x1xf32, #tpu.memory_space<vmem>>, vector<4x8x1xf32>,
      %cst_69 = arith.constant 0.000000e+00 : f32
      %75 = vector.broadcast %cst_69 : f32 to vector<4x8x1xf32>
      %c0_70 = arith.constant 0 : index
      %c0_71 = arith.constant 0 : index
      %c0_72 = arith.constant 0 : index
      %76 = vector.load %arg15[%c0_70, %c0_71, %c0_72] : memref<4x8x1xf32, #tpu.memory_space<vmem>>, vector<4x8x1xf32>
      tpu.vector_store %arg15[%c0_70, %c0_71, %c0_72], %75 {strides = array<i32>} : memref<4x8x1xf32, #tpu.memory_space<vmem>>, vector<4x8x1xf32>,
      %cst_73 = arith.constant 0.000000e+00 : f32
      %77 = vector.broadcast %cst_73 : f32 to vector<4x8x8xf32>
      %c0_74 = arith.constant 0 : index
      %c0_75 = arith.constant 0 : index
      %c0_76 = arith.constant 0 : index
      %78 = vector.load %arg16[%c0_74, %c0_75, %c0_76] : memref<4x8x8xf32, #tpu.memory_space<vmem>>, vector<4x8x8xf32>
      tpu.vector_store %arg16[%c0_74, %c0_75, %c0_76], %77 {strides = array<i32>} : memref<4x8x8xf32, #tpu.memory_space<vmem>>, vector<4x8x8xf32>,
    } else {
    }
    %c0 = arith.constant 0 : index
    %c0_1 = arith.constant 0 : index
    %c0_2 = arith.constant 0 : index
    %3 = vector.load %arg13[%c0, %c0_1, %c0_2] : memref<4x8x8xbf16, #tpu.memory_space<vmem>>, vector<4x8x8xbf16>
    %c0_3 = arith.constant 0 : index
    %c0_4 = arith.constant 0 : index
    %c0_5 = arith.constant 0 : index
    %4 = vector.load %arg3[%c0_3, %c0_4, %c0_5] : memref<4x8x8xbf16, #tpu.memory_space<vmem>>, vector<4x8x8xbf16>
    "tpu.trace_start"() <{level = 10 : i32, message = "hqd,hkd->hqk"}> : () -> ()
    %cst = arith.constant dense<0.000000e+00> : vector<4x8x8xf32>
    %5 = tpu.matmul %3, %4, %cst {dimension_numbers = #tpu.dot_dimension_numbers<[2], [2], [1], [1], [0, 0, 0, 1, 1, 1], [0], [0]>} : vector<4x8x8xbf16>, vector<4x8x8xbf16>, vector<4x8x8xf32> -> vector<4x8x8xf32>
    "tpu.trace_stop"() : () -> ()
    %c0_6 = arith.constant 0 : index
    %c0_7 = arith.constant 0 : index
    %c0_8 = arith.constant 0 : index
    %6 = vector.load %arg11[%c0_6, %c0_7, %c0_8] : memref<1x1x8xf32, #tpu.memory_space<vmem>>, vector<1x1x8xf32>
    %7 = vector.broadcast %6 : vector<1x1x8xf32> to vector<4x8x8xf32>
    %8 = arith.addf %5, %7 : vector<4x8x8xf32>
    %c0_9 = arith.constant 0 : index
    %c0_10 = arith.constant 0 : index
    %c0_11 = arith.constant 0 : index
    %9 = vector.load %arg14[%c0_9, %c0_10, %c0_11] : memref<4x8x1xf32, #tpu.memory_space<vmem>>, vector<4x8x1xf32>
    %cst_12 = arith.constant dense<0xFF800000> : vector<4x8xf32>
    %10 = vector.multi_reduction <maximumf>, %8, %cst_12 [2] : vector<4x8x8xf32> to vector<4x8xf32>
    %11 = vector.shape_cast %10 : vector<4x8xf32> to vector<4x8x1xf32>
    %12 = arith.maximumf %9, %11 : vector<4x8x1xf32>
    %13 = arith.subf %9, %12 : vector<4x8x1xf32>
    %14 = math.exp %13 : vector<4x8x1xf32>
    %15 = vector.broadcast %12 : vector<4x8x1xf32> to vector<4x8x8xf32>
    %16 = arith.subf %8, %15 : vector<4x8x8xf32>
    %17 = math.exp %16 : vector<4x8x8xf32>
    %c0_13 = arith.constant 0 : index
    %c0_14 = arith.constant 0 : index
    %c0_15 = arith.constant 0 : index
    %18 = vector.load %arg15[%c0_13, %c0_14, %c0_15] : memref<4x8x1xf32, #tpu.memory_space<vmem>>, vector<4x8x1xf32>
    %19 = arith.mulf %14, %18 : vector<4x8x1xf32>
    %cst_16 = arith.constant dense<0.000000e+00> : vector<4x8xf32>
    %20 = vector.multi_reduction <add>, %17, %cst_16 [2] : vector<4x8x8xf32> to vector<4x8xf32>
    %21 = vector.shape_cast %20 : vector<4x8xf32> to vector<4x8x1xf32>
    %22 = arith.addf %19, %21 : vector<4x8x1xf32>
    %c0_17 = arith.constant 0 : index
    %c0_18 = arith.constant 0 : index
    %c0_19 = arith.constant 0 : index
    %23 = vector.load %arg15[%c0_17, %c0_18, %c0_19] : memref<4x8x1xf32, #tpu.memory_space<vmem>>, vector<4x8x1xf32>
    tpu.vector_store %arg15[%c0_17, %c0_18, %c0_19], %22 {strides = array<i32>} : memref<4x8x1xf32, #tpu.memory_space<vmem>>, vector<4x8x1xf32>,
    %c0_20 = arith.constant 0 : index
    %c0_21 = arith.constant 0 : index
    %c0_22 = arith.constant 0 : index
    %24 = vector.load %arg16[%c0_20, %c0_21, %c0_22] : memref<4x8x8xf32, #tpu.memory_space<vmem>>, vector<4x8x8xf32>
    %25 = vector.broadcast %14 : vector<4x8x1xf32> to vector<4x8x8xf32>
    %26 = arith.mulf %25, %24 : vector<4x8x8xf32>
    %27 = arith.truncf %17 : vector<4x8x8xf32> to vector<4x8x8xbf16>
    %c0_23 = arith.constant 0 : index
    %c0_24 = arith.constant 0 : index
    %c0_25 = arith.constant 0 : index
    %28 = vector.load %arg4[%c0_23, %c0_24, %c0_25] : memref<4x8x8xbf16, #tpu.memory_space<vmem>>, vector<4x8x8xbf16>
    "tpu.trace_start"() <{level = 10 : i32, message = "hqk,hkd->hqd"}> : () -> ()
    %cst_26 = arith.constant dense<0.000000e+00> : vector<4x8x8xf32>
    %29 = tpu.matmul %27, %28, %cst_26 {dimension_numbers = #tpu.dot_dimension_numbers<[2], [1], [1], [2], [0, 0, 0, 1, 1, 2], [0], [0]>} : vector<4x8x8xbf16>, vector<4x8x8xbf16>, vector<4x8x8xf32> -> vector<4x8x8xf32>
    "tpu.trace_stop"() : () -> ()
    %30 = arith.addf %26, %29 : vector<4x8x8xf32>
    %c0_27 = arith.constant 0 : index
    %c0_28 = arith.constant 0 : index
    %c0_29 = arith.constant 0 : index
    %31 = vector.load %arg16[%c0_27, %c0_28, %c0_29] : memref<4x8x8xf32, #tpu.memory_space<vmem>>, vector<4x8x8xf32>
    tpu.vector_store %arg16[%c0_27, %c0_28, %c0_29], %30 {strides = array<i32>} : memref<4x8x8xf32, #tpu.memory_space<vmem>>, vector<4x8x8xf32>,
    %c0_30 = arith.constant 0 : index
    %c0_31 = arith.constant 0 : index
    %c0_32 = arith.constant 0 : index
    %32 = vector.load %arg14[%c0_30, %c0_31, %c0_32] : memref<4x8x1xf32, #tpu.memory_space<vmem>>, vector<4x8x1xf32>
    tpu.vector_store %arg14[%c0_30, %c0_31, %c0_32], %12 {strides = array<i32>} : memref<4x8x1xf32, #tpu.memory_space<vmem>>, vector<4x8x1xf32>,
    %c0_i32_33 = arith.constant 0 : i32
    %33 = arith.cmpi eq, %arg1, %c0_i32_33 : i32
    %34 = arith.extui %33 : i1 to i32
    %c0_i32_34 = arith.constant 0 : i32
    %35 = arith.cmpi ne, %34, %c0_i32_34 : i32
    scf.if %35 {
      %c0_35 = arith.constant 0 : index
      %c0_36 = arith.constant 0 : index
      %c0_37 = arith.constant 0 : index
      %36 = vector.load %arg16[%c0_35, %c0_36, %c0_37] : memref<4x8x8xf32, #tpu.memory_space<vmem>>, vector<4x8x8xf32>
      %c0_38 = arith.constant 0 : index
      %c0_39 = arith.constant 0 : index
      %c0_40 = arith.constant 0 : index
      %37 = vector.load %arg15[%c0_38, %c0_39, %c0_40] : memref<4x8x1xf32, #tpu.memory_space<vmem>>, vector<4x8x1xf32>
      %38 = tpu.reciprocal %37 {approx = true} : vector<4x8x1xf32> -> vector<4x8x1xf32>
      %39 = vector.broadcast %38 : vector<4x8x1xf32> to vector<4x8x8xf32>
      %40 = arith.mulf %36, %39 : vector<4x8x8xf32>
      %41 = arith.truncf %40 : vector<4x8x8xf32> to vector<4x8x8xbf16>
      %42 = vector.extract_strided_slice %41 {offsets = [0, 0, 0], sizes = [1, 8, 8], strides = [1, 1, 1]} : vector<4x8x8xbf16> to vector<1x8x8xbf16>
      %43 = vector.shape_cast %42 : vector<1x8x8xbf16> to vector<8x8xbf16>
      %c0_41 = arith.constant 0 : index
      %c0_42 = arith.constant 0 : index
      %c0_43 = arith.constant 0 : index
      %44 = vector.load %arg7[%c0_41, %c0_42, %c0_43] : memref<4x8x32xbf16, #tpu.memory_space<vmem>>, vector<1x8x32xbf16>
      %45 = vector.shape_cast %44 : vector<1x8x32xbf16> to vector<8x32xbf16>
      %cst_44 = arith.constant dense<0.000000e+00> : vector<8x32xf32>
      %46 = tpu.matmul %43, %45, %cst_44 {dimension_numbers = #tpu.dot_dimension_numbers<[1], [0], [0], [1], [0, 0, 1, 1], [], []>} : vector<8x8xbf16>, vector<8x32xbf16>, vector<8x32xf32> -> vector<8x32xf32>
      %47 = vector.extract_strided_slice %41 {offsets = [1, 0, 0], sizes = [1, 8, 8], strides = [1, 1, 1]} : vector<4x8x8xbf16> to vector<1x8x8xbf16>
      %48 = vector.shape_cast %47 : vector<1x8x8xbf16> to vector<8x8xbf16>
      %c1 = arith.constant 1 : index
      %c0_45 = arith.constant 0 : index
      %c0_46 = arith.constant 0 : index
      %49 = vector.load %arg7[%c1, %c0_45, %c0_46] : memref<4x8x32xbf16, #tpu.memory_space<vmem>>, vector<1x8x32xbf16>
      %50 = vector.shape_cast %49 : vector<1x8x32xbf16> to vector<8x32xbf16>
      %cst_47 = arith.constant dense<0.000000e+00> : vector<8x32xf32>
      %51 = tpu.matmul %48, %50, %cst_47 {dimension_numbers = #tpu.dot_dimension_numbers<[1], [0], [0], [1], [0, 0, 1, 1], [], []>} : vector<8x8xbf16>, vector<8x32xbf16>, vector<8x32xf32> -> vector<8x32xf32>
      %52 = arith.addf %46, %51 : vector<8x32xf32>
      %53 = vector.extract_strided_slice %41 {offsets = [2, 0, 0], sizes = [1, 8, 8], strides = [1, 1, 1]} : vector<4x8x8xbf16> to vector<1x8x8xbf16>
      %54 = vector.shape_cast %53 : vector<1x8x8xbf16> to vector<8x8xbf16>
      %c2 = arith.constant 2 : index
      %c0_48 = arith.constant 0 : index
      %c0_49 = arith.constant 0 : index
      %55 = vector.load %arg7[%c2, %c0_48, %c0_49] : memref<4x8x32xbf16, #tpu.memory_space<vmem>>, vector<1x8x32xbf16>
      %56 = vector.shape_cast %55 : vector<1x8x32xbf16> to vector<8x32xbf16>
      %cst_50 = arith.constant dense<0.000000e+00> : vector<8x32xf32>
      %57 = tpu.matmul %54, %56, %cst_50 {dimension_numbers = #tpu.dot_dimension_numbers<[1], [0], [0], [1], [0, 0, 1, 1], [], []>} : vector<8x8xbf16>, vector<8x32xbf16>, vector<8x32xf32> -> vector<8x32xf32>
      %58 = arith.addf %52, %57 : vector<8x32xf32>
      %59 = vector.extract_strided_slice %41 {offsets = [3, 0, 0], sizes = [1, 8, 8], strides = [1, 1, 1]} : vector<4x8x8xbf16> to vector<1x8x8xbf16>
      %60 = vector.shape_cast %59 : vector<1x8x8xbf16> to vector<8x8xbf16>
      %c3 = arith.constant 3 : index
      %c0_51 = arith.constant 0 : index
      %c0_52 = arith.constant 0 : index
      %61 = vector.load %arg7[%c3, %c0_51, %c0_52] : memref<4x8x32xbf16, #tpu.memory_space<vmem>>, vector<1x8x32xbf16>
      %62 = vector.shape_cast %61 : vector<1x8x32xbf16> to vector<8x32xbf16>
      %cst_53 = arith.constant dense<0.000000e+00> : vector<8x32xf32>
      %63 = tpu.matmul %60, %62, %cst_53 {dimension_numbers = #tpu.dot_dimension_numbers<[1], [0], [0], [1], [0, 0, 1, 1], [], []>} : vector<8x8xbf16>, vector<8x32xbf16>, vector<8x32xf32> -> vector<8x32xf32>
      %64 = arith.addf %58, %63 : vector<8x32xf32>
      %c0_54 = arith.constant 0 : index
      %c0_55 = arith.constant 0 : index
      %65 = vector.load %arg8[%c0_54, %c0_55] : memref<1x32xf32, #tpu.memory_space<vmem>>, vector<1x32xf32>
      %66 = vector.broadcast %65 : vector<1x32xf32> to vector<8x32xf32>
      %67 = arith.addf %64, %66 : vector<8x32xf32>
      %68 = math.tanh %67 : vector<8x32xf32>
      %c0_56 = arith.constant 0 : index
      %c0_57 = arith.constant 0 : index
      %69 = vector.load %arg2[%c0_56, %c0_57] : memref<8x32xf32, #tpu.memory_space<vmem>>, vector<8x32xf32>
      %70 = arith.addf %68, %69 : vector<8x32xf32>
      %cst_58 = arith.constant dense<0.000000e+00> : vector<8xf32>
      %71 = vector.multi_reduction <add>, %70, %cst_58 [1] : vector<8x32xf32> to vector<8xf32>
      %72 = vector.shape_cast %71 : vector<8xf32> to vector<8x1xf32>
      %cst_59 = arith.constant 3.200000e+01 : f32
      %73 = vector.broadcast %cst_59 : f32 to vector<8x1xf32>
      %74 = arith.divf %72, %73 : vector<8x1xf32>
      %75 = vector.broadcast %74 : vector<8x1xf32> to vector<8x32xf32>
      %76 = arith.subf %70, %75 : vector<8x32xf32>
      %77 = arith.mulf %76, %76 : vector<8x32xf32>
      %cst_60 = arith.constant dense<0.000000e+00> : vector<8xf32>
      %78 = vector.multi_reduction <add>, %77, %cst_60 [1] : vector<8x32xf32> to vector<8xf32>
      %79 = vector.shape_cast %78 : vector<8xf32> to vector<8x1xf32>
      %cst_61 = arith.constant 3.200000e+01 : f32
      %80 = vector.broadcast %cst_61 : f32 to vector<8x1xf32>
      %81 = arith.divf %79, %80 : vector<8x1xf32>
      %82 = vector.broadcast %74 : vector<8x1xf32> to vector<8x32xf32>
      %83 = arith.subf %70, %82 : vector<8x32xf32>
      %cst_62 = arith.constant 9.99999974E-6 : f32
      %84 = vector.broadcast %cst_62 : f32 to vector<8x1xf32>
      %85 = arith.addf %81, %84 : vector<8x1xf32>
      %86 = math.rsqrt %85 : vector<8x1xf32>
      %87 = vector.broadcast %86 : vector<8x1xf32> to vector<8x32xf32>
      %88 = arith.mulf %83, %87 : vector<8x32xf32>
      %c0_63 = arith.constant 0 : index
      %c0_64 = arith.constant 0 : index
      %89 = vector.load %arg9[%c0_63, %c0_64] : memref<1x32xf32, #tpu.memory_space<vmem>>, vector<1x32xf32>
      %90 = vector.broadcast %89 : vector<1x32xf32> to vector<8x32xf32>
      %91 = arith.mulf %88, %90 : vector<8x32xf32>
      %c0_65 = arith.constant 0 : index
      %c0_66 = arith.constant 0 : index
      %92 = vector.load %arg10[%c0_65, %c0_66] : memref<1x32xf32, #tpu.memory_space<vmem>>, vector<1x32xf32>
      %93 = vector.broadcast %92 : vector<1x32xf32> to vector<8x32xf32>
      %94 = arith.addf %91, %93 : vector<8x32xf32>
      %c0_67 = arith.constant 0 : index
      %c0_68 = arith.constant 0 : index
      %95 = vector.load %arg12[%c0_67, %c0_68] : memref<8x32xf32, #tpu.memory_space<vmem>>, vector<8x32xf32>
      tpu.vector_store %arg12[%c0_67, %c0_68], %94 {strides = array<i32>} : memref<8x32xf32, #tpu.memory_space<vmem>>, vector<8x32xf32>,
    } else {
    }
    return
  }
  func.func @transform_0(%arg0: i32, %arg1: i32) -> (i32, i32) {
    %c0_i32 = arith.constant 0 : i32
    %c0_i32_0 = arith.constant 0 : i32
    return %arg0, %c0_i32 : i32, i32
  }
  func.func @transform_1(%arg0: i32, %arg1: i32) -> (i32, i32, i32) {
    %c0_i32 = arith.constant 0 : i32
    %c0_i32_0 = arith.constant 0 : i32
    %c0_i32_1 = arith.constant 0 : i32
    return %c0_i32, %arg1, %c0_i32_0 : i32, i32, i32
  }
  func.func @transform_2(%arg0: i32, %arg1: i32) -> (i32, i32, i32) {
    %c0_i32 = arith.constant 0 : i32
    %c0_i32_0 = arith.constant 0 : i32
    %c0_i32_1 = arith.constant 0 : i32
    return %c0_i32, %arg1, %c0_i32_0 : i32, i32, i32
  }
  func.func @transform_3(%arg0: i32, %arg1: i32) -> (i32, i32, i32) {
    %c0_i32 = arith.constant 0 : i32
    %c0_i32_0 = arith.constant 0 : i32
    %c0_i32_1 = arith.constant 0 : i32
    %c0_i32_2 = arith.constant 0 : i32
    return %c0_i32, %c0_i32_0, %c0_i32_1 : i32, i32, i32
  }
  func.func @transform_4(%arg0: i32, %arg1: i32) -> (i32, i32, i32) {
    %c0_i32 = arith.constant 0 : i32
    %c0_i32_0 = arith.constant 0 : i32
    %c0_i32_1 = arith.constant 0 : i32
    %c0_i32_2 = arith.constant 0 : i32
    return %c0_i32, %c0_i32_0, %c0_i32_1 : i32, i32, i32
  }
  func.func @transform_5(%arg0: i32, %arg1: i32) -> (i32, i32, i32) {
    %c0_i32 = arith.constant 0 : i32
    %c0_i32_0 = arith.constant 0 : i32
    %c0_i32_1 = arith.constant 0 : i32
    %c0_i32_2 = arith.constant 0 : i32
    return %c0_i32, %c0_i32_0, %c0_i32_1 : i32, i32, i32
  }
  func.func @transform_6(%arg0: i32, %arg1: i32) -> (i32, i32) {
    %c0_i32 = arith.constant 0 : i32
    %c0_i32_0 = arith.constant 0 : i32
    %c0_i32_1 = arith.constant 0 : i32
    return %c0_i32, %c0_i32_0 : i32, i32
  }
  func.func @transform_7(%arg0: i32, %arg1: i32) -> (i32, i32) {
    %c0_i32 = arith.constant 0 : i32
    %c0_i32_0 = arith.constant 0 : i32
    %c0_i32_1 = arith.constant 0 : i32
    return %c0_i32, %c0_i32_0 : i32, i32
  }
  func.func @transform_8(%arg0: i32, %arg1: i32) -> (i32, i32) {
    %c0_i32 = arith.constant 0 : i32
    %c0_i32_0 = arith.constant 0 : i32
    %c0_i32_1 = arith.constant 0 : i32
    return %c0_i32, %c0_i32_0 : i32, i32
  }
  func.func @transform_9(%arg0: i32, %arg1: i32) -> (i32, i32, i32) {
    %c0_i32 = arith.constant 0 : i32
    %c0_i32_0 = arith.constant 0 : i32
    %c0_i32_1 = arith.constant 0 : i32
    return %arg1, %c0_i32, %c0_i32_0 : i32, i32, i32
  }
  func.func @transform_10(%arg0: i32, %arg1: i32) -> (i32, i32) {
    %c0_i32 = arith.constant 0 : i32
    %c0_i32_0 = arith.constant 0 : i32
    return %arg0, %c0_i32 : i32, i32
  }
}

module attributes {stable_mosaic.version = 11 : i64} {
  func.func @pair_attention_kernel(%arg0: i32, %arg1: i32, %arg2: memref<8x32xf32, #tpu.memory_space<vmem>>, %arg3: memref<4x8x8xbf16, #tpu.memory_space<vmem>>, %arg4: memref<4x8x8xbf16, #tpu.memory_space<vmem>>, %arg5: memref<4x32x8xbf16, #tpu.memory_space<vmem>>, %arg6: memref<4x1x8xf32, #tpu.memory_space<vmem>>, %arg7: memref<4x8x32xbf16, #tpu.memory_space<vmem>>, %arg8: memref<1x32xf32, #tpu.memory_space<vmem>>, %arg9: memref<1x32xf32, #tpu.memory_space<vmem>>, %arg10: memref<1x32xf32, #tpu.memory_space<vmem>>, %arg11: memref<1x1x8xf32, #tpu.memory_space<vmem>>, %arg12: memref<8x32xf32, #tpu.memory_space<vmem>>, %arg13: memref<4x8x8xbf16, #tpu.memory_space<vmem>>, %arg14: memref<4x8x1xf32, #tpu.memory_space<vmem>>, %arg15: memref<4x8x1xf32, #tpu.memory_space<vmem>>, %arg16: memref<4x8x8xf32, #tpu.memory_space<vmem>>) attributes {dimension_semantics = [#tpu.dimension_semantics<parallel>, #tpu.dimension_semantics<arbitrary>], iteration_bounds = array<i64: 1, 1>, scalar_prefetch = 0 : i64, scratch_operands = 4 : i64, tpu.core_type = #tpu.core_type<tc>, window_params = [{transform_indices = @transform_0, window_bounds = array<i64: 8, 32>}, {transform_indices = @transform_1, window_bounds = array<i64: 4, 8, 8>}, {transform_indices = @transform_2, window_bounds = array<i64: 4, 8, 8>}, {pipeline_mode = #tpu.pipeline_mode<synchronous>, transform_indices = @transform_3, window_bounds = array<i64: 4, 32, 8>}, {pipeline_mode = #tpu.pipeline_mode<synchronous>, transform_indices = @transform_4, window_bounds = array<i64: 4, 1, 8>}, {pipeline_mode = #tpu.pipeline_mode<synchronous>, transform_indices = @transform_5, window_bounds = array<i64: 4, 8, 32>}, {pipeline_mode = #tpu.pipeline_mode<synchronous>, transform_indices = @transform_6, window_bounds = array<i64: 1, 32>}, {pipeline_mode = #tpu.pipeline_mode<synchronous>, transform_indices = @transform_7, window_bounds = array<i64: 1, 32>}, {pipeline_mode = #tpu.pipeline_mode<synchronous>, transform_indices = @transform_8, window_bounds = array<i64: 1, 32>}, {transform_indices = @transform_9, window_bounds = array<i64: 1, 1, 8>}, {transform_indices = @transform_10, window_bounds = array<i64: 8, 32>}]} {
    %c0_i32 = arith.constant 0 : i32
    %0 = arith.cmpi eq, %arg1, %c0_i32 : i32
    %1 = arith.extui %0 : i1 to i32
    %c0_i32_0 = arith.constant 0 : i32
    %2 = arith.cmpi ne, %1, %c0_i32_0 : i32
    scf.if %2 {
      %c0_35 = arith.constant 0 : index
      %c0_36 = arith.constant 0 : index
      %36 = vector.load %arg2[%c0_35, %c0_36] : memref<8x32xf32, #tpu.memory_space<vmem>>, vector<8x32xf32>
      %37 = arith.truncf %36 : vector<8x32xf32> to vector<8x32xbf16>
      %c0_37 = arith.constant 0 : index
      %c0_38 = arith.constant 0 : index
      %c0_39 = arith.constant 0 : index
      %38 = vector.load %arg5[%c0_37, %c0_38, %c0_39] : memref<4x32x8xbf16, #tpu.memory_space<vmem>>, vector<1x32x8xbf16>
      %39 = vector.shape_cast %38 : vector<1x32x8xbf16> to vector<32x8xbf16>
      %cst_40 = arith.constant dense<0.000000e+00> : vector<8x8xf32>
      %40 = tpu.matmul %37, %39, %cst_40 {dimension_numbers = #tpu.dot_dimension_numbers<[1], [0], [0], [1], [0, 0, 1, 1], [], []>} : vector<8x32xbf16>, vector<32x8xbf16>, vector<8x8xf32> -> vector<8x8xf32>
      %c0_41 = arith.constant 0 : index
      %c0_42 = arith.constant 0 : index
      %c0_43 = arith.constant 0 : index
      %41 = vector.load %arg6[%c0_41, %c0_42, %c0_43] : memref<4x1x8xf32, #tpu.memory_space<vmem>>, vector<1x1x8xf32>
      %42 = vector.shape_cast %41 : vector<1x1x8xf32> to vector<1x8xf32>
      %43 = vector.broadcast %42 : vector<1x8xf32> to vector<8x8xf32>
      %44 = arith.addf %40, %43 : vector<8x8xf32>
      %c1 = arith.constant 1 : index
      %c0_44 = arith.constant 0 : index
      %c0_45 = arith.constant 0 : index
      %45 = vector.load %arg5[%c1, %c0_44, %c0_45] : memref<4x32x8xbf16, #tpu.memory_space<vmem>>, vector<1x32x8xbf16>
      %46 = vector.shape_cast %45 : vector<1x32x8xbf16> to vector<32x8xbf16>
      %cst_46 = arith.constant dense<0.000000e+00> : vector<8x8xf32>
      %47 = tpu.matmul %37, %46, %cst_46 {dimension_numbers = #tpu.dot_dimension_numbers<[1], [0], [0], [1], [0, 0, 1, 1], [], []>} : vector<8x32xbf16>, vector<32x8xbf16>, vector<8x8xf32> -> vector<8x8xf32>
      %c1_47 = arith.constant 1 : index
      %c0_48 = arith.constant 0 : index
      %c0_49 = arith.constant 0 : index
      %48 = vector.load %arg6[%c1_47, %c0_48, %c0_49] : memref<4x1x8xf32, #tpu.memory_space<vmem>>, vector<1x1x8xf32>
      %49 = vector.shape_cast %48 : vector<1x1x8xf32> to vector<1x8xf32>
      %50 = vector.broadcast %49 : vector<1x8xf32> to vector<8x8xf32>
      %51 = arith.addf %47, %50 : vector<8x8xf32>
      %c2 = arith.constant 2 : index
      %c0_50 = arith.constant 0 : index
      %c0_51 = arith.constant 0 : index
      %52 = vector.load %arg5[%c2, %c0_50, %c0_51] : memref<4x32x8xbf16, #tpu.memory_space<vmem>>, vector<1x32x8xbf16>
      %53 = vector.shape_cast %52 : vector<1x32x8xbf16> to vector<32x8xbf16>
      %cst_52 = arith.constant dense<0.000000e+00> : vector<8x8xf32>
      %54 = tpu.matmul %37, %53, %cst_52 {dimension_numbers = #tpu.dot_dimension_numbers<[1], [0], [0], [1], [0, 0, 1, 1], [], []>} : vector<8x32xbf16>, vector<32x8xbf16>, vector<8x8xf32> -> vector<8x8xf32>
      %c2_53 = arith.constant 2 : index
      %c0_54 = arith.constant 0 : index
      %c0_55 = arith.constant 0 : index
      %55 = vector.load %arg6[%c2_53, %c0_54, %c0_55] : memref<4x1x8xf32, #tpu.memory_space<vmem>>, vector<1x1x8xf32>
      %56 = vector.shape_cast %55 : vector<1x1x8xf32> to vector<1x8xf32>
      %57 = vector.broadcast %56 : vector<1x8xf32> to vector<8x8xf32>
      %58 = arith.addf %54, %57 : vector<8x8xf32>
      %c3 = arith.constant 3 : index
      %c0_56 = arith.constant 0 : index
      %c0_57 = arith.constant 0 : index
      %59 = vector.load %arg5[%c3, %c0_56, %c0_57] : memref<4x32x8xbf16, #tpu.memory_space<vmem>>, vector<1x32x8xbf16>
      %60 = vector.shape_cast %59 : vector<1x32x8xbf16> to vector<32x8xbf16>
      %cst_58 = arith.constant dense<0.000000e+00> : vector<8x8xf32>
      %61 = tpu.matmul %37, %60, %cst_58 {dimension_numbers = #tpu.dot_dimension_numbers<[1], [0], [0], [1], [0, 0, 1, 1], [], []>} : vector<8x32xbf16>, vector<32x8xbf16>, vector<8x8xf32> -> vector<8x8xf32>
      %c3_59 = arith.constant 3 : index
      %c0_60 = arith.constant 0 : index
      %c0_61 = arith.constant 0 : index
      %62 = vector.load %arg6[%c3_59, %c0_60, %c0_61] : memref<4x1x8xf32, #tpu.memory_space<vmem>>, vector<1x1x8xf32>
      %63 = vector.shape_cast %62 : vector<1x1x8xf32> to vector<1x8xf32>
      %64 = vector.broadcast %63 : vector<1x8xf32> to vector<8x8xf32>
      %65 = arith.addf %61, %64 : vector<8x8xf32>
      %66 = vector.shape_cast %44 : vector<8x8xf32> to vector<1x8x8xf32>
      %67 = vector.shape_cast %51 : vector<8x8xf32> to vector<1x8x8xf32>
      %68 = vector.shape_cast %58 : vector<8x8xf32> to vector<1x8x8xf32>
      %69 = vector.shape_cast %65 : vector<8x8xf32> to vector<1x8x8xf32>
      %70 = tpu.concatenate %66, %67, %68, %69 in 0 : vector<1x8x8xf32>, vector<1x8x8xf32>, vector<1x8x8xf32>, vector<1x8x8xf32> -> vector<4x8x8xf32>
      %71 = arith.truncf %70 : vector<4x8x8xf32> to vector<4x8x8xbf16>
      %c0_62 = arith.constant 0 : index
      %c0_63 = arith.constant 0 : index
      %c0_64 = arith.constant 0 : index
      %72 = vector.load %arg13[%c0_62, %c0_63, %c0_64] : memref<4x8x8xbf16, #tpu.memory_space<vmem>>, vector<4x8x8xbf16>
      tpu.vector_store %arg13[%c0_62, %c0_63, %c0_64], %71 {strides = array<i32>} : memref<4x8x8xbf16, #tpu.memory_space<vmem>>, vector<4x8x8xbf16>,
      %cst_65 = arith.constant 0xFF800000 : f32
      %73 = vector.broadcast %cst_65 : f32 to vector<4x8x1xf32>
      %c0_66 = arith.constant 0 : index
      %c0_67 = arith.constant 0 : index
      %c0_68 = arith.constant 0 : index
      %74 = vector.load %arg14[%c0_66, %c0_67, %c0_68] : memref<4x8x1xf32, #tpu.memory_space<vmem>>, vector<4x8x1xf32>
      tpu.vector_store %arg14[%c0_66, %c0_67, %c0_68], %73 {strides = array<i32>} : memref<4x8x1xf32, #tpu.memory_space<vmem>>, vector<4x8x1xf32>,
      %cst_69 = arith.constant 0.000000e+00 : f32
      %75 = vector.broadcast %cst_69 : f32 to vector<4x8x1xf32>
      %c0_70 = arith.constant 0 : index
      %c0_71 = arith.constant 0 : index
      %c0_72 = arith.constant 0 : index
      %76 = vector.load %arg15[%c0_70, %c0_71, %c0_72] : memref<4x8x1xf32, #tpu.memory_space<vmem>>, vector<4x8x1xf32>
      tpu.vector_store %arg15[%c0_70, %c0_71, %c0_72], %75 {strides = array<i32>} : memref<4x8x1xf32, #tpu.memory_space<vmem>>, vector<4x8x1xf32>,
      %cst_73 = arith.constant 0.000000e+00 : f32
      %77 = vector.broadcast %cst_73 : f32 to vector<4x8x8xf32>
      %c0_74 = arith.constant 0 : index
      %c0_75 = arith.constant 0 : index
      %c0_76 = arith.constant 0 : index
      %78 = vector.load %arg16[%c0_74, %c0_75, %c0_76] : memref<4x8x8xf32, #tpu.memory_space<vmem>>, vector<4x8x8xf32>
      tpu.vector_store %arg16[%c0_74, %c0_75, %c0_76], %77 {strides = array<i32>} : memref<4x8x8xf32, #tpu.memory_space<vmem>>, vector<4x8x8xf32>,
    } else {
    }
    %c0 = arith.constant 0 : index
    %c0_1 = arith.constant 0 : index
    %c0_2 = arith.constant 0 : index
    %3 = vector.load %arg13[%c0, %c0_1, %c0_2] : memref<4x8x8xbf16, #tpu.memory_space<vmem>>, vector<4x8x8xbf16>
    %c0_3 = arith.constant 0 : index
    %c0_4 = arith.constant 0 : index
    %c0_5 = arith.constant 0 : index
    %4 = vector.load %arg3[%c0_3, %c0_4, %c0_5] : memref<4x8x8xbf16, #tpu.memory_space<vmem>>, vector<4x8x8xbf16>
    "tpu.trace_start"() <{level = 10 : i32, message = "hqd,hkd->hqk"}> : () -> ()
    %cst = arith.constant dense<0.000000e+00> : vector<4x8x8xf32>
    %5 = tpu.matmul %3, %4, %cst {dimension_numbers = #tpu.dot_dimension_numbers<[2], [2], [1], [1], [0, 0, 0, 1, 1, 1], [0], [0]>} : vector<4x8x8xbf16>, vector<4x8x8xbf16>, vector<4x8x8xf32> -> vector<4x8x8xf32>
    "tpu.trace_stop"() : () -> ()
    %c0_6 = arith.constant 0 : index
    %c0_7 = arith.constant 0 : index
    %c0_8 = arith.constant 0 : index
    %6 = vector.load %arg11[%c0_6, %c0_7, %c0_8] : memref<1x1x8xf32, #tpu.memory_space<vmem>>, vector<1x1x8xf32>
    %7 = vector.broadcast %6 : vector<1x1x8xf32> to vector<4x8x8xf32>
    %8 = arith.addf %5, %7 : vector<4x8x8xf32>
    %c0_9 = arith.constant 0 : index
    %c0_10 = arith.constant 0 : index
    %c0_11 = arith.constant 0 : index
    %9 = vector.load %arg14[%c0_9, %c0_10, %c0_11] : memref<4x8x1xf32, #tpu.memory_space<vmem>>, vector<4x8x1xf32>
    %cst_12 = arith.constant dense<0xFF800000> : vector<4x8xf32>
    %10 = vector.multi_reduction <maximumf>, %8, %cst_12 [2] : vector<4x8x8xf32> to vector<4x8xf32>
    %11 = vector.shape_cast %10 : vector<4x8xf32> to vector<4x8x1xf32>
    %12 = arith.maximumf %9, %11 : vector<4x8x1xf32>
    %13 = arith.subf %9, %12 : vector<4x8x1xf32>
    %14 = math.exp %13 : vector<4x8x1xf32>
    %15 = vector.broadcast %12 : vector<4x8x1xf32> to vector<4x8x8xf32>
    %16 = arith.subf %8, %15 : vector<4x8x8xf32>
    %17 = math.exp %16 : vector<4x8x8xf32>
    %c0_13 = arith.constant 0 : index
    %c0_14 = arith.constant 0 : index
    %c0_15 = arith.constant 0 : index
    %18 = vector.load %arg15[%c0_13, %c0_14, %c0_15] : memref<4x8x1xf32, #tpu.memory_space<vmem>>, vector<4x8x1xf32>
    %19 = arith.mulf %14, %18 : vector<4x8x1xf32>
    %cst_16 = arith.constant dense<0.000000e+00> : vector<4x8xf32>
    %20 = vector.multi_reduction <add>, %17, %cst_16 [2] : vector<4x8x8xf32> to vector<4x8xf32>
    %21 = vector.shape_cast %20 : vector<4x8xf32> to vector<4x8x1xf32>
    %22 = arith.addf %19, %21 : vector<4x8x1xf32>
    %c0_17 = arith.constant 0 : index
    %c0_18 = arith.constant 0 : index
    %c0_19 = arith.constant 0 : index
    %23 = vector.load %arg15[%c0_17, %c0_18, %c0_19] : memref<4x8x1xf32, #tpu.memory_space<vmem>>, vector<4x8x1xf32>
    tpu.vector_store %arg15[%c0_17, %c0_18, %c0_19], %22 {strides = array<i32>} : memref<4x8x1xf32, #tpu.memory_space<vmem>>, vector<4x8x1xf32>,
    %c0_20 = arith.constant 0 : index
    %c0_21 = arith.constant 0 : index
    %c0_22 = arith.constant 0 : index
    %24 = vector.load %arg16[%c0_20, %c0_21, %c0_22] : memref<4x8x8xf32, #tpu.memory_space<vmem>>, vector<4x8x8xf32>
    %25 = vector.broadcast %14 : vector<4x8x1xf32> to vector<4x8x8xf32>
    %26 = arith.mulf %25, %24 : vector<4x8x8xf32>
    %27 = arith.truncf %17 : vector<4x8x8xf32> to vector<4x8x8xbf16>
    %c0_23 = arith.constant 0 : index
    %c0_24 = arith.constant 0 : index
    %c0_25 = arith.constant 0 : index
    %28 = vector.load %arg4[%c0_23, %c0_24, %c0_25] : memref<4x8x8xbf16, #tpu.memory_space<vmem>>, vector<4x8x8xbf16>
    "tpu.trace_start"() <{level = 10 : i32, message = "hqk,hkd->hqd"}> : () -> ()
    %cst_26 = arith.constant dense<0.000000e+00> : vector<4x8x8xf32>
    %29 = tpu.matmul %27, %28, %cst_26 {dimension_numbers = #tpu.dot_dimension_numbers<[2], [1], [1], [2], [0, 0, 0, 1, 1, 2], [0], [0]>} : vector<4x8x8xbf16>, vector<4x8x8xbf16>, vector<4x8x8xf32> -> vector<4x8x8xf32>
    "tpu.trace_stop"() : () -> ()
    %30 = arith.addf %26, %29 : vector<4x8x8xf32>
    %c0_27 = arith.constant 0 : index
    %c0_28 = arith.constant 0 : index
    %c0_29 = arith.constant 0 : index
    %31 = vector.load %arg16[%c0_27, %c0_28, %c0_29] : memref<4x8x8xf32, #tpu.memory_space<vmem>>, vector<4x8x8xf32>
    tpu.vector_store %arg16[%c0_27, %c0_28, %c0_29], %30 {strides = array<i32>} : memref<4x8x8xf32, #tpu.memory_space<vmem>>, vector<4x8x8xf32>,
    %c0_30 = arith.constant 0 : index
    %c0_31 = arith.constant 0 : index
    %c0_32 = arith.constant 0 : index
    %32 = vector.load %arg14[%c0_30, %c0_31, %c0_32] : memref<4x8x1xf32, #tpu.memory_space<vmem>>, vector<4x8x1xf32>
    tpu.vector_store %arg14[%c0_30, %c0_31, %c0_32], %12 {strides = array<i32>} : memref<4x8x1xf32, #tpu.memory_space<vmem>>, vector<4x8x1xf32>,
    %c0_i32_33 = arith.constant 0 : i32
    %33 = arith.cmpi eq, %arg1, %c0_i32_33 : i32
    %34 = arith.extui %33 : i1 to i32
    %c0_i32_34 = arith.constant 0 : i32
    %35 = arith.cmpi ne, %34, %c0_i32_34 : i32
    scf.if %35 {
      %c0_35 = arith.constant 0 : index
      %c0_36 = arith.constant 0 : index
      %c0_37 = arith.constant 0 : index
      %36 = vector.load %arg16[%c0_35, %c0_36, %c0_37] : memref<4x8x8xf32, #tpu.memory_space<vmem>>, vector<4x8x8xf32>
      %c0_38 = arith.constant 0 : index
      %c0_39 = arith.constant 0 : index
      %c0_40 = arith.constant 0 : index
      %37 = vector.load %arg15[%c0_38, %c0_39, %c0_40] : memref<4x8x1xf32, #tpu.memory_space<vmem>>, vector<4x8x1xf32>
      %38 = tpu.reciprocal %37 {approx = true} : vector<4x8x1xf32> -> vector<4x8x1xf32>
      %39 = vector.broadcast %38 : vector<4x8x1xf32> to vector<4x8x8xf32>
      %40 = arith.mulf %36, %39 : vector<4x8x8xf32>
      %41 = arith.truncf %40 : vector<4x8x8xf32> to vector<4x8x8xbf16>
      %42 = vector.extract_strided_slice %41 {offsets = [0, 0, 0], sizes = [1, 8, 8], strides = [1, 1, 1]} : vector<4x8x8xbf16> to vector<1x8x8xbf16>
      %43 = vector.shape_cast %42 : vector<1x8x8xbf16> to vector<8x8xbf16>
      %c0_41 = arith.constant 0 : index
      %c0_42 = arith.constant 0 : index
      %c0_43 = arith.constant 0 : index
      %44 = vector.load %arg7[%c0_41, %c0_42, %c0_43] : memref<4x8x32xbf16, #tpu.memory_space<vmem>>, vector<1x8x32xbf16>
      %45 = vector.shape_cast %44 : vector<1x8x32xbf16> to vector<8x32xbf16>
      %cst_44 = arith.constant dense<0.000000e+00> : vector<8x32xf32>
      %46 = tpu.matmul %43, %45, %cst_44 {dimension_numbers = #tpu.dot_dimension_numbers<[1], [0], [0], [1], [0, 0, 1, 1], [], []>} : vector<8x8xbf16>, vector<8x32xbf16>, vector<8x32xf32> -> vector<8x32xf32>
      %47 = vector.extract_strided_slice %41 {offsets = [1, 0, 0], sizes = [1, 8, 8], strides = [1, 1, 1]} : vector<4x8x8xbf16> to vector<1x8x8xbf16>
      %48 = vector.shape_cast %47 : vector<1x8x8xbf16> to vector<8x8xbf16>
      %c1 = arith.constant 1 : index
      %c0_45 = arith.constant 0 : index
      %c0_46 = arith.constant 0 : index
      %49 = vector.load %arg7[%c1, %c0_45, %c0_46] : memref<4x8x32xbf16, #tpu.memory_space<vmem>>, vector<1x8x32xbf16>
      %50 = vector.shape_cast %49 : vector<1x8x32xbf16> to vector<8x32xbf16>
      %cst_47 = arith.constant dense<0.000000e+00> : vector<8x32xf32>
      %51 = tpu.matmul %48, %50, %cst_47 {dimension_numbers = #tpu.dot_dimension_numbers<[1], [0], [0], [1], [0, 0, 1, 1], [], []>} : vector<8x8xbf16>, vector<8x32xbf16>, vector<8x32xf32> -> vector<8x32xf32>
      %52 = arith.addf %46, %51 : vector<8x32xf32>
      %53 = vector.extract_strided_slice %41 {offsets = [2, 0, 0], sizes = [1, 8, 8], strides = [1, 1, 1]} : vector<4x8x8xbf16> to vector<1x8x8xbf16>
      %54 = vector.shape_cast %53 : vector<1x8x8xbf16> to vector<8x8xbf16>
      %c2 = arith.constant 2 : index
      %c0_48 = arith.constant 0 : index
      %c0_49 = arith.constant 0 : index
      %55 = vector.load %arg7[%c2, %c0_48, %c0_49] : memref<4x8x32xbf16, #tpu.memory_space<vmem>>, vector<1x8x32xbf16>
      %56 = vector.shape_cast %55 : vector<1x8x32xbf16> to vector<8x32xbf16>
      %cst_50 = arith.constant dense<0.000000e+00> : vector<8x32xf32>
      %57 = tpu.matmul %54, %56, %cst_50 {dimension_numbers = #tpu.dot_dimension_numbers<[1], [0], [0], [1], [0, 0, 1, 1], [], []>} : vector<8x8xbf16>, vector<8x32xbf16>, vector<8x32xf32> -> vector<8x32xf32>
      %58 = arith.addf %52, %57 : vector<8x32xf32>
      %59 = vector.extract_strided_slice %41 {offsets = [3, 0, 0], sizes = [1, 8, 8], strides = [1, 1, 1]} : vector<4x8x8xbf16> to vector<1x8x8xbf16>
      %60 = vector.shape_cast %59 : vector<1x8x8xbf16> to vector<8x8xbf16>
      %c3 = arith.constant 3 : index
      %c0_51 = arith.constant 0 : index
      %c0_52 = arith.constant 0 : index
      %61 = vector.load %arg7[%c3, %c0_51, %c0_52] : memref<4x8x32xbf16, #tpu.memory_space<vmem>>, vector<1x8x32xbf16>
      %62 = vector.shape_cast %61 : vector<1x8x32xbf16> to vector<8x32xbf16>
      %cst_53 = arith.constant dense<0.000000e+00> : vector<8x32xf32>
      %63 = tpu.matmul %60, %62, %cst_53 {dimension_numbers = #tpu.dot_dimension_numbers<[1], [0], [0], [1], [0, 0, 1, 1], [], []>} : vector<8x8xbf16>, vector<8x32xbf16>, vector<8x32xf32> -> vector<8x32xf32>
      %64 = arith.addf %58, %63 : vector<8x32xf32>
      %c0_54 = arith.constant 0 : index
      %c0_55 = arith.constant 0 : index
      %65 = vector.load %arg8[%c0_54, %c0_55] : memref<1x32xf32, #tpu.memory_space<vmem>>, vector<1x32xf32>
      %66 = vector.broadcast %65 : vector<1x32xf32> to vector<8x32xf32>
      %67 = arith.addf %64, %66 : vector<8x32xf32>
      %68 = math.tanh %67 : vector<8x32xf32>
      %c0_56 = arith.constant 0 : index
      %c0_57 = arith.constant 0 : index
      %69 = vector.load %arg2[%c0_56, %c0_57] : memref<8x32xf32, #tpu.memory_space<vmem>>, vector<8x32xf32>
      %70 = arith.addf %68, %69 : vector<8x32xf32>
      %cst_58 = arith.constant dense<0.000000e+00> : vector<8xf32>
      %71 = vector.multi_reduction <add>, %70, %cst_58 [1] : vector<8x32xf32> to vector<8xf32>
      %72 = vector.shape_cast %71 : vector<8xf32> to vector<8x1xf32>
      %cst_59 = arith.constant 3.200000e+01 : f32
      %73 = vector.broadcast %cst_59 : f32 to vector<8x1xf32>
      %74 = arith.divf %72, %73 : vector<8x1xf32>
      %75 = vector.broadcast %74 : vector<8x1xf32> to vector<8x32xf32>
      %76 = arith.subf %70, %75 : vector<8x32xf32>
      %77 = arith.mulf %76, %76 : vector<8x32xf32>
      %cst_60 = arith.constant dense<0.000000e+00> : vector<8xf32>
      %78 = vector.multi_reduction <add>, %77, %cst_60 [1] : vector<8x32xf32> to vector<8xf32>
      %79 = vector.shape_cast %78 : vector<8xf32> to vector<8x1xf32>
      %cst_61 = arith.constant 3.200000e+01 : f32
      %80 = vector.broadcast %cst_61 : f32 to vector<8x1xf32>
      %81 = arith.divf %79, %80 : vector<8x1xf32>
      %82 = vector.broadcast %74 : vector<8x1xf32> to vector<8x32xf32>
      %83 = arith.subf %70, %82 : vector<8x32xf32>
      %cst_62 = arith.constant 9.99999974E-6 : f32
      %84 = vector.broadcast %cst_62 : f32 to vector<8x1xf32>
      %85 = arith.addf %81, %84 : vector<8x1xf32>
      %86 = math.rsqrt %85 : vector<8x1xf32>
      %87 = vector.broadcast %86 : vector<8x1xf32> to vector<8x32xf32>
      %88 = arith.mulf %83, %87 : vector<8x32xf32>
      %c0_63 = arith.constant 0 : index
      %c0_64 = arith.constant 0 : index
      %89 = vector.load %arg9[%c0_63, %c0_64] : memref<1x32xf32, #tpu.memory_space<vmem>>, vector<1x32xf32>
      %90 = vector.broadcast %89 : vector<1x32xf32> to vector<8x32xf32>
      %91 = arith.mulf %88, %90 : vector<8x32xf32>
      %c0_65 = arith.constant 0 : index
      %c0_66 = arith.constant 0 : index
      %92 = vector.load %arg10[%c0_65, %c0_66] : memref<1x32xf32, #tpu.memory_space<vmem>>, vector<1x32xf32>
      %93 = vector.broadcast %92 : vector<1x32xf32> to vector<8x32xf32>
      %94 = arith.addf %91, %93 : vector<8x32xf32>
      %c0_67 = arith.constant 0 : index
      %c0_68 = arith.constant 0 : index
      %95 = vector.load %arg12[%c0_67, %c0_68] : memref<8x32xf32, #tpu.memory_space<vmem>>, vector<8x32xf32>
      tpu.vector_store %arg12[%c0_67, %c0_68], %94 {strides = array<i32>} : memref<8x32xf32, #tpu.memory_space<vmem>>, vector<8x32xf32>,
    } else {
    }
    return
  }
  func.func @transform_0(%arg0: i32, %arg1: i32) -> (i32, i32) {
    %c0_i32 = arith.constant 0 : i32
    %c0_i32_0 = arith.constant 0 : i32
    return %arg0, %c0_i32 : i32, i32
  }
  func.func @transform_1(%arg0: i32, %arg1: i32) -> (i32, i32, i32) {
    %c0_i32 = arith.constant 0 : i32
    %c0_i32_0 = arith.constant 0 : i32
    %c0_i32_1 = arith.constant 0 : i32
    return %c0_i32, %arg1, %c0_i32_0 : i32, i32, i32
  }
  func.func @transform_2(%arg0: i32, %arg1: i32) -> (i32, i32, i32) {
    %c0_i32 = arith.constant 0 : i32
    %c0_i32_0 = arith.constant 0 : i32
    %c0_i32_1 = arith.constant 0 : i32
    return %c0_i32, %arg1, %c0_i32_0 : i32, i32, i32
  }
  func.func @transform_3(%arg0: i32, %arg1: i32) -> (i32, i32, i32) {
    %c0_i32 = arith.constant 0 : i32
    %c0_i32_0 = arith.constant 0 : i32
    %c0_i32_1 = arith.constant 0 : i32
    %c0_i32_2 = arith.constant 0 : i32
    return %c0_i32, %c0_i32_0, %c0_i32_1 : i32, i32, i32
  }
  func.func @transform_4(%arg0: i32, %arg1: i32) -> (i32, i32, i32) {
    %c0_i32 = arith.constant 0 : i32
    %c0_i32_0 = arith.constant 0 : i32
    %c0_i32_1 = arith.constant 0 : i32
    %c0_i32_2 = arith.constant 0 : i32
    return %c0_i32, %c0_i32_0, %c0_i32_1 : i32, i32, i32
  }
  func.func @transform_5(%arg0: i32, %arg1: i32) -> (i32, i32, i32) {
    %c0_i32 = arith.constant 0 : i32
    %c0_i32_0 = arith.constant 0 : i32
    %c0_i32_1 = arith.constant 0 : i32
    %c0_i32_2 = arith.constant 0 : i32
    return %c0_i32, %c0_i32_0, %c0_i32_1 : i32, i32, i32
  }
  func.func @transform_6(%arg0: i32, %arg1: i32) -> (i32, i32) {
    %c0_i32 = arith.constant 0 : i32
    %c0_i32_0 = arith.constant 0 : i32
    %c0_i32_1 = arith.constant 0 : i32
    return %c0_i32, %c0_i32_0 : i32, i32
  }
  func.func @transform_7(%arg0: i32, %arg1: i32) -> (i32, i32) {
    %c0_i32 = arith.constant 0 : i32
    %c0_i32_0 = arith.constant 0 : i32
    %c0_i32_1 = arith.constant 0 : i32
    return %c0_i32, %c0_i32_0 : i32, i32
  }
  func.func @transform_8(%arg0: i32, %arg1: i32) -> (i32, i32) {
    %c0_i32 = arith.constant 0 : i32
    %c0_i32_0 = arith.constant 0 : i32
    %c0_i32_1 = arith.constant 0 : i32
    return %c0_i32, %c0_i32_0 : i32, i32
  }
  func.func @transform_9(%arg0: i32, %arg1: i32) -> (i32, i32, i32) {
    %c0_i32 = arith.constant 0 : i32
    %c0_i32_0 = arith.constant 0 : i32
    %c0_i32_1 = arith.constant 0 : i32
    return %arg1, %c0_i32, %c0_i32_0 : i32, i32, i32
  }
  func.func @transform_10(%arg0: i32, %arg1: i32) -> (i32, i32) {
    %c0_i32 = arith.constant 0 : i32
    %c0_i32_0 = arith.constant 0 : i32
    return %arg0, %c0_i32 : i32, i32
  }
}

</mosaic_0001>

<llo_original>
// kernel: tpu_custom_call.1
$region0: #{tpu_custom_call.1}
  #allocation0 [shape = 'u32[]', space=smem, size = 0x4, offset = 0x4, fixed_abs, tag = 'smem constant byte address 0x4 - core index']
  #allocation1 [shape = 'u32[144,128]{1,0:T(1,128)}', space=vmem, size = 0x12000, scoped, tag = 'internal scratch']
  #allocation2 [shape = 'bf16[4,8,8]{2,1,0:T(8,128)(2,1)}', space=vmem, size = 0x2000, scoped, tag = 'scratch operand']
  #allocation3 [shape = 'f32[4,8,1]{2,1,0:T(8,128)}', space=vmem, size = 0x4000, scoped, tag = 'scratch operand']
  #allocation4 [shape = 'f32[4,8,1]{2,1,0:T(8,128)}', space=vmem, size = 0x4000, scoped, tag = 'scratch operand']
  #allocation5 [shape = 'f32[4,8,8]{2,1,0:T(8,128)}', space=vmem, size = 0x4000, scoped, tag = 'scratch operand']
  %s0 = inlined_call_operand.vmem [shape: f32[8,32], index: 0, kind: input, shape index: {}]
  %s1 = inlined_call_operand.vmem [shape: bf16[4,8,8], index: 1, kind: input, shape index: {}]
  %s2 = inlined_call_operand.vmem [shape: bf16[4,8,8], index: 2, kind: input, shape index: {}]
  %s3 = inlined_call_operand.vmem [shape: bf16[4,32,8], index: 3, kind: input, shape index: {}]
  %s4 = inlined_call_operand.vmem [shape: f32[4,1,8], index: 4, kind: input, shape index: {}]
  %s5 = inlined_call_operand.vmem [shape: bf16[4,8,32], index: 5, kind: input, shape index: {}]
  %s6 = inlined_call_operand.vmem [shape: f32[1,32], index: 6, kind: input, shape index: {}]
  %s7 = inlined_call_operand.vmem [shape: f32[1,32], index: 7, kind: input, shape index: {}]
  %s8 = inlined_call_operand.vmem [shape: f32[1,32], index: 8, kind: input, shape index: {}]
  %s9 = inlined_call_operand.vmem [shape: f32[1,1,8], index: 9, kind: input, shape index: {}]
  %s10 = inlined_call_operand.hbm [shape: f32[8,32], index: 10, kind: output, shape index: {}]
  %s11 = sld [smem:[#allocation0]]
  $region58: #{tpu_custom_call.1} parent=0
    _
  %s13 = ssub.s32 1, %s11
  %s14 = scalar_select 0, %s13, %s11
  $region1: #{tpu_custom_call.1} parent=0
    #allocation6 [shape = 'u8[4096]{0}', space=vmem, size = 0x1000, scoped, tag = 'output window, operand 0, single buffered']
    #allocation7 [shape = 's32[1]{0}', space=sflag, size = 0x4, scoped, tag = 'scoped memory for tpu_custom_call.1']
    %15 = vsyncpa [#allocation7], 0
    // Predicated region
    $region2: #{tpu_custom_call.1} parent=1 // pred_check
      _
    $region3: #{tpu_custom_call.1} parent=1 // pred_check_branch
      %17 = sbr.rel (0) target = $region5
    $region4: #{tpu_custom_call.1} parent=1 // pred_region
      _
    $region5: #{tpu_custom_call.1} parent=1 // pred_fallthru
      _
    // Predicated region
    $region6: #{tpu_custom_call.1} parent=1 // pred_check
      _
    $region7: #{tpu_custom_call.1} parent=1 // pred_check_branch
      %19 = sbr.rel (0) target = $region9
    $region8: #{tpu_custom_call.1} parent=1 // pred_region
      _
    $region9: #{tpu_custom_call.1} parent=1 // pred_fallthru
      _
    // Predicated region
    $region10: #{tpu_custom_call.1} parent=1 // pred_check
      _
    $region11: #{tpu_custom_call.1} parent=1 // pred_check_branch
      %21 = sbr.rel (0) target = $region13
    $region12: #{tpu_custom_call.1} parent=1 // pred_region
      _
    $region13: #{tpu_custom_call.1} parent=1 // pred_fallthru
      _
    // Predicated region
    $region14: #{tpu_custom_call.1} parent=1 // pred_check
      _
    $region15: #{tpu_custom_call.1} parent=1 // pred_check_branch
      %23 = sbr.rel (0) target = $region17
    $region16: #{tpu_custom_call.1} parent=1 // pred_region
      _
    $region17: #{tpu_custom_call.1} parent=1 // pred_fallthru
      _
    // Predicated region
    $region18: #{tpu_custom_call.1} parent=1 // pred_check
      _
    $region19: #{tpu_custom_call.1} parent=1 // pred_check_branch
      %25 = sbr.rel (0) target = $region21
    $region20: #{tpu_custom_call.1} parent=1 // pred_region
      _
    $region21: #{tpu_custom_call.1} parent=1 // pred_fallthru
      _
    // Predicated region
    $region22: #{tpu_custom_call.1} parent=1 // pred_check
      _
    $region23: #{tpu_custom_call.1} parent=1 // pred_check_branch
      %27 = sbr.rel (0) target = $region25
    $region24: #{tpu_custom_call.1} parent=1 // pred_region
      _
    $region25: #{tpu_custom_call.1} parent=1 // pred_fallthru
      _
    // Predicated region
    $region26: #{tpu_custom_call.1} parent=1 // pred_check
      _
    $region27: #{tpu_custom_call.1} parent=1 // pred_check_branch
      %29 = sbr.rel (0) target = $region29
    $region28: #{tpu_custom_call.1} parent=1 // pred_region
      _
    $region29: #{tpu_custom_call.1} parent=1 // pred_fallthru
      _
    // Predicated region
    $region30: #{tpu_custom_call.1} parent=1 // pred_check
      _
    $region31: #{tpu_custom_call.1} parent=1 // pred_check_branch
      %31 = sbr.rel (0) target = $region33
    $region32: #{tpu_custom_call.1} parent=1 // pred_region
      _
    $region33: #{tpu_custom_call.1} parent=1 // pred_fallthru
      _
    // Predicated region
    $region34: #{tpu_custom_call.1} parent=1 // pred_check
      _
    $region35: #{tpu_custom_call.1} parent=1 // pred_check_branch
      %33 = sbr.rel (0) target = $region37
    $region36: #{tpu_custom_call.1} parent=1 // pred_region
      _
    $region37: #{tpu_custom_call.1} parent=1 // pred_fallthru
      _
    // Predicated region
    $region38: #{tpu_custom_call.1} parent=1 // pred_check
      _
    $region39: #{tpu_custom_call.1} parent=1 // pred_check_branch
      %35 = sbr.rel (0) target = $region41
    $region40: #{tpu_custom_call.1} parent=1 // pred_region
      _
    $region41: #{tpu_custom_call.1} parent=1 // pred_fallthru
      _
    %p37 = scmp.eq.s32.totalorder 0, 0
    // Predicated region
    $region42: #{tpu_custom_call.1} parent=1 // pred_check
      %p38 = pneg %p37
    $region43: #{tpu_custom_call.1} parent=1 // pred_check_branch
      %40 = sbr.rel (%p38) target = $region45
    $region44: #{tpu_custom_call.1} parent=1 // pred_region
      %v41 = vld [vmem:[%s0] sm:$0xff]
      %v42 = vpack.c.bf16 %v41, %v41
      %v43 = vld [vmem:[%s3] sm:$0xf]
      %v44 = vld [vmem:[%s3 + $0x4] sm:$0xf]
      %v45 = vld [vmem:[%s3 + $0x8] sm:$0xf]
      %v46 = vld [vmem:[%s3 + $0xc] sm:$0xf]
      %v47 = vld [vmem:[%s4] sm:$0x1]
      %v49 = vlaneseq
      %v50 = vshrl.u32 %v49, 7
      %v51 = vsub.s32 0, %v50
      %v52 = vrot.slane %v47, %v51
      %v58 = vunpack.c.l.b16 %v43
      %v59 = vunpack.c.l.b16 %v44
      %v60 = vunpack.c.l.b16 %v45
      %v61 = vunpack.c.l.b16 %v46
      %v62 = vpack.c.b16 %v59, %v58
      %v63 = vpack.c.b16 %v61, %v60
      %vm66 = vcmask 261120
      %v68 = vsel %vm66, %v42, 0
      %70 = vmatprep.subr.bf16.mxu0 0
      %71 = vmatpush1.bf16.msra.mxu0 0
      %72 = vmatprep.subr.bf16.mxu0 0
      %73 = vmatpush1.bf16.msra.mxu0 0
      %74 = vmatprep.subr.bf16.mxu0 0
      %75 = vmatpush1.bf16.msra.mxu0 0
      %76 = vmatprep.subr.bf16.mxu0 0
      %77 = vmatpush1.bf16.msra.mxu0 0
      %78 = vmatprep.subr.bf16.mxu0 0
      %79 = vmatpush1.bf16.msra.mxu0 0
      %80 = vmatprep.subr.bf16.mxu0 0
      %81 = vmatpush1.bf16.msra.mxu0 0
      %82 = vmatprep.subr.bf16.mxu0 0
      %83 = vmatpush1.bf16.msra.mxu0 %v63
      %84 = vmatprep.subr.bf16.mxu0 0
      %85 = vmatpush1.bf16.msra.mxu0 %v62
      %86 = vmatprep.subr.bf16.mxu0 0
      %87 = vmatpush2.bf16.msra.mxu0 0
      %88 = vmatprep.subr.bf16.mxu0 0
      %89 = vmatpush2.bf16.msra.mxu0 0
      %90 = vmatprep.subr.bf16.mxu0 0
      %91 = vmatpush2.bf16.msra.mxu0 0
      %92 = vmatprep.subr.bf16.mxu0 0
      %93 = vmatpush2.bf16.msra.mxu0 0
      %94 = vmatprep.subr.bf16.mxu0 0
      %95 = vmatpush2.bf16.msra.mxu0 0
      %96 = vmatprep.subr.bf16.mxu0 0
      %97 = vmatpush2.bf16.msra.mxu0 0
      %98 = vmatprep.subr.bf16.mxu0 0
      %99 = vmatpush2.bf16.msra.mxu0 0
      %100 = vmatprep.subr.bf16.mxu0 0
      %101 = vmatpush2.bf16.msra.mxu0 0
      %102 = vmatprep.mubr.bf16.mxu0 0
      %103 = vmatmul.mubr.bf16.gmra.mxu0 %v68
      %v104 = vpop.f32.mrf.mxu0
      %v105 = vadd.f32 %v52, %v104
      %v106 = vpop.f32.mrf.mxu0
      %v107 = vpop.f32.mrf.mxu0
      %v108 = vpop.f32.mrf.mxu0
      %109 = vdwg.mxu0
      %s110 = scalar_lea.vmem %s3, 16
      %v111 = vld [vmem:[%s110] sm:$0xf]
      %v112 = vld [vmem:[%s110 + $0x4] sm:$0xf]
      %v113 = vld [vmem:[%s110 + $0x8] sm:$0xf]
      %v114 = vld [vmem:[%s110 + $0xc] sm:$0xf]
      %s115 = scalar_lea.vmem %s4, 1
      %v116 = vld [vmem:[%s115] sm:$0x1]
      %v118 = vlaneseq
      %v119 = vshrl.u32 %v118, 7
      %v120 = vsub.s32 0, %v119
      %v121 = vrot.slane %v116, %v120
      %v127 = vunpack.c.l.b16 %v111
      %v128 = vunpack.c.l.b16 %v112
      %v129 = vunpack.c.l.b16 %v113
      %v130 = vunpack.c.l.b16 %v114
      %v131 = vpack.c.b16 %v128, %v127
      %v132 = vpack.c.b16 %v130, %v129
      %135 = vmatprep.subr.bf16.mxu0 0
      %136 = vmatpush1.bf16.msra.mxu0 0
      %137 = vmatprep.subr.bf16.mxu0 0
      %138 = vmatpush1.bf16.msra.mxu0 0
      %139 = vmatprep.subr.bf16.mxu0 0
      %140 = vmatpush1.bf16.msra.mxu0 0
      %141 = vmatprep.subr.bf16.mxu0 0
      %142 = vmatpush1.bf16.msra.mxu0 0
      %143 = vmatprep.subr.bf16.mxu0 0
      %144 = vmatpush1.bf16.msra.mxu0 0
      %145 = vmatprep.subr.bf16.mxu0 0
      %146 = vmatpush1.bf16.msra.mxu0 0
      %147 = vmatprep.subr.bf16.mxu0 0
      %148 = vmatpush1.bf16.msra.mxu0 %v132
      %149 = vmatprep.subr.bf16.mxu0 0
      %150 = vmatpush1.bf16.msra.mxu0 %v131
      %151 = vmatprep.subr.bf16.mxu0 0
      %152 = vmatpush2.bf16.msra.mxu0 0
      %153 = vmatprep.subr.bf16.mxu0 0
      %154 = vmatpush2.bf16.msra.mxu0 0
      %155 = vmatprep.subr.bf16.mxu0 0
      %156 = vmatpush2.bf16.msra.mxu0 0
      %157 = vmatprep.subr.bf16.mxu0 0
      %158 = vmatpush2.bf16.msra.mxu0 0
      %159 = vmatprep.subr.bf16.mxu0 0
      %160 = vmatpush2.bf16.msra.mxu0 0
      %161 = vmatprep.subr.bf16.mxu0 0
      %162 = vmatpush2.bf16.msra.mxu0 0
      %163 = vmatprep.subr.bf16.mxu0 0
      %164 = vmatpush2.bf16.msra.mxu0 0
      %165 = vmatprep.subr.bf16.mxu0 0
      %166 = vmatpush2.bf16.msra.mxu0 0
      %167 = vmatprep.mubr.bf16.mxu0 0
      %168 = vmatmul.mubr.bf16.gmra.mxu0 %v68
      %v169 = vpop.f32.mrf.mxu0
      %v170 = vadd.f32 %v121, %v169
      %v171 = vpop.f32.mrf.mxu0
      %v172 = vpop.f32.mrf.mxu0
      %v173 = vpop.f32.mrf.mxu0
      %174 = vdwg.mxu0
      %s175 = scalar_lea.vmem %s3, 32
      %v176 = vld [vmem:[%s175] sm:$0xf]
      %v177 = vld [vmem:[%s175 + $0x4] sm:$0xf]
      %v178 = vld [vmem:[%s175 + $0x8] sm:$0xf]
      %v179 = vld [vmem:[%s175 + $0xc] sm:$0xf]
      %s180 = scalar_lea.vmem %s4, 2
      %v181 = vld [vmem:[%s180] sm:$0x1]
      %v183 = vlaneseq
      %v184 = vshrl.u32 %v183, 7
      %v185 = vsub.s32 0, %v184
      %v186 = vrot.slane %v181, %v185
      %v192 = vunpack.c.l.b16 %v176
      %v193 = vunpack.c.l.b16 %v177
      %v194 = vunpack.c.l.b16 %v178
      %v195 = vunpack.c.l.b16 %v179
      %v196 = vpack.c.b16 %v193, %v192
      %v197 = vpack.c.b16 %v195, %v194
      %200 = vmatprep.subr.bf16.mxu0 0
      %201 = vmatpush1.bf16.msra.mxu0 0
      %202 = vmatprep.subr.bf16.mxu0 0
      %203 = vmatpush1.bf16.msra.mxu0 0
      %204 = vmatprep.subr.bf16.mxu0 0
      %205 = vmatpush1.bf16.msra.mxu0 0
      %206 = vmatprep.subr.bf16.mxu0 0
      %207 = vmatpush1.bf16.msra.mxu0 0
      %208 = vmatprep.subr.bf16.mxu0 0
      %209 = vmatpush1.bf16.msra.mxu0 0
      %210 = vmatprep.subr.bf16.mxu0 0
      %211 = vmatpush1.bf16.msra.mxu0 0
      %212 = vmatprep.subr.bf16.mxu0 0
      %213 = vmatpush1.bf16.msra.mxu0 %v197
      %214 = vmatprep.subr.bf16.mxu0 0
      %215 = vmatpush1.bf16.msra.mxu0 %v196
      %216 = vmatprep.subr.bf16.mxu0 0
      %217 = vmatpush2.bf16.msra.mxu0 0
      %218 = vmatprep.subr.bf16.mxu0 0
      %219 = vmatpush2.bf16.msra.mxu0 0
      %220 = vmatprep.subr.bf16.mxu0 0
      %221 = vmatpush2.bf16.msra.mxu0 0
      %222 = vmatprep.subr.bf16.mxu0 0
      %223 = vmatpush2.bf16.msra.mxu0 0
      %224 = vmatprep.subr.bf16.mxu0 0
      %225 = vmatpush2.bf16.msra.mxu0 0
      %226 = vmatprep.subr.bf16.mxu0 0
      %227 = vmatpush2.bf16.msra.mxu0 0
      %228 = vmatprep.subr.bf16.mxu0 0
      %229 = vmatpush2.bf16.msra.mxu0 0
      %230 = vmatprep.subr.bf16.mxu0 0
      %231 = vmatpush2.bf16.msra.mxu0 0
      %232 = vmatprep.mubr.bf16.mxu0 0
      %233 = vmatmul.mubr.bf16.gmra.mxu0 %v68
      %v234 = vpop.f32.mrf.mxu0
      %v235 = vadd.f32 %v186, %v234
      %v236 = vpop.f32.mrf.mxu0
      %v237 = vpop.f32.mrf.mxu0
      %v238 = vpop.f32.mrf.mxu0
      %239 = vdwg.mxu0
      %s240 = scalar_lea.vmem %s3, 48
      %v241 = vld [vmem:[%s240] sm:$0xf]
      %v242 = vld [vmem:[%s240 + $0x4] sm:$0xf]
      %v243 = vld [vmem:[%s240 + $0x8] sm:$0xf]
      %v244 = vld [vmem:[%s240 + $0xc] sm:$0xf]
      %s245 = scalar_lea.vmem %s4, 3
      %v246 = vld [vmem:[%s245] sm:$0x1]
      %v248 = vlaneseq
      %v249 = vshrl.u32 %v248, 7
      %v250 = vsub.s32 0, %v249
      %v251 = vrot.slane %v246, %v250
      %v257 = vunpack.c.l.b16 %v241
      %v258 = vunpack.c.l.b16 %v242
      %v259 = vunpack.c.l.b16 %v243
      %v260 = vunpack.c.l.b16 %v244
      %v261 = vpack.c.b16 %v258, %v257
      %v262 = vpack.c.b16 %v260, %v259
      %265 = vmatprep.subr.bf16.mxu0 0
      %266 = vmatpush1.bf16.msra.mxu0 0
      %267 = vmatprep.subr.bf16.mxu0 0
      %268 = vmatpush1.bf16.msra.mxu0 0
      %269 = vmatprep.subr.bf16.mxu0 0
      %270 = vmatpush1.bf16.msra.mxu0 0
      %271 = vmatprep.subr.bf16.mxu0 0
      %272 = vmatpush1.bf16.msra.mxu0 0
      %273 = vmatprep.subr.bf16.mxu0 0
      %274 = vmatpush1.bf16.msra.mxu0 0
      %275 = vmatprep.subr.bf16.mxu0 0
      %276 = vmatpush1.bf16.msra.mxu0 0
      %277 = vmatprep.subr.bf16.mxu0 0
      %278 = vmatpush1.bf16.msra.mxu0 %v262
      %279 = vmatprep.subr.bf16.mxu0 0
      %280 = vmatpush1.bf16.msra.mxu0 %v261
      %281 = vmatprep.subr.bf16.mxu0 0
      %282 = vmatpush2.bf16.msra.mxu0 0
      %283 = vmatprep.subr.bf16.mxu0 0
      %284 = vmatpush2.bf16.msra.mxu0 0
      %285 = vmatprep.subr.bf16.mxu0 0
      %286 = vmatpush2.bf16.msra.mxu0 0
      %287 = vmatprep.subr.bf16.mxu0 0
      %288 = vmatpush2.bf16.msra.mxu0 0
      %289 = vmatprep.subr.bf16.mxu0 0
      %290 = vmatpush2.bf16.msra.mxu0 0
      %291 = vmatprep.subr.bf16.mxu0 0
      %292 = vmatpush2.bf16.msra.mxu0 0
      %293 = vmatprep.subr.bf16.mxu0 0
      %294 = vmatpush2.bf16.msra.mxu0 0
      %295 = vmatprep.subr.bf16.mxu0 0
      %296 = vmatpush2.bf16.msra.mxu0 0
      %297 = vmatprep.mubr.bf16.mxu0 0
      %298 = vmatmul.mubr.bf16.gmra.mxu0 %v68
      %v299 = vpop.f32.mrf.mxu0
      %v300 = vadd.f32 %v251, %v299
      %v301 = vpop.f32.mrf.mxu0
      %v302 = vpop.f32.mrf.mxu0
      %v303 = vpop.f32.mrf.mxu0
      %304 = vdwg.mxu0
      %v305 = vpack.c.bf16 %v105, %v105
      %v306 = vpack.c.bf16 %v170, %v170
      %v307 = vpack.c.bf16 %v235, %v235
      %v308 = vpack.c.bf16 %v300, %v300
      %vm309 = vcmask 60416
      %310 = vst.msk [vmem:[#allocation2] sm:$0xf] %vm309, %v305
      %311 = vst.msk [vmem:[#allocation2 + $0x4] sm:$0xf] %vm309, %v306
      %312 = vst.msk [vmem:[#allocation2 + $0x8] sm:$0xf] %vm309, %v307
      %313 = vst.msk [vmem:[#allocation2 + $0xc] sm:$0xf] %vm309, %v308
      %vm314 = vcmask 7168
      %315 = vst.msk [vmem:[#allocation3] sm:$0xff] %vm314, -inf
      %316 = vst.msk [vmem:[#allocation3 + $0x8] sm:$0xff] %vm314, -inf
      %317 = vst.msk [vmem:[#allocation3 + $0x10] sm:$0xff] %vm314, -inf
      %318 = vst.msk [vmem:[#allocation3 + $0x18] sm:$0xff] %vm314, -inf
      %319 = vst.msk [vmem:[#allocation4] sm:$0xff] %vm314, 0.0
      %320 = vst.msk [vmem:[#allocation4 + $0x8] sm:$0xff] %vm314, 0.0
      %321 = vst.msk [vmem:[#allocation4 + $0x10] sm:$0xff] %vm314, 0.0
      %322 = vst.msk [vmem:[#allocation4 + $0x18] sm:$0xff] %vm314, 0.0
      %vm323 = vcmask 64512
      %324 = vst.msk [vmem:[#allocation5] sm:$0xff] %vm323, 0.0
      %325 = vst.msk [vmem:[#allocation5 + $0x8] sm:$0xff] %vm323, 0.0
      %326 = vst.msk [vmem:[#allocation5 + $0x10] sm:$0xff] %vm323, 0.0
      %327 = vst.msk [vmem:[#allocation5 + $0x18] sm:$0xff] %vm323, 0.0
    $region45: #{tpu_custom_call.1} parent=1 // pred_fallthru
      _
    %v328 = vld [vmem:[#allocation2] sm:$0xf]
    %v329 = vld [vmem:[#allocation2 + $0x4] sm:$0xf]
    %v330 = vld [vmem:[#allocation2 + $0x8] sm:$0xf]
    %v331 = vld [vmem:[#allocation2 + $0xc] sm:$0xf]
    %v332 = vld [vmem:[%s1] sm:$0xf]
    %v333 = vld [vmem:[%s1 + $0x4] sm:$0xf]
    %v334 = vld [vmem:[%s1 + $0x8] sm:$0xf]
    %v335 = vld [vmem:[%s1 + $0xc] sm:$0xf]
    %v336 = vld [vmem:[%s9] sm:$0x1]
    %v338 = vlaneseq
    %v339 = vshrl.u32 %v338, 7
    %v340 = vsub.s32 0, %v339
    %v341 = vrot.slane %v336, %v340
    %vm343 = vcmask 64512
    %v345 = vsel %vm343, %v328, 0
    %v348 = vsel %vm343, %v332, 0
    %350 = vmatprep.subr.bf16.mxu0 0
    %351 = vmatpush1.bf16.xpose.msra.mxu0 0
    %352 = vmatprep.subr.bf16.mxu0 0
    %353 = vmatpush1.bf16.xpose.msra.mxu0 0
    %354 = vmatprep.subr.bf16.mxu0 0
    %355 = vmatpush1.bf16.xpose.msra.mxu0 0
    %356 = vmatprep.subr.bf16.mxu0 0
    %357 = vmatpush1.bf16.xpose.msra.mxu0 0
    %358 = vmatprep.subr.bf16.mxu0 0
    %359 = vmatpush1.bf16.xpose.msra.mxu0 0
    %360 = vmatprep.subr.bf16.mxu0 0
    %361 = vmatpush1.bf16.xpose.msra.mxu0 0
    %362 = vmatprep.subr.bf16.mxu0 0
    %363 = vmatpush1.bf16.xpose.msra.mxu0 0
    %364 = vmatprep.subr.bf16.mxu0 0
    %365 = vmatpush1.bf16.xpose.msra.mxu0 %v348
    %366 = vmatprep.subr.bf16.mxu0 0
    %367 = vmatpush2.bf16.xpose.msra.mxu0 0
    %368 = vmatprep.subr.bf16.mxu0 0
    %369 = vmatpush2.bf16.xpose.msra.mxu0 0
    %370 = vmatprep.subr.bf16.mxu0 0
    %371 = vmatpush2.bf16.xpose.msra.mxu0 0
    %372 = vmatprep.subr.bf16.mxu0 0
    %373 = vmatpush2.bf16.xpose.msra.mxu0 0
    %374 = vmatprep.subr.bf16.mxu0 0
    %375 = vmatpush2.bf16.xpose.msra.mxu0 0
    %376 = vmatprep.subr.bf16.mxu0 0
    %377 = vmatpush2.bf16.xpose.msra.mxu0 0
    %378 = vmatprep.subr.bf16.mxu0 0
    %379 = vmatpush2.bf16.xpose.msra.mxu0 0
    %380 = vmatprep.subr.bf16.mxu0 0
    %381 = vmatpush2.bf16.xpose.msra.mxu0 0
    %382 = vmatprep.mubr.bf16.mxu0 0
    %383 = vmatmul.mubr.bf16.gmra.mxu0 %v345
    %v384 = vpop.f32.mrf.mxu0
    %v385 = vadd.f32 %v341, %v384
    %v386 = vpop.f32.mrf.mxu0
    %v387 = vpop.f32.mrf.mxu0
    %v388 = vpop.f32.mrf.mxu0
    %389 = vdwg.mxu0
    %v391 = vsel %vm343, %v329, 0
    %v394 = vsel %vm343, %v333, 0
    %396 = vmatprep.subr.bf16.mxu0 0
    %397 = vmatpush1.bf16.xpose.msra.mxu0 0
    %398 = vmatprep.subr.bf16.mxu0 0
    %399 = vmatpush1.bf16.xpose.msra.mxu0 0
    %400 = vmatprep.subr.bf16.mxu0 0
    %401 = vmatpush1.bf16.xpose.msra.mxu0 0
    %402 = vmatprep.subr.bf16.mxu0 0
    %403 = vmatpush1.bf16.xpose.msra.mxu0 0
    %404 = vmatprep.subr.bf16.mxu0 0
    %405 = vmatpush1.bf16.xpose.msra.mxu0 0
    %406 = vmatprep.subr.bf16.mxu0 0
    %407 = vmatpush1.bf16.xpose.msra.mxu0 0
    %408 = vmatprep.subr.bf16.mxu0 0
    %409 = vmatpush1.bf16.xpose.msra.mxu0 0
    %410 = vmatprep.subr.bf16.mxu0 0
    %411 = vmatpush1.bf16.xpose.msra.mxu0 %v394
    %412 = vmatprep.subr.bf16.mxu0 0
    %413 = vmatpush2.bf16.xpose.msra.mxu0 0
    %414 = vmatprep.subr.bf16.mxu0 0
    %415 = vmatpush2.bf16.xpose.msra.mxu0 0
    %416 = vmatprep.subr.bf16.mxu0 0
    %417 = vmatpush2.bf16.xpose.msra.mxu0 0
    %418 = vmatprep.subr.bf16.mxu0 0
    %419 = vmatpush2.bf16.xpose.msra.mxu0 0
    %420 = vmatprep.subr.bf16.mxu0 0
    %421 = vmatpush2.bf16.xpose.msra.mxu0 0
    %422 = vmatprep.subr.bf16.mxu0 0
    %423 = vmatpush2.bf16.xpose.msra.mxu0 0
    %424 = vmatprep.subr.bf16.mxu0 0
    %425 = vmatpush2.bf16.xpose.msra.mxu0 0
    %426 = vmatprep.subr.bf16.mxu0 0
    %427 = vmatpush2.bf16.xpose.msra.mxu0 0
    %428 = vmatprep.mubr.bf16.mxu0 0
    %429 = vmatmul.mubr.bf16.gmra.mxu0 %v391
    %v430 = vpop.f32.mrf.mxu0
    %v431 = vadd.f32 %v341, %v430
    %v432 = vpop.f32.mrf.mxu0
    %v433 = vpop.f32.mrf.mxu0
    %v434 = vpop.f32.mrf.mxu0
    %435 = vdwg.mxu0
    %v437 = vsel %vm343, %v330, 0
    %v440 = vsel %vm343, %v334, 0
    %442 = vmatprep.subr.bf16.mxu0 0
    %443 = vmatpush1.bf16.xpose.msra.mxu0 0
    %444 = vmatprep.subr.bf16.mxu0 0
    %445 = vmatpush1.bf16.xpose.msra.mxu0 0
    %446 = vmatprep.subr.bf16.mxu0 0
    %447 = vmatpush1.bf16.xpose.msra.mxu0 0
    %448 = vmatprep.subr.bf16.mxu0 0
    %449 = vmatpush1.bf16.xpose.msra.mxu0 0
    %450 = vmatprep.subr.bf16.mxu0 0
    %451 = vmatpush1.bf16.xpose.msra.mxu0 0
    %452 = vmatprep.subr.bf16.mxu0 0
    %453 = vmatpush1.bf16.xpose.msra.mxu0 0
    %454 = vmatprep.subr.bf16.mxu0 0
    %455 = vmatpush1.bf16.xpose.msra.mxu0 0
    %456 = vmatprep.subr.bf16.mxu0 0
    %457 = vmatpush1.bf16.xpose.msra.mxu0 %v440
    %458 = vmatprep.subr.bf16.mxu0 0
    %459 = vmatpush2.bf16.xpose.msra.mxu0 0
    %460 = vmatprep.subr.bf16.mxu0 0
    %461 = vmatpush2.bf16.xpose.msra.mxu0 0
    %462 = vmatprep.subr.bf16.mxu0 0
    %463 = vmatpush2.bf16.xpose.msra.mxu0 0
    %464 = vmatprep.subr.bf16.mxu0 0
    %465 = vmatpush2.bf16.xpose.msra.mxu0 0
    %466 = vmatprep.subr.bf16.mxu0 0
    %467 = vmatpush2.bf16.xpose.msra.mxu0 0
    %468 = vmatprep.subr.bf16.mxu0 0
    %469 = vmatpush2.bf16.xpose.msra.mxu0 0
    %470 = vmatprep.subr.bf16.mxu0 0
    %471 = vmatpush2.bf16.xpose.msra.mxu0 0
    %472 = vmatprep.subr.bf16.mxu0 0
    %473 = vmatpush2.bf16.xpose.msra.mxu0 0
    %474 = vmatprep.mubr.bf16.mxu0 0
    %475 = vmatmul.mubr.bf16.gmra.mxu0 %v437
    %v476 = vpop.f32.mrf.mxu0
    %v477 = vadd.f32 %v341, %v476
    %v478 = vpop.f32.mrf.mxu0
    %v479 = vpop.f32.mrf.mxu0
    %v480 = vpop.f32.mrf.mxu0
    %481 = vdwg.mxu0
    %v483 = vsel %vm343, %v331, 0
    %v486 = vsel %vm343, %v335, 0
    %488 = vmatprep.subr.bf16.mxu0 0
    %489 = vmatpush1.bf16.xpose.msra.mxu0 0
    %490 = vmatprep.subr.bf16.mxu0 0
    %491 = vmatpush1.bf16.xpose.msra.mxu0 0
    %492 = vmatprep.subr.bf16.mxu0 0
    %493 = vmatpush1.bf16.xpose.msra.mxu0 0
    %494 = vmatprep.subr.bf16.mxu0 0
    %495 = vmatpush1.bf16.xpose.msra.mxu0 0
    %496 = vmatprep.subr.bf16.mxu0 0
    %497 = vmatpush1.bf16.xpose.msra.mxu0 0
    %498 = vmatprep.subr.bf16.mxu0 0
    %499 = vmatpush1.bf16.xpose.msra.mxu0 0
    %500 = vmatprep.subr.bf16.mxu0 0
    %501 = vmatpush1.bf16.xpose.msra.mxu0 0
    %502 = vmatprep.subr.bf16.mxu0 0
    %503 = vmatpush1.bf16.xpose.msra.mxu0 %v486
    %504 = vmatprep.subr.bf16.mxu0 0
    %505 = vmatpush2.bf16.xpose.msra.mxu0 0
    %506 = vmatprep.subr.bf16.mxu0 0
    %507 = vmatpush2.bf16.xpose.msra.mxu0 0
    %508 = vmatprep.subr.bf16.mxu0 0
    %509 = vmatpush2.bf16.xpose.msra.mxu0 0
    %510 = vmatprep.subr.bf16.mxu0 0
    %511 = vmatpush2.bf16.xpose.msra.mxu0 0
    %512 = vmatprep.subr.bf16.mxu0 0
    %513 = vmatpush2.bf16.xpose.msra.mxu0 0
    %514 = vmatprep.subr.bf16.mxu0 0
    %515 = vmatpush2.bf16.xpose.msra.mxu0 0
    %516 = vmatprep.subr.bf16.mxu0 0
    %517 = vmatpush2.bf16.xpose.msra.mxu0 0
    %518 = vmatprep.subr.bf16.mxu0 0
    %519 = vmatpush2.bf16.xpose.msra.mxu0 0
    %520 = vmatprep.mubr.bf16.mxu0 0
    %521 = vmatmul.mubr.bf16.gmra.mxu0 %v483
    %v522 = vpop.f32.mrf.mxu0
    %v523 = vadd.f32 %v341, %v522
    %v524 = vpop.f32.mrf.mxu0
    %v525 = vpop.f32.mrf.mxu0
    %v526 = vpop.f32.mrf.mxu0
    %527 = vdwg.mxu0
    %v528 = vld [vmem:[#allocation3] sm:$0xff]
    %v529 = vld [vmem:[#allocation3 + $0x8] sm:$0xff]
    %v530 = vld [vmem:[#allocation3 + $0x10] sm:$0xff]
    %v531 = vld [vmem:[#allocation3 + $0x18] sm:$0xff]
    %v532 = vsel %vm343, %v385, -inf
    %533 = vmax.xlane.f32.xlu0 %v532
    %v534 = vpop.xlane.xlu0 %533
    %v535 = vsel %vm343, %v431, -inf
    %536 = vmax.xlane.f32.xlu0 %v535
    %v537 = vpop.xlane.xlu0 %536
    %v538 = vsel %vm343, %v477, -inf
    %539 = vmax.xlane.f32.xlu0 %v538
    %v540 = vpop.xlane.xlu0 %539
    %v541 = vsel %vm343, %v523, -inf
    %542 = vmax.xlane.f32.xlu0 %v541
    %v543 = vpop.xlane.xlu0 %542
    %v544 = vmax.f32 %v528, %v534
    %v545 = vmax.f32 %v529, %v537
    %v546 = vmax.f32 %v530, %v540
    %v547 = vmax.f32 %v531, %v543
    %v548 = vsub.f32 %v528, %v544
    %v549 = vsub.f32 %v529, %v545
    %v550 = vsub.f32 %v530, %v546
    %v551 = vsub.f32 %v531, %v547
    %v552 = vmul.f32 %v548, 1.442695
    %v553 = vpow.pop %v552
    %v554 = vmul.f32 %v549, 1.442695
    %v555 = vpow.pop %v554
    %v556 = vmul.f32 %v550, 1.442695
    %v557 = vpow.pop %v556
    %v558 = vmul.f32 %v551, 1.442695
    %v559 = vpow.pop %v558
    %561 = vset.pattern.permute.xlu0 0
    %562 = vperm.xlu0 %561, %v544
    %v563 = vpop.permute.xlu0 %562
    %566 = vset.pattern.permute.xlu0 0
    %567 = vperm.xlu0 %566, %v545
    %v568 = vpop.permute.xlu0 %567
    %571 = vset.pattern.permute.xlu0 0
    %572 = vperm.xlu0 %571, %v546
    %v573 = vpop.permute.xlu0 %572
    %576 = vset.pattern.permute.xlu0 0
    %577 = vperm.xlu0 %576, %v547
    %v578 = vpop.permute.xlu0 %577
    %v580 = vsub.f32 %v385, %v563
    %v581 = vsub.f32 %v431, %v568
    %v582 = vsub.f32 %v477, %v573
    %v583 = vsub.f32 %v523, %v578
    %v584 = vmul.f32 %v580, 1.442695
    %v585 = vpow.pop %v584
    %v586 = vmul.f32 %v581, 1.442695
    %v587 = vpow.pop %v586
    %v588 = vmul.f32 %v582, 1.442695
    %v589 = vpow.pop %v588
    %v590 = vmul.f32 %v583, 1.442695
    %v591 = vpow.pop %v590
    %v592 = vld [vmem:[#allocation4] sm:$0xff]
    %v593 = vld [vmem:[#allocation4 + $0x8] sm:$0xff]
    %v594 = vld [vmem:[#allocation4 + $0x10] sm:$0xff]
    %v595 = vld [vmem:[#allocation4 + $0x18] sm:$0xff]
    %v596 = vmul.f32 %v553, %v592
    %v597 = vmul.f32 %v555, %v593
    %v598 = vmul.f32 %v557, %v594
    %v599 = vmul.f32 %v559, %v595
    %v600 = vsel %vm343, %v585, 0.0
    %601 = vadd.xlane.f32.xlu0 %v600
    %v602 = vpop.xlane.xlu0 %601
    %v603 = vsel %vm343, %v587, 0.0
    %604 = vadd.xlane.f32.xlu0 %v603
    %v605 = vpop.xlane.xlu0 %604
    %v606 = vsel %vm343, %v589, 0.0
    %607 = vadd.xlane.f32.xlu0 %v606
    %v608 = vpop.xlane.xlu0 %607
    %v609 = vsel %vm343, %v591, 0.0
    %610 = vadd.xlane.f32.xlu0 %v609
    %v611 = vpop.xlane.xlu0 %610
    %v612 = vadd.f32 %v596, %v602
    %v613 = vadd.f32 %v597, %v605
    %v614 = vadd.f32 %v598, %v608
    %v615 = vadd.f32 %v599, %v611
    %vm616 = vcmask 7168
    %617 = vst.msk [vmem:[#allocation4] sm:$0xff] %vm616, %v612
    %618 = vst.msk [vmem:[#allocation4 + $0x8] sm:$0xff] %vm616, %v613
    %619 = vst.msk [vmem:[#allocation4 + $0x10] sm:$0xff] %vm616, %v614
    %620 = vst.msk [vmem:[#allocation4 + $0x18] sm:$0xff] %vm616, %v615
    %v621 = vld [vmem:[#allocation5] sm:$0xff]
    %v622 = vld [vmem:[#allocation5 + $0x8] sm:$0xff]
    %v623 = vld [vmem:[#allocation5 + $0x10] sm:$0xff]
    %v624 = vld [vmem:[#allocation5 + $0x18] sm:$0xff]
    %626 = vset.pattern.permute.xlu0 0
    %627 = vperm.xlu0 %626, %v553
    %v628 = vpop.permute.xlu0 %627
    %631 = vset.pattern.permute.xlu0 0
    %632 = vperm.xlu0 %631, %v555
    %v633 = vpop.permute.xlu0 %632
    %636 = vset.pattern.permute.xlu0 0
    %637 = vperm.xlu0 %636, %v557
    %v638 = vpop.permute.xlu0 %637
    %641 = vset.pattern.permute.xlu0 0
    %642 = vperm.xlu0 %641, %v559
    %v643 = vpop.permute.xlu0 %642
    %v645 = vmul.f32 %v628, %v621
    %v646 = vmul.f32 %v633, %v622
    %v647 = vmul.f32 %v638, %v623
    %v648 = vmul.f32 %v643, %v624
    %v649 = vpack.c.bf16 %v585, %v585
    %v650 = vpack.c.bf16 %v587, %v587
    %v651 = vpack.c.bf16 %v589, %v589
    %v652 = vpack.c.bf16 %v591, %v591
    %v653 = vld [vmem:[%s2] sm:$0xf]
    %v654 = vld [vmem:[%s2 + $0x4] sm:$0xf]
    %v655 = vld [vmem:[%s2 + $0x8] sm:$0xf]
    %v656 = vld [vmem:[%s2 + $0xc] sm:$0xf]
    %v658 = vsel %vm343, %v649, 0
    %vm660 = vcmask 1043456
    %v662 = vsel %vm660, %v653, 0
    %664 = vmatprep.subr.bf16.mxu0 0
    %665 = vmatpush1.bf16.msra.mxu0 0
    %666 = vmatprep.subr.bf16.mxu0 0
    %667 = vmatpush1.bf16.msra.mxu0 0
    %668 = vmatprep.subr.bf16.mxu0 0
    %669 = vmatpush1.bf16.msra.mxu0 0
    %670 = vmatprep.subr.bf16.mxu0 0
    %671 = vmatpush1.bf16.msra.mxu0 0
    %672 = vmatprep.subr.bf16.mxu0 0
    %673 = vmatpush1.bf16.msra.mxu0 0
    %674 = vmatprep.subr.bf16.mxu0 0
    %675 = vmatpush1.bf16.msra.mxu0 0
    %676 = vmatprep.subr.bf16.mxu0 0
    %677 = vmatpush1.bf16.msra.mxu0 0
    %678 = vmatprep.subr.bf16.mxu0 0
    %679 = vmatpush1.bf16.msra.mxu0 %v662
    %680 = vmatprep.subr.bf16.mxu0 0
    %681 = vmatpush2.bf16.msra.mxu0 0
    %682 = vmatprep.subr.bf16.mxu0 0
    %683 = vmatpush2.bf16.msra.mxu0 0
    %684 = vmatprep.subr.bf16.mxu0 0
    %685 = vmatpush2.bf16.msra.mxu0 0
    %686 = vmatprep.subr.bf16.mxu0 0
    %687 = vmatpush2.bf16.msra.mxu0 0
    %688 = vmatprep.subr.bf16.mxu0 0
    %689 = vmatpush2.bf16.msra.mxu0 0
    %690 = vmatprep.subr.bf16.mxu0 0
    %691 = vmatpush2.bf16.msra.mxu0 0
    %692 = vmatprep.subr.bf16.mxu0 0
    %693 = vmatpush2.bf16.msra.mxu0 0
    %694 = vmatprep.subr.bf16.mxu0 0
    %695 = vmatpush2.bf16.msra.mxu0 0
    %696 = vmatprep.mubr.bf16.mxu0 0
    %697 = vmatmul.mubr.bf16.gmra.mxu0 %v658
    %v698 = vpop.f32.mrf.mxu0
    %v699 = vadd.f32 0.0, %v698
    %v700 = vpop.f32.mrf.mxu0
    %v701 = vpop.f32.mrf.mxu0
    %v702 = vpop.f32.mrf.mxu0
    %703 = vdwg.mxu0
    %v705 = vsel %vm343, %v650, 0
    %v708 = vsel %vm660, %v654, 0
    %710 = vmatprep.subr.bf16.mxu0 0
    %711 = vmatpush1.bf16.msra.mxu0 0
    %712 = vmatprep.subr.bf16.mxu0 0
    %713 = vmatpush1.bf16.msra.mxu0 0
    %714 = vmatprep.subr.bf16.mxu0 0
    %715 = vmatpush1.bf16.msra.mxu0 0
    %716 = vmatprep.subr.bf16.mxu0 0
    %717 = vmatpush1.bf16.msra.mxu0 0
    %718 = vmatprep.subr.bf16.mxu0 0
    %719 = vmatpush1.bf16.msra.mxu0 0
    %720 = vmatprep.subr.bf16.mxu0 0
    %721 = vmatpush1.bf16.msra.mxu0 0
    %722 = vmatprep.subr.bf16.mxu0 0
    %723 = vmatpush1.bf16.msra.mxu0 0
    %724 = vmatprep.subr.bf16.mxu0 0
    %725 = vmatpush1.bf16.msra.mxu0 %v708
    %726 = vmatprep.subr.bf16.mxu0 0
    %727 = vmatpush2.bf16.msra.mxu0 0
    %728 = vmatprep.subr.bf16.mxu0 0
    %729 = vmatpush2.bf16.msra.mxu0 0
    %730 = vmatprep.subr.bf16.mxu0 0
    %731 = vmatpush2.bf16.msra.mxu0 0
    %732 = vmatprep.subr.bf16.mxu0 0
    %733 = vmatpush2.bf16.msra.mxu0 0
    %734 = vmatprep.subr.bf16.mxu0 0
    %735 = vmatpush2.bf16.msra.mxu0 0
    %736 = vmatprep.subr.bf16.mxu0 0
    %737 = vmatpush2.bf16.msra.mxu0 0
    %738 = vmatprep.subr.bf16.mxu0 0
    %739 = vmatpush2.bf16.msra.mxu0 0
    %740 = vmatprep.subr.bf16.mxu0 0
    %741 = vmatpush2.bf16.msra.mxu0 0
    %742 = vmatprep.mubr.bf16.mxu0 0
    %743 = vmatmul.mubr.bf16.gmra.mxu0 %v705
    %v744 = vpop.f32.mrf.mxu0
    %v745 = vadd.f32 0.0, %v744
    %v746 = vpop.f32.mrf.mxu0
    %v747 = vpop.f32.mrf.mxu0
    %v748 = vpop.f32.mrf.mxu0
    %749 = vdwg.mxu0
    %v751 = vsel %vm343, %v651, 0
    %v754 = vsel %vm660, %v655, 0
    %756 = vmatprep.subr.bf16.mxu0 0
    %757 = vmatpush1.bf16.msra.mxu0 0
    %758 = vmatprep.subr.bf16.mxu0 0
    %759 = vmatpush1.bf16.msra.mxu0 0
    %760 = vmatprep.subr.bf16.mxu0 0
    %761 = vmatpush1.bf16.msra.mxu0 0
    %762 = vmatprep.subr.bf16.mxu0 0
    %763 = vmatpush1.bf16.msra.mxu0 0
    %764 = vmatprep.subr.bf16.mxu0 0
    %765 = vmatpush1.bf16.msra.mxu0 0
    %766 = vmatprep.subr.bf16.mxu0 0
    %767 = vmatpush1.bf16.msra.mxu0 0
    %768 = vmatprep.subr.bf16.mxu0 0
    %769 = vmatpush1.bf16.msra.mxu0 0
    %770 = vmatprep.subr.bf16.mxu0 0
    %771 = vmatpush1.bf16.msra.mxu0 %v754
    %772 = vmatprep.subr.bf16.mxu0 0
    %773 = vmatpush2.bf16.msra.mxu0 0
    %774 = vmatprep.subr.bf16.mxu0 0
    %775 = vmatpush2.bf16.msra.mxu0 0
    %776 = vmatprep.subr.bf16.mxu0 0
    %777 = vmatpush2.bf16.msra.mxu0 0
    %778 = vmatprep.subr.bf16.mxu0 0
    %779 = vmatpush2.bf16.msra.mxu0 0
    %780 = vmatprep.subr.bf16.mxu0 0
    %781 = vmatpush2.bf16.msra.mxu0 0
    %782 = vmatprep.subr.bf16.mxu0 0
    %783 = vmatpush2.bf16.msra.mxu0 0
    %784 = vmatprep.subr.bf16.mxu0 0
    %785 = vmatpush2.bf16.msra.mxu0 0
    %786 = vmatprep.subr.bf16.mxu0 0
    %787 = vmatpush2.bf16.msra.mxu0 0
    %788 = vmatprep.mubr.bf16.mxu0 0
    %789 = vmatmul.mubr.bf16.gmra.mxu0 %v751
    %v790 = vpop.f32.mrf.mxu0
    %v791 = vadd.f32 0.0, %v790
    %v792 = vpop.f32.mrf.mxu0
    %v793 = vpop.f32.mrf.mxu0
    %v794 = vpop.f32.mrf.mxu0
    %795 = vdwg.mxu0
    %v797 = vsel %vm343, %v652, 0
    %v800 = vsel %vm660, %v656, 0
    %802 = vmatprep.subr.bf16.mxu0 0
    %803 = vmatpush1.bf16.msra.mxu0 0
    %804 = vmatprep.subr.bf16.mxu0 0
    %805 = vmatpush1.bf16.msra.mxu0 0
    %806 = vmatprep.subr.bf16.mxu0 0
    %807 = vmatpush1.bf16.msra.mxu0 0
    %808 = vmatprep.subr.bf16.mxu0 0
    %809 = vmatpush1.bf16.msra.mxu0 0
    %810 = vmatprep.subr.bf16.mxu0 0
    %811 = vmatpush1.bf16.msra.mxu0 0
    %812 = vmatprep.subr.bf16.mxu0 0
    %813 = vmatpush1.bf16.msra.mxu0 0
    %814 = vmatprep.subr.bf16.mxu0 0
    %815 = vmatpush1.bf16.msra.mxu0 0
    %816 = vmatprep.subr.bf16.mxu0 0
    %817 = vmatpush1.bf16.msra.mxu0 %v800
    %818 = vmatprep.subr.bf16.mxu0 0
    %819 = vmatpush2.bf16.msra.mxu0 0
    %820 = vmatprep.subr.bf16.mxu0 0
    %821 = vmatpush2.bf16.msra.mxu0 0
    %822 = vmatprep.subr.bf16.mxu0 0
    %823 = vmatpush2.bf16.msra.mxu0 0
    %824 = vmatprep.subr.bf16.mxu0 0
    %825 = vmatpush2.bf16.msra.mxu0 0
    %826 = vmatprep.subr.bf16.mxu0 0
    %827 = vmatpush2.bf16.msra.mxu0 0
    %828 = vmatprep.subr.bf16.mxu0 0
    %829 = vmatpush2.bf16.msra.mxu0 0
    %830 = vmatprep.subr.bf16.mxu0 0
    %831 = vmatpush2.bf16.msra.mxu0 0
    %832 = vmatprep.subr.bf16.mxu0 0
    %833 = vmatpush2.bf16.msra.mxu0 0
    %834 = vmatprep.mubr.bf16.mxu0 0
    %835 = vmatmul.mubr.bf16.gmra.mxu0 %v797
    %v836 = vpop.f32.mrf.mxu0
    %v837 = vadd.f32 0.0, %v836
    %v838 = vpop.f32.mrf.mxu0
    %v839 = vpop.f32.mrf.mxu0
    %v840 = vpop.f32.mrf.mxu0
    %841 = vdwg.mxu0
    %v842 = vadd.f32 %v645, %v699
    %v843 = vadd.f32 %v646, %v745
    %v844 = vadd.f32 %v647, %v791
    %v845 = vadd.f32 %v648, %v837
    %846 = vst.msk [vmem:[#allocation5] sm:$0xff] %vm343, %v842
    %847 = vst.msk [vmem:[#allocation5 + $0x8] sm:$0xff] %vm343, %v843
    %848 = vst.msk [vmem:[#allocation5 + $0x10] sm:$0xff] %vm343, %v844
    %849 = vst.msk [vmem:[#allocation5 + $0x18] sm:$0xff] %vm343, %v845
    %850 = vst.msk [vmem:[#allocation3] sm:$0xff] %vm616, %v544
    %851 = vst.msk [vmem:[#allocation3 + $0x8] sm:$0xff] %vm616, %v545
    %852 = vst.msk [vmem:[#allocation3 + $0x10] sm:$0xff] %vm616, %v546
    %853 = vst.msk [vmem:[#allocation3 + $0x18] sm:$0xff] %vm616, %v547
    // Predicated region
    $region46: #{tpu_custom_call.1} parent=1 // pred_check
      %p854 = pneg %p37
    $region47: #{tpu_custom_call.1} parent=1 // pred_check_branch
      %856 = sbr.rel (%p854) target = $region49
    $region48: #{tpu_custom_call.1} parent=1 // pred_region
      %v857 = vld [vmem:[#allocation5] sm:$0xff]
      %v858 = vld [vmem:[#allocation5 + $0x8] sm:$0xff]
      %v859 = vld [vmem:[#allocation5 + $0x10] sm:$0xff]
      %v860 = vld [vmem:[#allocation5 + $0x18] sm:$0xff]
      %v861 = vld [vmem:[#allocation4] sm:$0xff]
      %v862 = vld [vmem:[#allocation4 + $0x8] sm:$0xff]
      %v863 = vld [vmem:[#allocation4 + $0x10] sm:$0xff]
      %v864 = vld [vmem:[#allocation4 + $0x18] sm:$0xff]
      %v865 = vrcp.pop %v861
      %v866 = vrcp.pop %v862
      %v867 = vrcp.pop %v863
      %v868 = vrcp.pop %v864
      %870 = vset.pattern.permute.xlu0 0
      %871 = vperm.xlu0 %870, %v865
      %v872 = vpop.permute.xlu0 %871
      %875 = vset.pattern.permute.xlu0 0
      %876 = vperm.xlu0 %875, %v866
      %v877 = vpop.permute.xlu0 %876
      %880 = vset.pattern.permute.xlu0 0
      %881 = vperm.xlu0 %880, %v867
      %v882 = vpop.permute.xlu0 %881
      %885 = vset.pattern.permute.xlu0 0
      %886 = vperm.xlu0 %885, %v868
      %v887 = vpop.permute.xlu0 %886
      %v889 = vmul.f32 %v857, %v872
      %v890 = vmul.f32 %v858, %v877
      %v891 = vmul.f32 %v859, %v882
      %v892 = vmul.f32 %v860, %v887
      %v893 = vpack.c.bf16 %v889, %v889
      %v894 = vpack.c.bf16 %v890, %v890
      %v895 = vpack.c.bf16 %v891, %v891
      %v896 = vpack.c.bf16 %v892, %v892
      %v897 = vld [vmem:[%s5] sm:$0xf]
      %s898 = scalar_lea.vmem %s5, 4
      %v899 = vld [vmem:[%s898] sm:$0xf]
      %v901 = vsel %vm343, %v894, 0
      %v904 = vsel %vm660, %v899, 0
      %906 = vmatprep.subr.bf16.mxu0 0
      %907 = vmatpush1.bf16.msra.mxu0 0
      %908 = vmatprep.subr.bf16.mxu0 0
      %909 = vmatpush1.bf16.msra.mxu0 0
      %910 = vmatprep.subr.bf16.mxu0 0
      %911 = vmatpush1.bf16.msra.mxu0 0
      %912 = vmatprep.subr.bf16.mxu0 0
      %913 = vmatpush1.bf16.msra.mxu0 0
      %914 = vmatprep.subr.bf16.mxu0 0
      %915 = vmatpush1.bf16.msra.mxu0 0
      %916 = vmatprep.subr.bf16.mxu0 0
      %917 = vmatpush1.bf16.msra.mxu0 0
      %918 = vmatprep.subr.bf16.mxu0 0
      %919 = vmatpush1.bf16.msra.mxu0 0
      %920 = vmatprep.subr.bf16.mxu0 0
      %921 = vmatpush1.bf16.msra.mxu0 %v904
      %922 = vmatprep.subr.bf16.mxu0 0
      %923 = vmatpush2.bf16.msra.mxu0 0
      %924 = vmatprep.subr.bf16.mxu0 0
      %925 = vmatpush2.bf16.msra.mxu0 0
      %926 = vmatprep.subr.bf16.mxu0 0
      %927 = vmatpush2.bf16.msra.mxu0 0
      %928 = vmatprep.subr.bf16.mxu0 0
      %929 = vmatpush2.bf16.msra.mxu0 0
      %930 = vmatprep.subr.bf16.mxu0 0
      %931 = vmatpush2.bf16.msra.mxu0 0
      %932 = vmatprep.subr.bf16.mxu0 0
      %933 = vmatpush2.bf16.msra.mxu0 0
      %934 = vmatprep.subr.bf16.mxu0 0
      %935 = vmatpush2.bf16.msra.mxu0 0
      %936 = vmatprep.subr.bf16.mxu0 0
      %937 = vmatpush2.bf16.msra.mxu0 0
      %938 = vmatprep.mubr.bf16.mxu0 0
      %939 = vmatmul.mubr.bf16.gmra.mxu0 %v901
      %v940 = vpop.f32.mrf.mxu0
      %v941 = vadd.f32 0.0, %v940
      %v942 = vpop.f32.mrf.mxu0
      %v943 = vpop.f32.mrf.mxu0
      %v944 = vpop.f32.mrf.mxu0
      %945 = vdwg.mxu0
      %v947 = vsel %vm343, %v893, 0
      %v950 = vsel %vm660, %v897, 0
      %952 = vmatprep.subr.bf16.mxu0 0
      %953 = vmatpush1.bf16.msra.mxu0 0
      %954 = vmatprep.subr.bf16.mxu0 0
      %955 = vmatpush1.bf16.msra.mxu0 0
      %956 = vmatprep.subr.bf16.mxu0 0
      %957 = vmatpush1.bf16.msra.mxu0 0
      %958 = vmatprep.subr.bf16.mxu0 0
      %959 = vmatpush1.bf16.msra.mxu0 0
      %960 = vmatprep.subr.bf16.mxu0 0
      %961 = vmatpush1.bf16.msra.mxu0 0
      %962 = vmatprep.subr.bf16.mxu0 0
      %963 = vmatpush1.bf16.msra.mxu0 0
      %964 = vmatprep.subr.bf16.mxu0 0
      %965 = vmatpush1.bf16.msra.mxu0 0
      %966 = vmatprep.subr.bf16.mxu0 0
      %967 = vmatpush1.bf16.msra.mxu0 %v950
      %968 = vmatprep.subr.bf16.mxu0 0
      %969 = vmatpush2.bf16.msra.mxu0 0
      %970 = vmatprep.subr.bf16.mxu0 0
      %971 = vmatpush2.bf16.msra.mxu0 0
      %972 = vmatprep.subr.bf16.mxu0 0
      %973 = vmatpush2.bf16.msra.mxu0 0
      %974 = vmatprep.subr.bf16.mxu0 0
      %975 = vmatpush2.bf16.msra.mxu0 0
      %976 = vmatprep.subr.bf16.mxu0 0
      %977 = vmatpush2.bf16.msra.mxu0 0
      %978 = vmatprep.subr.bf16.mxu0 0
      %979 = vmatpush2.bf16.msra.mxu0 0
      %980 = vmatprep.subr.bf16.mxu0 0
      %981 = vmatpush2.bf16.msra.mxu0 0
      %982 = vmatprep.subr.bf16.mxu0 0
      %983 = vmatpush2.bf16.msra.mxu0 0
      %984 = vmatprep.mubr.bf16.mxu0 0
      %985 = vmatmul.mubr.bf16.gmra.mxu0 %v947
      %v986 = vpop.f32.mrf.mxu0
      %v987 = vadd.f32 %v941, %v986
      %v988 = vpop.f32.mrf.mxu0
      %v989 = vpop.f32.mrf.mxu0
      %v990 = vpop.f32.mrf.mxu0
      %991 = vdwg.mxu0
      %s992 = scalar_lea.vmem %s5, 8
      %v993 = vld [vmem:[%s992] sm:$0xf]
      %v995 = vsel %vm343, %v895, 0
      %v998 = vsel %vm660, %v993, 0
      %1000 = vmatprep.subr.bf16.mxu0 0
      %1001 = vmatpush1.bf16.msra.mxu0 0
      %1002 = vmatprep.subr.bf16.mxu0 0
      %1003 = vmatpush1.bf16.msra.mxu0 0
      %1004 = vmatprep.subr.bf16.mxu0 0
      %1005 = vmatpush1.bf16.msra.mxu0 0
      %1006 = vmatprep.subr.bf16.mxu0 0
      %1007 = vmatpush1.bf16.msra.mxu0 0
      %1008 = vmatprep.subr.bf16.mxu0 0
      %1009 = vmatpush1.bf16.msra.mxu0 0
      %1010 = vmatprep.subr.bf16.mxu0 0
      %1011 = vmatpush1.bf16.msra.mxu0 0
      %1012 = vmatprep.subr.bf16.mxu0 0
      %1013 = vmatpush1.bf16.msra.mxu0 0
      %1014 = vmatprep.subr.bf16.mxu0 0
      %1015 = vmatpush1.bf16.msra.mxu0 %v998
      %1016 = vmatprep.subr.bf16.mxu0 0
      %1017 = vmatpush2.bf16.msra.mxu0 0
      %1018 = vmatprep.subr.bf16.mxu0 0
      %1019 = vmatpush2.bf16.msra.mxu0 0
      %1020 = vmatprep.subr.bf16.mxu0 0
      %1021 = vmatpush2.bf16.msra.mxu0 0
      %1022 = vmatprep.subr.bf16.mxu0 0
      %1023 = vmatpush2.bf16.msra.mxu0 0
      %1024 = vmatprep.subr.bf16.mxu0 0
      %1025 = vmatpush2.bf16.msra.mxu0 0
      %1026 = vmatprep.subr.bf16.mxu0 0
      %1027 = vmatpush2.bf16.msra.mxu0 0
      %1028 = vmatprep.subr.bf16.mxu0 0
      %1029 = vmatpush2.bf16.msra.mxu0 0
      %1030 = vmatprep.subr.bf16.mxu0 0
      %1031 = vmatpush2.bf16.msra.mxu0 0
      %1032 = vmatprep.mubr.bf16.mxu0 0
      %1033 = vmatmul.mubr.bf16.gmra.mxu0 %v995
      %v1034 = vpop.f32.mrf.mxu0
      %v1035 = vadd.f32 0.0, %v1034
      %v1036 = vpop.f32.mrf.mxu0
      %v1037 = vpop.f32.mrf.mxu0
      %v1038 = vpop.f32.mrf.mxu0
      %1039 = vdwg.mxu0
      %v1040 = vadd.f32 %v987, %v1035
      %s1041 = scalar_lea.vmem %s5, 12
      %v1042 = vld [vmem:[%s1041] sm:$0xf]
      %v1044 = vsel %vm343, %v896, 0
      %v1047 = vsel %vm660, %v1042, 0
      %1049 = vmatprep.subr.bf16.mxu0 0
      %1050 = vmatpush1.bf16.msra.mxu0 0
      %1051 = vmatprep.subr.bf16.mxu0 0
      %1052 = vmatpush1.bf16.msra.mxu0 0
      %1053 = vmatprep.subr.bf16.mxu0 0
      %1054 = vmatpush1.bf16.msra.mxu0 0
      %1055 = vmatprep.subr.bf16.mxu0 0
      %1056 = vmatpush1.bf16.msra.mxu0 0
      %1057 = vmatprep.subr.bf16.mxu0 0
      %1058 = vmatpush1.bf16.msra.mxu0 0
      %1059 = vmatprep.subr.bf16.mxu0 0
      %1060 = vmatpush1.bf16.msra.mxu0 0
      %1061 = vmatprep.subr.bf16.mxu0 0
      %1062 = vmatpush1.bf16.msra.mxu0 0
      %1063 = vmatprep.subr.bf16.mxu0 0
      %1064 = vmatpush1.bf16.msra.mxu0 %v1047
      %1065 = vmatprep.subr.bf16.mxu0 0
      %1066 = vmatpush2.bf16.msra.mxu0 0
      %1067 = vmatprep.subr.bf16.mxu0 0
      %1068 = vmatpush2.bf16.msra.mxu0 0
      %1069 = vmatprep.subr.bf16.mxu0 0
      %1070 = vmatpush2.bf16.msra.mxu0 0
      %1071 = vmatprep.subr.bf16.mxu0 0
      %1072 = vmatpush2.bf16.msra.mxu0 0
      %1073 = vmatprep.subr.bf16.mxu0 0
      %1074 = vmatpush2.bf16.msra.mxu0 0
      %1075 = vmatprep.subr.bf16.mxu0 0
      %1076 = vmatpush2.bf16.msra.mxu0 0
      %1077 = vmatprep.subr.bf16.mxu0 0
      %1078 = vmatpush2.bf16.msra.mxu0 0
      %1079 = vmatprep.subr.bf16.mxu0 0
      %1080 = vmatpush2.bf16.msra.mxu0 0
      %1081 = vmatprep.mubr.bf16.mxu0 0
      %1082 = vmatmul.mubr.bf16.gmra.mxu0 %v1044
      %v1083 = vpop.f32.mrf.mxu0
      %v1084 = vadd.f32 0.0, %v1083
      %v1085 = vpop.f32.mrf.mxu0
      %v1086 = vpop.f32.mrf.mxu0
      %v1087 = vpop.f32.mrf.mxu0
      %1088 = vdwg.mxu0
      %v1089 = vadd.f32 %v1040, %v1084
      %v1090 = vld [vmem:[%s6] sm:$0x1]
      %v1092 = vlaneseq
      %v1093 = vshrl.u32 %v1092, 7
      %v1094 = vsub.s32 0, %v1093
      %v1095 = vrot.slane %v1090, %v1094
      %v1097 = vadd.f32 %v1089, %v1095
      %v1098 = vtanh.pop %v1097
      %v1099 = vld [vmem:[%s0] sm:$0xff]
      %v1100 = vadd.f32 %v1098, %v1099
      %vm1101 = vcmask 261120
      %v1102 = vsel %vm1101, %v1100, 0.0
      %1103 = vadd.xlane.f32.xlu0 %v1102
      %v1104 = vpop.xlane.xlu0 %1103
      %v1105 = vrcp.pop 32.0
      %v1106 = vmul.f32 %v1104, %v1105
      %v1107 = vsub.f32 %v1100, %v1106
      %v1108 = vmul.f32 %v1107, %v1107
      %v1109 = vsel %vm1101, %v1108, 0.0
      %1110 = vadd.xlane.f32.xlu0 %v1109
      %v1111 = vpop.xlane.xlu0 %1110
      %v1112 = vmul.f32 %v1111, %v1105
      %v1113 = vadd.f32 %v1112, 1e-05
      %v1114 = vrsqrt.pop %v1113
      %v1115 = vmul.f32 %v1107, %v1114
      %v1116 = vld [vmem:[%s7] sm:$0x1]
      %v1118 = vlaneseq
      %v1119 = vshrl.u32 %v1118, 7
      %v1120 = vsub.s32 0, %v1119
      %v1121 = vrot.slane %v1116, %v1120
      %v1123 = vmul.f32 %v1115, %v1121
      %v1124 = vld [vmem:[%s8] sm:$0x1]
      %v1126 = vlaneseq
      %v1127 = vshrl.u32 %v1126, 7
      %v1128 = vsub.s32 0, %v1127
      %v1129 = vrot.slane %v1124, %v1128
      %v1131 = vadd.f32 %v1123, %v1129
      %1132 = vst.msk [vmem:[#allocation6] sm:$0xff] %vm1101, %v1131
    $region49: #{tpu_custom_call.1} parent=1 // pred_fallthru
      _
    // Predicated region
    $region50: #{tpu_custom_call.1} parent=1 // pred_check
      _
    $region51: #{tpu_custom_call.1} parent=1 // pred_check_branch
      %1134 = sbr.rel (0) target = $region53
    $region52: #{tpu_custom_call.1} parent=1 // pred_region
      %s1136 = ssub.s32 128, 128
      %1137 = vsyncadd [#allocation7], %s1136
      %s1139 = sshll.u32 [#allocation6], 4
      %s1140 = int_to_ptr.vmem [resolvable:$true] %s1139
      %1142 = dma.vmem_to_hbm [thread:$0]  %s1140, 128, %s10, [#allocation7]
    $region53: #{tpu_custom_call.1} parent=1 // pred_fallthru
      _
    // Predicated region
    $region54: #{tpu_custom_call.1} parent=1 // pred_check
      _
    $region55: #{tpu_custom_call.1} parent=1 // pred_check_branch
      %1144 = sbr.rel (0) target = $region57
    $region56: #{tpu_custom_call.1} parent=1 // pred_region
      %1145 = dma.done [#allocation7], 128
    $region57: #{tpu_custom_call.1} parent=1 // pred_fallthru
      _
    %1146 = vsyncpa [#allocation7], 1

// kernel: tpu_custom_call.1
$region0: #{tpu_custom_call.1}
  #allocation0 [shape = 'u32[]', space=smem, size = 0x4, offset = 0x4, fixed_abs, tag = 'smem constant byte address 0x4 - core index']
  #allocation1 [shape = 'u32[144,128]{1,0:T(1,128)}', space=vmem, size = 0x12000, scoped, tag = 'internal scratch']
  #allocation2 [shape = 'bf16[4,8,8]{2,1,0:T(8,128)(2,1)}', space=vmem, size = 0x2000, scoped, tag = 'scratch operand']
  #allocation3 [shape = 'f32[4,8,1]{2,1,0:T(8,128)}', space=vmem, size = 0x4000, scoped, tag = 'scratch operand']
  #allocation4 [shape = 'f32[4,8,1]{2,1,0:T(8,128)}', space=vmem, size = 0x4000, scoped, tag = 'scratch operand']
  #allocation5 [shape = 'f32[4,8,8]{2,1,0:T(8,128)}', space=vmem, size = 0x4000, scoped, tag = 'scratch operand']
  %s0 = inlined_call_operand.vmem [shape: f32[8,32], index: 0, kind: input, shape index: {}]
  %s1 = inlined_call_operand.vmem [shape: bf16[4,8,8], index: 1, kind: input, shape index: {}]
  %s2 = inlined_call_operand.vmem [shape: bf16[4,8,8], index: 2, kind: input, shape index: {}]
  %s3 = inlined_call_operand.vmem [shape: bf16[4,32,8], index: 3, kind: input, shape index: {}]
  %s4 = inlined_call_operand.vmem [shape: f32[4,1,8], index: 4, kind: input, shape index: {}]
  %s5 = inlined_call_operand.vmem [shape: bf16[4,8,32], index: 5, kind: input, shape index: {}]
  %s6 = inlined_call_operand.vmem [shape: f32[1,32], index: 6, kind: input, shape index: {}]
  %s7 = inlined_call_operand.vmem [shape: f32[1,32], index: 7, kind: input, shape index: {}]
  %s8 = inlined_call_operand.vmem [shape: f32[1,32], index: 8, kind: input, shape index: {}]
  %s9 = inlined_call_operand.vmem [shape: f32[1,1,8], index: 9, kind: input, shape index: {}]
  %s10 = inlined_call_operand.hbm [shape: f32[8,32], index: 10, kind: output, shape index: {}]
  %s11 = sld [smem:[#allocation0]]
  $region58: #{tpu_custom_call.1} parent=0
    _
  %s13 = ssub.s32 1, %s11
  %s14 = scalar_select 0, %s13, %s11
  $region1: #{tpu_custom_call.1} parent=0
    #allocation6 [shape = 'u8[4096]{0}', space=vmem, size = 0x1000, scoped, tag = 'output window, operand 0, single buffered']
    #allocation7 [shape = 's32[1]{0}', space=sflag, size = 0x4, scoped, tag = 'scoped memory for tpu_custom_call.1']
    %15 = vsyncpa [#allocation7], 0
    // Predicated region
    $region2: #{tpu_custom_call.1} parent=1 // pred_check
      _
    $region3: #{tpu_custom_call.1} parent=1 // pred_check_branch
      %17 = sbr.rel (0) target = $region5
    $region4: #{tpu_custom_call.1} parent=1 // pred_region
      _
    $region5: #{tpu_custom_call.1} parent=1 // pred_fallthru
      _
    // Predicated region
    $region6: #{tpu_custom_call.1} parent=1 // pred_check
      _
    $region7: #{tpu_custom_call.1} parent=1 // pred_check_branch
      %19 = sbr.rel (0) target = $region9
    $region8: #{tpu_custom_call.1} parent=1 // pred_region
      _
    $region9: #{tpu_custom_call.1} parent=1 // pred_fallthru
      _
    // Predicated region
    $region10: #{tpu_custom_call.1} parent=1 // pred_check
      _
    $region11: #{tpu_custom_call.1} parent=1 // pred_check_branch
      %21 = sbr.rel (0) target = $region13
    $region12: #{tpu_custom_call.1} parent=1 // pred_region
      _
    $region13: #{tpu_custom_call.1} parent=1 // pred_fallthru
      _
    // Predicated region
    $region14: #{tpu_custom_call.1} parent=1 // pred_check
      _
    $region15: #{tpu_custom_call.1} parent=1 // pred_check_branch
      %23 = sbr.rel (0) target = $region17
    $region16: #{tpu_custom_call.1} parent=1 // pred_region
      _
    $region17: #{tpu_custom_call.1} parent=1 // pred_fallthru
      _
    // Predicated region
    $region18: #{tpu_custom_call.1} parent=1 // pred_check
      _
    $region19: #{tpu_custom_call.1} parent=1 // pred_check_branch
      %25 = sbr.rel (0) target = $region21
    $region20: #{tpu_custom_call.1} parent=1 // pred_region
      _
    $region21: #{tpu_custom_call.1} parent=1 // pred_fallthru
      _
    // Predicated region
    $region22: #{tpu_custom_call.1} parent=1 // pred_check
      _
    $region23: #{tpu_custom_call.1} parent=1 // pred_check_branch
      %27 = sbr.rel (0) target = $region25
    $region24: #{tpu_custom_call.1} parent=1 // pred_region
      _
    $region25: #{tpu_custom_call.1} parent=1 // pred_fallthru
      _
    // Predicated region
    $region26: #{tpu_custom_call.1} parent=1 // pred_check
      _
    $region27: #{tpu_custom_call.1} parent=1 // pred_check_branch
      %29 = sbr.rel (0) target = $region29
    $region28: #{tpu_custom_call.1} parent=1 // pred_region
      _
    $region29: #{tpu_custom_call.1} parent=1 // pred_fallthru
      _
    // Predicated region
    $region30: #{tpu_custom_call.1} parent=1 // pred_check
      _
    $region31: #{tpu_custom_call.1} parent=1 // pred_check_branch
      %31 = sbr.rel (0) target = $region33
    $region32: #{tpu_custom_call.1} parent=1 // pred_region
      _
    $region33: #{tpu_custom_call.1} parent=1 // pred_fallthru
      _
    // Predicated region
    $region34: #{tpu_custom_call.1} parent=1 // pred_check
      _
    $region35: #{tpu_custom_call.1} parent=1 // pred_check_branch
      %33 = sbr.rel (0) target = $region37
    $region36: #{tpu_custom_call.1} parent=1 // pred_region
      _
    $region37: #{tpu_custom_call.1} parent=1 // pred_fallthru
      _
    // Predicated region
    $region38: #{tpu_custom_call.1} parent=1 // pred_check
      _
    $region39: #{tpu_custom_call.1} parent=1 // pred_check_branch
      %35 = sbr.rel (0) target = $region41
    $region40: #{tpu_custom_call.1} parent=1 // pred_region
      _
    $region41: #{tpu_custom_call.1} parent=1 // pred_fallthru
      _
    %p37 = scmp.eq.s32.totalorder 0, 0
    // Predicated region
    $region42: #{tpu_custom_call.1} parent=1 // pred_check
      %p38 = pneg %p37
    $region43: #{tpu_custom_call.1} parent=1 // pred_check_branch
      %40 = sbr.rel (%p38) target = $region45
    $region44: #{tpu_custom_call.1} parent=1 // pred_region
      %v41 = vld [vmem:[%s0] sm:$0xff]
      %v42 = vpack.c.bf16 %v41, %v41
      %v43 = vld [vmem:[%s3] sm:$0xf]
      %v44 = vld [vmem:[%s3 + $0x4] sm:$0xf]
      %v45 = vld [vmem:[%s3 + $0x8] sm:$0xf]
      %v46 = vld [vmem:[%s3 + $0xc] sm:$0xf]
      %v47 = vld [vmem:[%s4] sm:$0x1]
      %v49 = vlaneseq
      %v50 = vshrl.u32 %v49, 7
      %v51 = vsub.s32 0, %v50
      %v52 = vrot.slane %v47, %v51
      %v58 = vunpack.c.l.b16 %v43
      %v59 = vunpack.c.l.b16 %v44
      %v60 = vunpack.c.l.b16 %v45
      %v61 = vunpack.c.l.b16 %v46
      %v62 = vpack.c.b16 %v59, %v58
      %v63 = vpack.c.b16 %v61, %v60
      %vm66 = vcmask 261120
      %v68 = vsel %vm66, %v42, 0
      %70 = vmatprep.subr.bf16.mxu0 0
      %71 = vmatpush1.bf16.msra.mxu0 0
      %72 = vmatprep.subr.bf16.mxu0 0
      %73 = vmatpush1.bf16.msra.mxu0 0
      %74 = vmatprep.subr.bf16.mxu0 0
      %75 = vmatpush1.bf16.msra.mxu0 0
      %76 = vmatprep.subr.bf16.mxu0 0
      %77 = vmatpush1.bf16.msra.mxu0 0
      %78 = vmatprep.subr.bf16.mxu0 0
      %79 = vmatpush1.bf16.msra.mxu0 0
      %80 = vmatprep.subr.bf16.mxu0 0
      %81 = vmatpush1.bf16.msra.mxu0 0
      %82 = vmatprep.subr.bf16.mxu0 0
      %83 = vmatpush1.bf16.msra.mxu0 %v63
      %84 = vmatprep.subr.bf16.mxu0 0
      %85 = vmatpush1.bf16.msra.mxu0 %v62
      %86 = vmatprep.subr.bf16.mxu0 0
      %87 = vmatpush2.bf16.msra.mxu0 0
      %88 = vmatprep.subr.bf16.mxu0 0
      %89 = vmatpush2.bf16.msra.mxu0 0
      %90 = vmatprep.subr.bf16.mxu0 0
      %91 = vmatpush2.bf16.msra.mxu0 0
      %92 = vmatprep.subr.bf16.mxu0 0
      %93 = vmatpush2.bf16.msra.mxu0 0
      %94 = vmatprep.subr.bf16.mxu0 0
      %95 = vmatpush2.bf16.msra.mxu0 0
      %96 = vmatprep.subr.bf16.mxu0 0
      %97 = vmatpush2.bf16.msra.mxu0 0
      %98 = vmatprep.subr.bf16.mxu0 0
      %99 = vmatpush2.bf16.msra.mxu0 0
      %100 = vmatprep.subr.bf16.mxu0 0
      %101 = vmatpush2.bf16.msra.mxu0 0
      %102 = vmatprep.mubr.bf16.mxu0 0
      %103 = vmatmul.mubr.bf16.gmra.mxu0 %v68
      %v104 = vpop.f32.mrf.mxu0
      %v105 = vadd.f32 %v52, %v104
      %v106 = vpop.f32.mrf.mxu0
      %v107 = vpop.f32.mrf.mxu0
      %v108 = vpop.f32.mrf.mxu0
      %109 = vdwg.mxu0
      %s110 = scalar_lea.vmem %s3, 16
      %v111 = vld [vmem:[%s110] sm:$0xf]
      %v112 = vld [vmem:[%s110 + $0x4] sm:$0xf]
      %v113 = vld [vmem:[%s110 + $0x8] sm:$0xf]
      %v114 = vld [vmem:[%s110 + $0xc] sm:$0xf]
      %s115 = scalar_lea.vmem %s4, 1
      %v116 = vld [vmem:[%s115] sm:$0x1]
      %v118 = vlaneseq
      %v119 = vshrl.u32 %v118, 7
      %v120 = vsub.s32 0, %v119
      %v121 = vrot.slane %v116, %v120
      %v127 = vunpack.c.l.b16 %v111
      %v128 = vunpack.c.l.b16 %v112
      %v129 = vunpack.c.l.b16 %v113
      %v130 = vunpack.c.l.b16 %v114
      %v131 = vpack.c.b16 %v128, %v127
      %v132 = vpack.c.b16 %v130, %v129
      %135 = vmatprep.subr.bf16.mxu0 0
      %136 = vmatpush1.bf16.msra.mxu0 0
      %137 = vmatprep.subr.bf16.mxu0 0
      %138 = vmatpush1.bf16.msra.mxu0 0
      %139 = vmatprep.subr.bf16.mxu0 0
      %140 = vmatpush1.bf16.msra.mxu0 0
      %141 = vmatprep.subr.bf16.mxu0 0
      %142 = vmatpush1.bf16.msra.mxu0 0
      %143 = vmatprep.subr.bf16.mxu0 0
      %144 = vmatpush1.bf16.msra.mxu0 0
      %145 = vmatprep.subr.bf16.mxu0 0
      %146 = vmatpush1.bf16.msra.mxu0 0
      %147 = vmatprep.subr.bf16.mxu0 0
      %148 = vmatpush1.bf16.msra.mxu0 %v132
      %149 = vmatprep.subr.bf16.mxu0 0
      %150 = vmatpush1.bf16.msra.mxu0 %v131
      %151 = vmatprep.subr.bf16.mxu0 0
      %152 = vmatpush2.bf16.msra.mxu0 0
      %153 = vmatprep.subr.bf16.mxu0 0
      %154 = vmatpush2.bf16.msra.mxu0 0
      %155 = vmatprep.subr.bf16.mxu0 0
      %156 = vmatpush2.bf16.msra.mxu0 0
      %157 = vmatprep.subr.bf16.mxu0 0
      %158 = vmatpush2.bf16.msra.mxu0 0
      %159 = vmatprep.subr.bf16.mxu0 0
      %160 = vmatpush2.bf16.msra.mxu0 0
      %161 = vmatprep.subr.bf16.mxu0 0
      %162 = vmatpush2.bf16.msra.mxu0 0
      %163 = vmatprep.subr.bf16.mxu0 0
      %164 = vmatpush2.bf16.msra.mxu0 0
      %165 = vmatprep.subr.bf16.mxu0 0
      %166 = vmatpush2.bf16.msra.mxu0 0
      %167 = vmatprep.mubr.bf16.mxu0 0
      %168 = vmatmul.mubr.bf16.gmra.mxu0 %v68
      %v169 = vpop.f32.mrf.mxu0
      %v170 = vadd.f32 %v121, %v169
      %v171 = vpop.f32.mrf.mxu0
      %v172 = vpop.f32.mrf.mxu0
      %v173 = vpop.f32.mrf.mxu0
      %174 = vdwg.mxu0
      %s175 = scalar_lea.vmem %s3, 32
      %v176 = vld [vmem:[%s175] sm:$0xf]
      %v177 = vld [vmem:[%s175 + $0x4] sm:$0xf]
      %v178 = vld [vmem:[%s175 + $0x8] sm:$0xf]
      %v179 = vld [vmem:[%s175 + $0xc] sm:$0xf]
      %s180 = scalar_lea.vmem %s4, 2
      %v181 = vld [vmem:[%s180] sm:$0x1]
      %v183 = vlaneseq
      %v184 = vshrl.u32 %v183, 7
      %v185 = vsub.s32 0, %v184
      %v186 = vrot.slane %v181, %v185
      %v192 = vunpack.c.l.b16 %v176
      %v193 = vunpack.c.l.b16 %v177
      %v194 = vunpack.c.l.b16 %v178
      %v195 = vunpack.c.l.b16 %v179
      %v196 = vpack.c.b16 %v193, %v192
      %v197 = vpack.c.b16 %v195, %v194
      %200 = vmatprep.subr.bf16.mxu0 0
      %201 = vmatpush1.bf16.msra.mxu0 0
      %202 = vmatprep.subr.bf16.mxu0 0
      %203 = vmatpush1.bf16.msra.mxu0 0
      %204 = vmatprep.subr.bf16.mxu0 0
      %205 = vmatpush1.bf16.msra.mxu0 0
      %206 = vmatprep.subr.bf16.mxu0 0
      %207 = vmatpush1.bf16.msra.mxu0 0
      %208 = vmatprep.subr.bf16.mxu0 0
      %209 = vmatpush1.bf16.msra.mxu0 0
      %210 = vmatprep.subr.bf16.mxu0 0
      %211 = vmatpush1.bf16.msra.mxu0 0
      %212 = vmatprep.subr.bf16.mxu0 0
      %213 = vmatpush1.bf16.msra.mxu0 %v197
      %214 = vmatprep.subr.bf16.mxu0 0
      %215 = vmatpush1.bf16.msra.mxu0 %v196
      %216 = vmatprep.subr.bf16.mxu0 0
      %217 = vmatpush2.bf16.msra.mxu0 0
      %218 = vmatprep.subr.bf16.mxu0 0
      %219 = vmatpush2.bf16.msra.mxu0 0
      %220 = vmatprep.subr.bf16.mxu0 0
      %221 = vmatpush2.bf16.msra.mxu0 0
      %222 = vmatprep.subr.bf16.mxu0 0
      %223 = vmatpush2.bf16.msra.mxu0 0
      %224 = vmatprep.subr.bf16.mxu0 0
      %225 = vmatpush2.bf16.msra.mxu0 0
      %226 = vmatprep.subr.bf16.mxu0 0
      %227 = vmatpush2.bf16.msra.mxu0 0
      %228 = vmatprep.subr.bf16.mxu0 0
      %229 = vmatpush2.bf16.msra.mxu0 0
      %230 = vmatprep.subr.bf16.mxu0 0
      %231 = vmatpush2.bf16.msra.mxu0 0
      %232 = vmatprep.mubr.bf16.mxu0 0
      %233 = vmatmul.mubr.bf16.gmra.mxu0 %v68
      %v234 = vpop.f32.mrf.mxu0
      %v235 = vadd.f32 %v186, %v234
      %v236 = vpop.f32.mrf.mxu0
      %v237 = vpop.f32.mrf.mxu0
      %v238 = vpop.f32.mrf.mxu0
      %239 = vdwg.mxu0
      %s240 = scalar_lea.vmem %s3, 48
      %v241 = vld [vmem:[%s240] sm:$0xf]
      %v242 = vld [vmem:[%s240 + $0x4] sm:$0xf]
      %v243 = vld [vmem:[%s240 + $0x8] sm:$0xf]
      %v244 = vld [vmem:[%s240 + $0xc] sm:$0xf]
      %s245 = scalar_lea.vmem %s4, 3
      %v246 = vld [vmem:[%s245] sm:$0x1]
      %v248 = vlaneseq
      %v249 = vshrl.u32 %v248, 7
      %v250 = vsub.s32 0, %v249
      %v251 = vrot.slane %v246, %v250
      %v257 = vunpack.c.l.b16 %v241
      %v258 = vunpack.c.l.b16 %v242
      %v259 = vunpack.c.l.b16 %v243
      %v260 = vunpack.c.l.b16 %v244
      %v261 = vpack.c.b16 %v258, %v257
      %v262 = vpack.c.b16 %v260, %v259
      %265 = vmatprep.subr.bf16.mxu0 0
      %266 = vmatpush1.bf16.msra.mxu0 0
      %267 = vmatprep.subr.bf16.mxu0 0
      %268 = vmatpush1.bf16.msra.mxu0 0
      %269 = vmatprep.subr.bf16.mxu0 0
      %270 = vmatpush1.bf16.msra.mxu0 0
      %271 = vmatprep.subr.bf16.mxu0 0
      %272 = vmatpush1.bf16.msra.mxu0 0
      %273 = vmatprep.subr.bf16.mxu0 0
      %274 = vmatpush1.bf16.msra.mxu0 0
      %275 = vmatprep.subr.bf16.mxu0 0
      %276 = vmatpush1.bf16.msra.mxu0 0
      %277 = vmatprep.subr.bf16.mxu0 0
      %278 = vmatpush1.bf16.msra.mxu0 %v262
      %279 = vmatprep.subr.bf16.mxu0 0
      %280 = vmatpush1.bf16.msra.mxu0 %v261
      %281 = vmatprep.subr.bf16.mxu0 0
      %282 = vmatpush2.bf16.msra.mxu0 0
      %283 = vmatprep.subr.bf16.mxu0 0
      %284 = vmatpush2.bf16.msra.mxu0 0
      %285 = vmatprep.subr.bf16.mxu0 0
      %286 = vmatpush2.bf16.msra.mxu0 0
      %287 = vmatprep.subr.bf16.mxu0 0
      %288 = vmatpush2.bf16.msra.mxu0 0
      %289 = vmatprep.subr.bf16.mxu0 0
      %290 = vmatpush2.bf16.msra.mxu0 0
      %291 = vmatprep.subr.bf16.mxu0 0
      %292 = vmatpush2.bf16.msra.mxu0 0
      %293 = vmatprep.subr.bf16.mxu0 0
      %294 = vmatpush2.bf16.msra.mxu0 0
      %295 = vmatprep.subr.bf16.mxu0 0
      %296 = vmatpush2.bf16.msra.mxu0 0
      %297 = vmatprep.mubr.bf16.mxu0 0
      %298 = vmatmul.mubr.bf16.gmra.mxu0 %v68
      %v299 = vpop.f32.mrf.mxu0
      %v300 = vadd.f32 %v251, %v299
      %v301 = vpop.f32.mrf.mxu0
      %v302 = vpop.f32.mrf.mxu0
      %v303 = vpop.f32.mrf.mxu0
      %304 = vdwg.mxu0
      %v305 = vpack.c.bf16 %v105, %v105
      %v306 = vpack.c.bf16 %v170, %v170
      %v307 = vpack.c.bf16 %v235, %v235
      %v308 = vpack.c.bf16 %v300, %v300
      %vm309 = vcmask 60416
      %310 = vst.msk [vmem:[#allocation2] sm:$0xf] %vm309, %v305
      %311 = vst.msk [vmem:[#allocation2 + $0x4] sm:$0xf] %vm309, %v306
      %312 = vst.msk [vmem:[#allocation2 + $0x8] sm:$0xf] %vm309, %v307
      %313 = vst.msk [vmem:[#allocation2 + $0xc] sm:$0xf] %vm309, %v308
      %vm314 = vcmask 7168
      %315 = vst.msk [vmem:[#allocation3] sm:$0xff] %vm314, -inf
      %316 = vst.msk [vmem:[#allocation3 + $0x8] sm:$0xff] %vm314, -inf
      %317 = vst.msk [vmem:[#allocation3 + $0x10] sm:$0xff] %vm314, -inf
      %318 = vst.msk [vmem:[#allocation3 + $0x18] sm:$0xff] %vm314, -inf
      %319 = vst.msk [vmem:[#allocation4] sm:$0xff] %vm314, 0.0
      %320 = vst.msk [vmem:[#allocation4 + $0x8] sm:$0xff] %vm314, 0.0
      %321 = vst.msk [vmem:[#allocation4 + $0x10] sm:$0xff] %vm314, 0.0
      %322 = vst.msk [vmem:[#allocation4 + $0x18] sm:$0xff] %vm314, 0.0
      %vm323 = vcmask 64512
      %324 = vst.msk [vmem:[#allocation5] sm:$0xff] %vm323, 0.0
      %325 = vst.msk [vmem:[#allocation5 + $0x8] sm:$0xff] %vm323, 0.0
      %326 = vst.msk [vmem:[#allocation5 + $0x10] sm:$0xff] %vm323, 0.0
      %327 = vst.msk [vmem:[#allocation5 + $0x18] sm:$0xff] %vm323, 0.0
    $region45: #{tpu_custom_call.1} parent=1 // pred_fallthru
      _
    %v328 = vld [vmem:[#allocation2] sm:$0xf]
    %v329 = vld [vmem:[#allocation2 + $0x4] sm:$0xf]
    %v330 = vld [vmem:[#allocation2 + $0x8] sm:$0xf]
    %v331 = vld [vmem:[#allocation2 + $0xc] sm:$0xf]
    %v332 = vld [vmem:[%s1] sm:$0xf]
    %v333 = vld [vmem:[%s1 + $0x4] sm:$0xf]
    %v334 = vld [vmem:[%s1 + $0x8] sm:$0xf]
    %v335 = vld [vmem:[%s1 + $0xc] sm:$0xf]
    %v336 = vld [vmem:[%s9] sm:$0x1]
    %v338 = vlaneseq
    %v339 = vshrl.u32 %v338, 7
    %v340 = vsub.s32 0, %v339
    %v341 = vrot.slane %v336, %v340
    %vm343 = vcmask 64512
    %v345 = vsel %vm343, %v328, 0
    %v348 = vsel %vm343, %v332, 0
    %350 = vmatprep.subr.bf16.mxu0 0
    %351 = vmatpush1.bf16.xpose.msra.mxu0 0
    %352 = vmatprep.subr.bf16.mxu0 0
    %353 = vmatpush1.bf16.xpose.msra.mxu0 0
    %354 = vmatprep.subr.bf16.mxu0 0
    %355 = vmatpush1.bf16.xpose.msra.mxu0 0
    %356 = vmatprep.subr.bf16.mxu0 0
    %357 = vmatpush1.bf16.xpose.msra.mxu0 0
    %358 = vmatprep.subr.bf16.mxu0 0
    %359 = vmatpush1.bf16.xpose.msra.mxu0 0
    %360 = vmatprep.subr.bf16.mxu0 0
    %361 = vmatpush1.bf16.xpose.msra.mxu0 0
    %362 = vmatprep.subr.bf16.mxu0 0
    %363 = vmatpush1.bf16.xpose.msra.mxu0 0
    %364 = vmatprep.subr.bf16.mxu0 0
    %365 = vmatpush1.bf16.xpose.msra.mxu0 %v348
    %366 = vmatprep.subr.bf16.mxu0 0
    %367 = vmatpush2.bf16.xpose.msra.mxu0 0
    %368 = vmatprep.subr.bf16.mxu0 0
    %369 = vmatpush2.bf16.xpose.msra.mxu0 0
    %370 = vmatprep.subr.bf16.mxu0 0
    %371 = vmatpush2.bf16.xpose.msra.mxu0 0
    %372 = vmatprep.subr.bf16.mxu0 0
    %373 = vmatpush2.bf16.xpose.msra.mxu0 0
    %374 = vmatprep.subr.bf16.mxu0 0
    %375 = vmatpush2.bf16.xpose.msra.mxu0 0
    %376 = vmatprep.subr.bf16.mxu0 0
    %377 = vmatpush2.bf16.xpose.msra.mxu0 0
    %378 = vmatprep.subr.bf16.mxu0 0
    %379 = vmatpush2.bf16.xpose.msra.mxu0 0
    %380 = vmatprep.subr.bf16.mxu0 0
    %381 = vmatpush2.bf16.xpose.msra.mxu0 0
    %382 = vmatprep.mubr.bf16.mxu0 0
    %383 = vmatmul.mubr.bf16.gmra.mxu0 %v345
    %v384 = vpop.f32.mrf.mxu0
    %v385 = vadd.f32 %v341, %v384
    %v386 = vpop.f32.mrf.mxu0
    %v387 = vpop.f32.mrf.mxu0
    %v388 = vpop.f32.mrf.mxu0
    %389 = vdwg.mxu0
    %v391 = vsel %vm343, %v329, 0
    %v394 = vsel %vm343, %v333, 0
    %396 = vmatprep.subr.bf16.mxu0 0
    %397 = vmatpush1.bf16.xpose.msra.mxu0 0
    %398 = vmatprep.subr.bf16.mxu0 0
    %399 = vmatpush1.bf16.xpose.msra.mxu0 0
    %400 = vmatprep.subr.bf16.mxu0 0
    %401 = vmatpush1.bf16.xpose.msra.mxu0 0
    %402 = vmatprep.subr.bf16.mxu0 0
    %403 = vmatpush1.bf16.xpose.msra.mxu0 0
    %404 = vmatprep.subr.bf16.mxu0 0
    %405 = vmatpush1.bf16.xpose.msra.mxu0 0
    %406 = vmatprep.subr.bf16.mxu0 0
    %407 = vmatpush1.bf16.xpose.msra.mxu0 0
    %408 = vmatprep.subr.bf16.mxu0 0
    %409 = vmatpush1.bf16.xpose.msra.mxu0 0
    %410 = vmatprep.subr.bf16.mxu0 0
    %411 = vmatpush1.bf16.xpose.msra.mxu0 %v394
    %412 = vmatprep.subr.bf16.mxu0 0
    %413 = vmatpush2.bf16.xpose.msra.mxu0 0
    %414 = vmatprep.subr.bf16.mxu0 0
    %415 = vmatpush2.bf16.xpose.msra.mxu0 0
    %416 = vmatprep.subr.bf16.mxu0 0
    %417 = vmatpush2.bf16.xpose.msra.mxu0 0
    %418 = vmatprep.subr.bf16.mxu0 0
    %419 = vmatpush2.bf16.xpose.msra.mxu0 0
    %420 = vmatprep.subr.bf16.mxu0 0
    %421 = vmatpush2.bf16.xpose.msra.mxu0 0
    %422 = vmatprep.subr.bf16.mxu0 0
    %423 = vmatpush2.bf16.xpose.msra.mxu0 0
    %424 = vmatprep.subr.bf16.mxu0 0
    %425 = vmatpush2.bf16.xpose.msra.mxu0 0
    %426 = vmatprep.subr.bf16.mxu0 0
    %427 = vmatpush2.bf16.xpose.msra.mxu0 0
    %428 = vmatprep.mubr.bf16.mxu0 0
    %429 = vmatmul.mubr.bf16.gmra.mxu0 %v391
    %v430 = vpop.f32.mrf.mxu0
    %v431 = vadd.f32 %v341, %v430
    %v432 = vpop.f32.mrf.mxu0
    %v433 = vpop.f32.mrf.mxu0
    %v434 = vpop.f32.mrf.mxu0
    %435 = vdwg.mxu0
    %v437 = vsel %vm343, %v330, 0
    %v440 = vsel %vm343, %v334, 0
    %442 = vmatprep.subr.bf16.mxu0 0
    %443 = vmatpush1.bf16.xpose.msra.mxu0 0
    %444 = vmatprep.subr.bf16.mxu0 0
    %445 = vmatpush1.bf16.xpose.msra.mxu0 0
    %446 = vmatprep.subr.bf16.mxu0 0
    %447 = vmatpush1.bf16.xpose.msra.mxu0 0
    %448 = vmatprep.subr.bf16.mxu0 0
    %449 = vmatpush1.bf16.xpose.msra.mxu0 0
    %450 = vmatprep.subr.bf16.mxu0 0
    %451 = vmatpush1.bf16.xpose.msra.mxu0 0
    %452 = vmatprep.subr.bf16.mxu0 0
    %453 = vmatpush1.bf16.xpose.msra.mxu0 0
    %454 = vmatprep.subr.bf16.mxu0 0
    %455 = vmatpush1.bf16.xpose.msra.mxu0 0
    %456 = vmatprep.subr.bf16.mxu0 0
    %457 = vmatpush1.bf16.xpose.msra.mxu0 %v440
    %458 = vmatprep.subr.bf16.mxu0 0
    %459 = vmatpush2.bf16.xpose.msra.mxu0 0
    %460 = vmatprep.subr.bf16.mxu0 0
    %461 = vmatpush2.bf16.xpose.msra.mxu0 0
    %462 = vmatprep.subr.bf16.mxu0 0
    %463 = vmatpush2.bf16.xpose.msra.mxu0 0
    %464 = vmatprep.subr.bf16.mxu0 0
    %465 = vmatpush2.bf16.xpose.msra.mxu0 0
    %466 = vmatprep.subr.bf16.mxu0 0
    %467 = vmatpush2.bf16.xpose.msra.mxu0 0
    %468 = vmatprep.subr.bf16.mxu0 0
    %469 = vmatpush2.bf16.xpose.msra.mxu0 0
    %470 = vmatprep.subr.bf16.mxu0 0
    %471 = vmatpush2.bf16.xpose.msra.mxu0 0
    %472 = vmatprep.subr.bf16.mxu0 0
    %473 = vmatpush2.bf16.xpose.msra.mxu0 0
    %474 = vmatprep.mubr.bf16.mxu0 0
    %475 = vmatmul.mubr.bf16.gmra.mxu0 %v437
    %v476 = vpop.f32.mrf.mxu0
    %v477 = vadd.f32 %v341, %v476
    %v478 = vpop.f32.mrf.mxu0
    %v479 = vpop.f32.mrf.mxu0
    %v480 = vpop.f32.mrf.mxu0
    %481 = vdwg.mxu0
    %v483 = vsel %vm343, %v331, 0
    %v486 = vsel %vm343, %v335, 0
    %488 = vmatprep.subr.bf16.mxu0 0
    %489 = vmatpush1.bf16.xpose.msra.mxu0 0
    %490 = vmatprep.subr.bf16.mxu0 0
    %491 = vmatpush1.bf16.xpose.msra.mxu0 0
    %492 = vmatprep.subr.bf16.mxu0 0
    %493 = vmatpush1.bf16.xpose.msra.mxu0 0
    %494 = vmatprep.subr.bf16.mxu0 0
    %495 = vmatpush1.bf16.xpose.msra.mxu0 0
    %496 = vmatprep.subr.bf16.mxu0 0
    %497 = vmatpush1.bf16.xpose.msra.mxu0 0
    %498 = vmatprep.subr.bf16.mxu0 0
    %499 = vmatpush1.bf16.xpose.msra.mxu0 0
    %500 = vmatprep.subr.bf16.mxu0 0
    %501 = vmatpush1.bf16.xpose.msra.mxu0 0
    %502 = vmatprep.subr.bf16.mxu0 0
    %503 = vmatpush1.bf16.xpose.msra.mxu0 %v486
    %504 = vmatprep.subr.bf16.mxu0 0
    %505 = vmatpush2.bf16.xpose.msra.mxu0 0
    %506 = vmatprep.subr.bf16.mxu0 0
    %507 = vmatpush2.bf16.xpose.msra.mxu0 0
    %508 = vmatprep.subr.bf16.mxu0 0
    %509 = vmatpush2.bf16.xpose.msra.mxu0 0
    %510 = vmatprep.subr.bf16.mxu0 0
    %511 = vmatpush2.bf16.xpose.msra.mxu0 0
    %512 = vmatprep.subr.bf16.mxu0 0
    %513 = vmatpush2.bf16.xpose.msra.mxu0 0
    %514 = vmatprep.subr.bf16.mxu0 0
    %515 = vmatpush2.bf16.xpose.msra.mxu0 0
    %516 = vmatprep.subr.bf16.mxu0 0
    %517 = vmatpush2.bf16.xpose.msra.mxu0 0
    %518 = vmatprep.subr.bf16.mxu0 0
    %519 = vmatpush2.bf16.xpose.msra.mxu0 0
    %520 = vmatprep.mubr.bf16.mxu0 0
    %521 = vmatmul.mubr.bf16.gmra.mxu0 %v483
    %v522 = vpop.f32.mrf.mxu0
    %v523 = vadd.f32 %v341, %v522
    %v524 = vpop.f32.mrf.mxu0
    %v525 = vpop.f32.mrf.mxu0
    %v526 = vpop.f32.mrf.mxu0
    %527 = vdwg.mxu0
    %v528 = vld [vmem:[#allocation3] sm:$0xff]
    %v529 = vld [vmem:[#allocation3 + $0x8] sm:$0xff]
    %v530 = vld [vmem:[#allocation3 + $0x10] sm:$0xff]
    %v531 = vld [vmem:[#allocation3 + $0x18] sm:$0xff]
    %v532 = vsel %vm343, %v385, -inf
    %533 = vmax.xlane.f32.xlu0 %v532
    %v534 = vpop.xlane.xlu0 %533
    %v535 = vsel %vm343, %v431, -inf
    %536 = vmax.xlane.f32.xlu0 %v535
    %v537 = vpop.xlane.xlu0 %536
    %v538 = vsel %vm343, %v477, -inf
    %539 = vmax.xlane.f32.xlu0 %v538
    %v540 = vpop.xlane.xlu0 %539
    %v541 = vsel %vm343, %v523, -inf
    %542 = vmax.xlane.f32.xlu0 %v541
    %v543 = vpop.xlane.xlu0 %542
    %v544 = vmax.f32 %v528, %v534
    %v545 = vmax.f32 %v529, %v537
    %v546 = vmax.f32 %v530, %v540
    %v547 = vmax.f32 %v531, %v543
    %v548 = vsub.f32 %v528, %v544
    %v549 = vsub.f32 %v529, %v545
    %v550 = vsub.f32 %v530, %v546
    %v551 = vsub.f32 %v531, %v547
    %v552 = vmul.f32 %v548, 1.442695
    %v553 = vpow.pop %v552
    %v554 = vmul.f32 %v549, 1.442695
    %v555 = vpow.pop %v554
    %v556 = vmul.f32 %v550, 1.442695
    %v557 = vpow.pop %v556
    %v558 = vmul.f32 %v551, 1.442695
    %v559 = vpow.pop %v558
    %561 = vset.pattern.permute.xlu0 0
    %562 = vperm.xlu0 %561, %v544
    %v563 = vpop.permute.xlu0 %562
    %566 = vset.pattern.permute.xlu0 0
    %567 = vperm.xlu0 %566, %v545
    %v568 = vpop.permute.xlu0 %567
    %571 = vset.pattern.permute.xlu0 0
    %572 = vperm.xlu0 %571, %v546
    %v573 = vpop.permute.xlu0 %572
    %576 = vset.pattern.permute.xlu0 0
    %577 = vperm.xlu0 %576, %v547
    %v578 = vpop.permute.xlu0 %577
    %v580 = vsub.f32 %v385, %v563
    %v581 = vsub.f32 %v431, %v568
    %v582 = vsub.f32 %v477, %v573
    %v583 = vsub.f32 %v523, %v578
    %v584 = vmul.f32 %v580, 1.442695
    %v585 = vpow.pop %v584
    %v586 = vmul.f32 %v581, 1.442695
    %v587 = vpow.pop %v586
    %v588 = vmul.f32 %v582, 1.442695
    %v589 = vpow.pop %v588
    %v590 = vmul.f32 %v583, 1.442695
    %v591 = vpow.pop %v590
    %v592 = vld [vmem:[#allocation4] sm:$0xff]
    %v593 = vld [vmem:[#allocation4 + $0x8] sm:$0xff]
    %v594 = vld [vmem:[#allocation4 + $0x10] sm:$0xff]
    %v595 = vld [vmem:[#allocation4 + $0x18] sm:$0xff]
    %v596 = vmul.f32 %v553, %v592
    %v597 = vmul.f32 %v555, %v593
    %v598 = vmul.f32 %v557, %v594
    %v599 = vmul.f32 %v559, %v595
    %v600 = vsel %vm343, %v585, 0.0
    %601 = vadd.xlane.f32.xlu0 %v600
    %v602 = vpop.xlane.xlu0 %601
    %v603 = vsel %vm343, %v587, 0.0
    %604 = vadd.xlane.f32.xlu0 %v603
    %v605 = vpop.xlane.xlu0 %604
    %v606 = vsel %vm343, %v589, 0.0
    %607 = vadd.xlane.f32.xlu0 %v606
    %v608 = vpop.xlane.xlu0 %607
    %v609 = vsel %vm343, %v591, 0.0
    %610 = vadd.xlane.f32.xlu0 %v609
    %v611 = vpop.xlane.xlu0 %610
    %v612 = vadd.f32 %v596, %v602
    %v613 = vadd.f32 %v597, %v605
    %v614 = vadd.f32 %v598, %v608
    %v615 = vadd.f32 %v599, %v611
    %vm616 = vcmask 7168
    %617 = vst.msk [vmem:[#allocation4] sm:$0xff] %vm616, %v612
    %618 = vst.msk [vmem:[#allocation4 + $0x8] sm:$0xff] %vm616, %v613
    %619 = vst.msk [vmem:[#allocation4 + $0x10] sm:$0xff] %vm616, %v614
    %620 = vst.msk [vmem:[#allocation4 + $0x18] sm:$0xff] %vm616, %v615
    %v621 = vld [vmem:[#allocation5] sm:$0xff]
    %v622 = vld [vmem:[#allocation5 + $0x8] sm:$0xff]
    %v623 = vld [vmem:[#allocation5 + $0x10] sm:$0xff]
    %v624 = vld [vmem:[#allocation5 + $0x18] sm:$0xff]
    %626 = vset.pattern.permute.xlu0 0
    %627 = vperm.xlu0 %626, %v553
    %v628 = vpop.permute.xlu0 %627
    %631 = vset.pattern.permute.xlu0 0
    %632 = vperm.xlu0 %631, %v555
    %v633 = vpop.permute.xlu0 %632
    %636 = vset.pattern.permute.xlu0 0
    %637 = vperm.xlu0 %636, %v557
    %v638 = vpop.permute.xlu0 %637
    %641 = vset.pattern.permute.xlu0 0
    %642 = vperm.xlu0 %641, %v559
    %v643 = vpop.permute.xlu0 %642
    %v645 = vmul.f32 %v628, %v621
    %v646 = vmul.f32 %v633, %v622
    %v647 = vmul.f32 %v638, %v623
    %v648 = vmul.f32 %v643, %v624
    %v649 = vpack.c.bf16 %v585, %v585
    %v650 = vpack.c.bf16 %v587, %v587
    %v651 = vpack.c.bf16 %v589, %v589
    %v652 = vpack.c.bf16 %v591, %v591
    %v653 = vld [vmem:[%s2] sm:$0xf]
    %v654 = vld [vmem:[%s2 + $0x4] sm:$0xf]
    %v655 = vld [vmem:[%s2 + $0x8] sm:$0xf]
    %v656 = vld [vmem:[%s2 + $0xc] sm:$0xf]
    %v658 = vsel %vm343, %v649, 0
    %vm660 = vcmask 1043456
    %v662 = vsel %vm660, %v653, 0
    %664 = vmatprep.subr.bf16.mxu0 0
    %665 = vmatpush1.bf16.msra.mxu0 0
    %666 = vmatprep.subr.bf16.mxu0 0
    %667 = vmatpush1.bf16.msra.mxu0 0
    %668 = vmatprep.subr.bf16.mxu0 0
    %669 = vmatpush1.bf16.msra.mxu0 0
    %670 = vmatprep.subr.bf16.mxu0 0
    %671 = vmatpush1.bf16.msra.mxu0 0
    %672 = vmatprep.subr.bf16.mxu0 0
    %673 = vmatpush1.bf16.msra.mxu0 0
    %674 = vmatprep.subr.bf16.mxu0 0
    %675 = vmatpush1.bf16.msra.mxu0 0
    %676 = vmatprep.subr.bf16.mxu0 0
    %677 = vmatpush1.bf16.msra.mxu0 0
    %678 = vmatprep.subr.bf16.mxu0 0
    %679 = vmatpush1.bf16.msra.mxu0 %v662
    %680 = vmatprep.subr.bf16.mxu0 0
    %681 = vmatpush2.bf16.msra.mxu0 0
    %682 = vmatprep.subr.bf16.mxu0 0
    %683 = vmatpush2.bf16.msra.mxu0 0
    %684 = vmatprep.subr.bf16.mxu0 0
    %685 = vmatpush2.bf16.msra.mxu0 0
    %686 = vmatprep.subr.bf16.mxu0 0
    %687 = vmatpush2.bf16.msra.mxu0 0
    %688 = vmatprep.subr.bf16.mxu0 0
    %689 = vmatpush2.bf16.msra.mxu0 0
    %690 = vmatprep.subr.bf16.mxu0 0
    %691 = vmatpush2.bf16.msra.mxu0 0
    %692 = vmatprep.subr.bf16.mxu0 0
    %693 = vmatpush2.bf16.msra.mxu0 0
    %694 = vmatprep.subr.bf16.mxu0 0
    %695 = vmatpush2.bf16.msra.mxu0 0
    %696 = vmatprep.mubr.bf16.mxu0 0
    %697 = vmatmul.mubr.bf16.gmra.mxu0 %v658
    %v698 = vpop.f32.mrf.mxu0
    %v699 = vadd.f32 0.0, %v698
    %v700 = vpop.f32.mrf.mxu0
    %v701 = vpop.f32.mrf.mxu0
    %v702 = vpop.f32.mrf.mxu0
    %703 = vdwg.mxu0
    %v705 = vsel %vm343, %v650, 0
    %v708 = vsel %vm660, %v654, 0
    %710 = vmatprep.subr.bf16.mxu0 0
    %711 = vmatpush1.bf16.msra.mxu0 0
    %712 = vmatprep.subr.bf16.mxu0 0
    %713 = vmatpush1.bf16.msra.mxu0 0
    %714 = vmatprep.subr.bf16.mxu0 0
    %715 = vmatpush1.bf16.msra.mxu0 0
    %716 = vmatprep.subr.bf16.mxu0 0
    %717 = vmatpush1.bf16.msra.mxu0 0
    %718 = vmatprep.subr.bf16.mxu0 0
    %719 = vmatpush1.bf16.msra.mxu0 0
    %720 = vmatprep.subr.bf16.mxu0 0
    %721 = vmatpush1.bf16.msra.mxu0 0
    %722 = vmatprep.subr.bf16.mxu0 0
    %723 = vmatpush1.bf16.msra.mxu0 0
    %724 = vmatprep.subr.bf16.mxu0 0
    %725 = vmatpush1.bf16.msra.mxu0 %v708
    %726 = vmatprep.subr.bf16.mxu0 0
    %727 = vmatpush2.bf16.msra.mxu0 0
    %728 = vmatprep.subr.bf16.mxu0 0
    %729 = vmatpush2.bf16.msra.mxu0 0
    %730 = vmatprep.subr.bf16.mxu0 0
    %731 = vmatpush2.bf16.msra.mxu0 0
    %732 = vmatprep.subr.bf16.mxu0 0
    %733 = vmatpush2.bf16.msra.mxu0 0
    %734 = vmatprep.subr.bf16.mxu0 0
    %735 = vmatpush2.bf16.msra.mxu0 0
    %736 = vmatprep.subr.bf16.mxu0 0
    %737 = vmatpush2.bf16.msra.mxu0 0
    %738 = vmatprep.subr.bf16.mxu0 0
    %739 = vmatpush2.bf16.msra.mxu0 0
    %740 = vmatprep.subr.bf16.mxu0 0
    %741 = vmatpush2.bf16.msra.mxu0 0
    %742 = vmatprep.mubr.bf16.mxu0 0
    %743 = vmatmul.mubr.bf16.gmra.mxu0 %v705
    %v744 = vpop.f32.mrf.mxu0
    %v745 = vadd.f32 0.0, %v744
    %v746 = vpop.f32.mrf.mxu0
    %v747 = vpop.f32.mrf.mxu0
    %v748 = vpop.f32.mrf.mxu0
    %749 = vdwg.mxu0
    %v751 = vsel %vm343, %v651, 0
    %v754 = vsel %vm660, %v655, 0
    %756 = vmatprep.subr.bf16.mxu0 0
    %757 = vmatpush1.bf16.msra.mxu0 0
    %758 = vmatprep.subr.bf16.mxu0 0
    %759 = vmatpush1.bf16.msra.mxu0 0
    %760 = vmatprep.subr.bf16.mxu0 0
    %761 = vmatpush1.bf16.msra.mxu0 0
    %762 = vmatprep.subr.bf16.mxu0 0
    %763 = vmatpush1.bf16.msra.mxu0 0
    %764 = vmatprep.subr.bf16.mxu0 0
    %765 = vmatpush1.bf16.msra.mxu0 0
    %766 = vmatprep.subr.bf16.mxu0 0
    %767 = vmatpush1.bf16.msra.mxu0 0
    %768 = vmatprep.subr.bf16.mxu0 0
    %769 = vmatpush1.bf16.msra.mxu0 0
    %770 = vmatprep.subr.bf16.mxu0 0
    %771 = vmatpush1.bf16.msra.mxu0 %v754
    %772 = vmatprep.subr.bf16.mxu0 0
    %773 = vmatpush2.bf16.msra.mxu0 0
    %774 = vmatprep.subr.bf16.mxu0 0
    %775 = vmatpush2.bf16.msra.mxu0 0
    %776 = vmatprep.subr.bf16.mxu0 0
    %777 = vmatpush2.bf16.msra.mxu0 0
    %778 = vmatprep.subr.bf16.mxu0 0
    %779 = vmatpush2.bf16.msra.mxu0 0
    %780 = vmatprep.subr.bf16.mxu0 0
    %781 = vmatpush2.bf16.msra.mxu0 0
    %782 = vmatprep.subr.bf16.mxu0 0
    %783 = vmatpush2.bf16.msra.mxu0 0
    %784 = vmatprep.subr.bf16.mxu0 0
    %785 = vmatpush2.bf16.msra.mxu0 0
    %786 = vmatprep.subr.bf16.mxu0 0
    %787 = vmatpush2.bf16.msra.mxu0 0
    %788 = vmatprep.mubr.bf16.mxu0 0
    %789 = vmatmul.mubr.bf16.gmra.mxu0 %v751
    %v790 = vpop.f32.mrf.mxu0
    %v791 = vadd.f32 0.0, %v790
    %v792 = vpop.f32.mrf.mxu0
    %v793 = vpop.f32.mrf.mxu0
    %v794 = vpop.f32.mrf.mxu0
    %795 = vdwg.mxu0
    %v797 = vsel %vm343, %v652, 0
    %v800 = vsel %vm660, %v656, 0
    %802 = vmatprep.subr.bf16.mxu0 0
    %803 = vmatpush1.bf16.msra.mxu0 0
    %804 = vmatprep.subr.bf16.mxu0 0
    %805 = vmatpush1.bf16.msra.mxu0 0
    %806 = vmatprep.subr.bf16.mxu0 0
    %807 = vmatpush1.bf16.msra.mxu0 0
    %808 = vmatprep.subr.bf16.mxu0 0
    %809 = vmatpush1.bf16.msra.mxu0 0
    %810 = vmatprep.subr.bf16.mxu0 0
    %811 = vmatpush1.bf16.msra.mxu0 0
    %812 = vmatprep.subr.bf16.mxu0 0
    %813 = vmatpush1.bf16.msra.mxu0 0
    %814 = vmatprep.subr.bf16.mxu0 0
    %815 = vmatpush1.bf16.msra.mxu0 0
    %816 = vmatprep.subr.bf16.mxu0 0
    %817 = vmatpush1.bf16.msra.mxu0 %v800
    %818 = vmatprep.subr.bf16.mxu0 0
    %819 = vmatpush2.bf16.msra.mxu0 0
    %820 = vmatprep.subr.bf16.mxu0 0
    %821 = vmatpush2.bf16.msra.mxu0 0
    %822 = vmatprep.subr.bf16.mxu0 0
    %823 = vmatpush2.bf16.msra.mxu0 0
    %824 = vmatprep.subr.bf16.mxu0 0
    %825 = vmatpush2.bf16.msra.mxu0 0
    %826 = vmatprep.subr.bf16.mxu0 0
    %827 = vmatpush2.bf16.msra.mxu0 0
    %828 = vmatprep.subr.bf16.mxu0 0
    %829 = vmatpush2.bf16.msra.mxu0 0
    %830 = vmatprep.subr.bf16.mxu0 0
    %831 = vmatpush2.bf16.msra.mxu0 0
    %832 = vmatprep.subr.bf16.mxu0 0
    %833 = vmatpush2.bf16.msra.mxu0 0
    %834 = vmatprep.mubr.bf16.mxu0 0
    %835 = vmatmul.mubr.bf16.gmra.mxu0 %v797
    %v836 = vpop.f32.mrf.mxu0
    %v837 = vadd.f32 0.0, %v836
    %v838 = vpop.f32.mrf.mxu0
    %v839 = vpop.f32.mrf.mxu0
    %v840 = vpop.f32.mrf.mxu0
    %841 = vdwg.mxu0
    %v842 = vadd.f32 %v645, %v699
    %v843 = vadd.f32 %v646, %v745
    %v844 = vadd.f32 %v647, %v791
    %v845 = vadd.f32 %v648, %v837
    %846 = vst.msk [vmem:[#allocation5] sm:$0xff] %vm343, %v842
    %847 = vst.msk [vmem:[#allocation5 + $0x8] sm:$0xff] %vm343, %v843
    %848 = vst.msk [vmem:[#allocation5 + $0x10] sm:$0xff] %vm343, %v844
    %849 = vst.msk [vmem:[#allocation5 + $0x18] sm:$0xff] %vm343, %v845
    %850 = vst.msk [vmem:[#allocation3] sm:$0xff] %vm616, %v544
    %851 = vst.msk [vmem:[#allocation3 + $0x8] sm:$0xff] %vm616, %v545
    %852 = vst.msk [vmem:[#allocation3 + $0x10] sm:$0xff] %vm616, %v546
    %853 = vst.msk [vmem:[#allocation3 + $0x18] sm:$0xff] %vm616, %v547
    // Predicated region
    $region46: #{tpu_custom_call.1} parent=1 // pred_check
      %p854 = pneg %p37
    $region47: #{tpu_custom_call.1} parent=1 // pred_check_branch
      %856 = sbr.rel (%p854) target = $region49
    $region48: #{tpu_custom_call.1} parent=1 // pred_region
      %v857 = vld [vmem:[#allocation5] sm:$0xff]
      %v858 = vld [vmem:[#allocation5 + $0x8] sm:$0xff]
      %v859 = vld [vmem:[#allocation5 + $0x10] sm:$0xff]
      %v860 = vld [vmem:[#allocation5 + $0x18] sm:$0xff]
      %v861 = vld [vmem:[#allocation4] sm:$0xff]
      %v862 = vld [vmem:[#allocation4 + $0x8] sm:$0xff]
      %v863 = vld [vmem:[#allocation4 + $0x10] sm:$0xff]
      %v864 = vld [vmem:[#allocation4 + $0x18] sm:$0xff]
      %v865 = vrcp.pop %v861
      %v866 = vrcp.pop %v862
      %v867 = vrcp.pop %v863
      %v868 = vrcp.pop %v864
      %870 = vset.pattern.permute.xlu0 0
      %871 = vperm.xlu0 %870, %v865
      %v872 = vpop.permute.xlu0 %871
      %875 = vset.pattern.permute.xlu0 0
      %876 = vperm.xlu0 %875, %v866
      %v877 = vpop.permute.xlu0 %876
      %880 = vset.pattern.permute.xlu0 0
      %881 = vperm.xlu0 %880, %v867
      %v882 = vpop.permute.xlu0 %881
      %885 = vset.pattern.permute.xlu0 0
      %886 = vperm.xlu0 %885, %v868
      %v887 = vpop.permute.xlu0 %886
      %v889 = vmul.f32 %v857, %v872
      %v890 = vmul.f32 %v858, %v877
      %v891 = vmul.f32 %v859, %v882
      %v892 = vmul.f32 %v860, %v887
      %v893 = vpack.c.bf16 %v889, %v889
      %v894 = vpack.c.bf16 %v890, %v890
      %v895 = vpack.c.bf16 %v891, %v891
      %v896 = vpack.c.bf16 %v892, %v892
      %v897 = vld [vmem:[%s5] sm:$0xf]
      %s898 = scalar_lea.vmem %s5, 4
      %v899 = vld [vmem:[%s898] sm:$0xf]
      %v901 = vsel %vm343, %v894, 0
      %v904 = vsel %vm660, %v899, 0
      %906 = vmatprep.subr.bf16.mxu0 0
      %907 = vmatpush1.bf16.msra.mxu0 0
      %908 = vmatprep.subr.bf16.mxu0 0
      %909 = vmatpush1.bf16.msra.mxu0 0
      %910 = vmatprep.subr.bf16.mxu0 0
      %911 = vmatpush1.bf16.msra.mxu0 0
      %912 = vmatprep.subr.bf16.mxu0 0
      %913 = vmatpush1.bf16.msra.mxu0 0
      %914 = vmatprep.subr.bf16.mxu0 0
      %915 = vmatpush1.bf16.msra.mxu0 0
      %916 = vmatprep.subr.bf16.mxu0 0
      %917 = vmatpush1.bf16.msra.mxu0 0
      %918 = vmatprep.subr.bf16.mxu0 0
      %919 = vmatpush1.bf16.msra.mxu0 0
      %920 = vmatprep.subr.bf16.mxu0 0
      %921 = vmatpush1.bf16.msra.mxu0 %v904
      %922 = vmatprep.subr.bf16.mxu0 0
      %923 = vmatpush2.bf16.msra.mxu0 0
      %924 = vmatprep.subr.bf16.mxu0 0
      %925 = vmatpush2.bf16.msra.mxu0 0
      %926 = vmatprep.subr.bf16.mxu0 0
      %927 = vmatpush2.bf16.msra.mxu0 0
      %928 = vmatprep.subr.bf16.mxu0 0
      %929 = vmatpush2.bf16.msra.mxu0 0
      %930 = vmatprep.subr.bf16.mxu0 0
      %931 = vmatpush2.bf16.msra.mxu0 0
      %932 = vmatprep.subr.bf16.mxu0 0
      %933 = vmatpush2.bf16.msra.mxu0 0
      %934 = vmatprep.subr.bf16.mxu0 0
      %935 = vmatpush2.bf16.msra.mxu0 0
      %936 = vmatprep.subr.bf16.mxu0 0
      %937 = vmatpush2.bf16.msra.mxu0 0
      %938 = vmatprep.mubr.bf16.mxu0 0
      %939 = vmatmul.mubr.bf16.gmra.mxu0 %v901
      %v940 = vpop.f32.mrf.mxu0
      %v941 = vadd.f32 0.0, %v940
      %v942 = vpop.f32.mrf.mxu0
      %v943 = vpop.f32.mrf.mxu0
      %v944 = vpop.f32.mrf.mxu0
      %945 = vdwg.mxu0
      %v947 = vsel %vm343, %v893, 0
      %v950 = vsel %vm660, %v897, 0
      %952 = vmatprep.subr.bf16.mxu0 0
      %953 = vmatpush1.bf16.msra.mxu0 0
      %954 = vmatprep.subr.bf16.mxu0 0
      %955 = vmatpush1.bf16.msra.mxu0 0
      %956 = vmatprep.subr.bf16.mxu0 0
      %957 = vmatpush1.bf16.msra.mxu0 0
      %958 = vmatprep.subr.bf16.mxu0 0
      %959 = vmatpush1.bf16.msra.mxu0 0
      %960 = vmatprep.subr.bf16.mxu0 0
      %961 = vmatpush1.bf16.msra.mxu0 0
      %962 = vmatprep.subr.bf16.mxu0 0
      %963 = vmatpush1.bf16.msra.mxu0 0
      %964 = vmatprep.subr.bf16.mxu0 0
      %965 = vmatpush1.bf16.msra.mxu0 0
      %966 = vmatprep.subr.bf16.mxu0 0
      %967 = vmatpush1.bf16.msra.mxu0 %v950
      %968 = vmatprep.subr.bf16.mxu0 0
      %969 = vmatpush2.bf16.msra.mxu0 0
      %970 = vmatprep.subr.bf16.mxu0 0
      %971 = vmatpush2.bf16.msra.mxu0 0
      %972 = vmatprep.subr.bf16.mxu0 0
      %973 = vmatpush2.bf16.msra.mxu0 0
      %974 = vmatprep.subr.bf16.mxu0 0
      %975 = vmatpush2.bf16.msra.mxu0 0
      %976 = vmatprep.subr.bf16.mxu0 0
      %977 = vmatpush2.bf16.msra.mxu0 0
      %978 = vmatprep.subr.bf16.mxu0 0
      %979 = vmatpush2.bf16.msra.mxu0 0
      %980 = vmatprep.subr.bf16.mxu0 0
      %981 = vmatpush2.bf16.msra.mxu0 0
      %982 = vmatprep.subr.bf16.mxu0 0
      %983 = vmatpush2.bf16.msra.mxu0 0
      %984 = vmatprep.mubr.bf16.mxu0 0
      %985 = vmatmul.mubr.bf16.gmra.mxu0 %v947
      %v986 = vpop.f32.mrf.mxu0
      %v987 = vadd.f32 %v941, %v986
      %v988 = vpop.f32.mrf.mxu0
      %v989 = vpop.f32.mrf.mxu0
      %v990 = vpop.f32.mrf.mxu0
      %991 = vdwg.mxu0
      %s992 = scalar_lea.vmem %s5, 8
      %v993 = vld [vmem:[%s992] sm:$0xf]
      %v995 = vsel %vm343, %v895, 0
      %v998 = vsel %vm660, %v993, 0
      %1000 = vmatprep.subr.bf16.mxu0 0
      %1001 = vmatpush1.bf16.msra.mxu0 0
      %1002 = vmatprep.subr.bf16.mxu0 0
      %1003 = vmatpush1.bf16.msra.mxu0 0
      %1004 = vmatprep.subr.bf16.mxu0 0
      %1005 = vmatpush1.bf16.msra.mxu0 0
      %1006 = vmatprep.subr.bf16.mxu0 0
      %1007 = vmatpush1.bf16.msra.mxu0 0
      %1008 = vmatprep.subr.bf16.mxu0 0
      %1009 = vmatpush1.bf16.msra.mxu0 0
      %1010 = vmatprep.subr.bf16.mxu0 0
      %1011 = vmatpush1.bf16.msra.mxu0 0
      %1012 = vmatprep.subr.bf16.mxu0 0
      %1013 = vmatpush1.bf16.msra.mxu0 0
      %1014 = vmatprep.subr.bf16.mxu0 0
      %1015 = vmatpush1.bf16.msra.mxu0 %v998
      %1016 = vmatprep.subr.bf16.mxu0 0
      %1017 = vmatpush2.bf16.msra.mxu0 0
      %1018 = vmatprep.subr.bf16.mxu0 0
      %1019 = vmatpush2.bf16.msra.mxu0 0
      %1020 = vmatprep.subr.bf16.mxu0 0
      %1021 = vmatpush2.bf16.msra.mxu0 0
      %1022 = vmatprep.subr.bf16.mxu0 0
      %1023 = vmatpush2.bf16.msra.mxu0 0
      %1024 = vmatprep.subr.bf16.mxu0 0
      %1025 = vmatpush2.bf16.msra.mxu0 0
      %1026 = vmatprep.subr.bf16.mxu0 0
      %1027 = vmatpush2.bf16.msra.mxu0 0
      %1028 = vmatprep.subr.bf16.mxu0 0
      %1029 = vmatpush2.bf16.msra.mxu0 0
      %1030 = vmatprep.subr.bf16.mxu0 0
      %1031 = vmatpush2.bf16.msra.mxu0 0
      %1032 = vmatprep.mubr.bf16.mxu0 0
      %1033 = vmatmul.mubr.bf16.gmra.mxu0 %v995
      %v1034 = vpop.f32.mrf.mxu0
      %v1035 = vadd.f32 0.0, %v1034
      %v1036 = vpop.f32.mrf.mxu0
      %v1037 = vpop.f32.mrf.mxu0
      %v1038 = vpop.f32.mrf.mxu0
      %1039 = vdwg.mxu0
      %v1040 = vadd.f32 %v987, %v1035
      %s1041 = scalar_lea.vmem %s5, 12
      %v1042 = vld [vmem:[%s1041] sm:$0xf]
      %v1044 = vsel %vm343, %v896, 0
      %v1047 = vsel %vm660, %v1042, 0
      %1049 = vmatprep.subr.bf16.mxu0 0
      %1050 = vmatpush1.bf16.msra.mxu0 0
      %1051 = vmatprep.subr.bf16.mxu0 0
      %1052 = vmatpush1.bf16.msra.mxu0 0
      %1053 = vmatprep.subr.bf16.mxu0 0
      %1054 = vmatpush1.bf16.msra.mxu0 0
      %1055 = vmatprep.subr.bf16.mxu0 0
      %1056 = vmatpush1.bf16.msra.mxu0 0
      %1057 = vmatprep.subr.bf16.mxu0 0
      %1058 = vmatpush1.bf16.msra.mxu0 0
      %1059 = vmatprep.subr.bf16.mxu0 0
      %1060 = vmatpush1.bf16.msra.mxu0 0
      %1061 = vmatprep.subr.bf16.mxu0 0
      %1062 = vmatpush1.bf16.msra.mxu0 0
      %1063 = vmatprep.subr.bf16.mxu0 0
      %1064 = vmatpush1.bf16.msra.mxu0 %v1047
      %1065 = vmatprep.subr.bf16.mxu0 0
      %1066 = vmatpush2.bf16.msra.mxu0 0
      %1067 = vmatprep.subr.bf16.mxu0 0
      %1068 = vmatpush2.bf16.msra.mxu0 0
      %1069 = vmatprep.subr.bf16.mxu0 0
      %1070 = vmatpush2.bf16.msra.mxu0 0
      %1071 = vmatprep.subr.bf16.mxu0 0
      %1072 = vmatpush2.bf16.msra.mxu0 0
      %1073 = vmatprep.subr.bf16.mxu0 0
      %1074 = vmatpush2.bf16.msra.mxu0 0
      %1075 = vmatprep.subr.bf16.mxu0 0
      %1076 = vmatpush2.bf16.msra.mxu0 0
      %1077 = vmatprep.subr.bf16.mxu0 0
      %1078 = vmatpush2.bf16.msra.mxu0 0
      %1079 = vmatprep.subr.bf16.mxu0 0
      %1080 = vmatpush2.bf16.msra.mxu0 0
      %1081 = vmatprep.mubr.bf16.mxu0 0
      %1082 = vmatmul.mubr.bf16.gmra.mxu0 %v1044
      %v1083 = vpop.f32.mrf.mxu0
      %v1084 = vadd.f32 0.0, %v1083
      %v1085 = vpop.f32.mrf.mxu0
      %v1086 = vpop.f32.mrf.mxu0
      %v1087 = vpop.f32.mrf.mxu0
      %1088 = vdwg.mxu0
      %v1089 = vadd.f32 %v1040, %v1084
      %v1090 = vld [vmem:[%s6] sm:$0x1]
      %v1092 = vlaneseq
      %v1093 = vshrl.u32 %v1092, 7
      %v1094 = vsub.s32 0, %v1093
      %v1095 = vrot.slane %v1090, %v1094
      %v1097 = vadd.f32 %v1089, %v1095
      %v1098 = vtanh.pop %v1097
      %v1099 = vld [vmem:[%s0] sm:$0xff]
      %v1100 = vadd.f32 %v1098, %v1099
      %vm1101 = vcmask 261120
      %v1102 = vsel %vm1101, %v1100, 0.0
      %1103 = vadd.xlane.f32.xlu0 %v1102
      %v1104 = vpop.xlane.xlu0 %1103
      %v1105 = vrcp.pop 32.0
      %v1106 = vmul.f32 %v1104, %v1105
      %v1107 = vsub.f32 %v1100, %v1106
      %v1108 = vmul.f32 %v1107, %v1107
      %v1109 = vsel %vm1101, %v1108, 0.0
      %1110 = vadd.xlane.f32.xlu0 %v1109
      %v1111 = vpop.xlane.xlu0 %1110
      %v1112 = vmul.f32 %v1111, %v1105
      %v1113 = vadd.f32 %v1112, 1e-05
      %v1114 = vrsqrt.pop %v1113
      %v1115 = vmul.f32 %v1107, %v1114
      %v1116 = vld [vmem:[%s7] sm:$0x1]
      %v1118 = vlaneseq
      %v1119 = vshrl.u32 %v1118, 7
      %v1120 = vsub.s32 0, %v1119
      %v1121 = vrot.slane %v1116, %v1120
      %v1123 = vmul.f32 %v1115, %v1121
      %v1124 = vld [vmem:[%s8] sm:$0x1]
      %v1126 = vlaneseq
      %v1127 = vshrl.u32 %v1126, 7
      %v1128 = vsub.s32 0, %v1127
      %v1129 = vrot.slane %v1124, %v1128
      %v1131 = vadd.f32 %v1123, %v1129
      %1132 = vst.msk [vmem:[#allocation6] sm:$0xff] %vm1101, %v1131
    $region49: #{tpu_custom_call.1} parent=1 // pred_fallthru
      _
    // Predicated region
    $region50: #{tpu_custom_call.1} parent=1 // pred_check
      _
    $region51: #{tpu_custom_call.1} parent=1 // pred_check_branch
      %1134 = sbr.rel (0) target = $region53
    $region52: #{tpu_custom_call.1} parent=1 // pred_region
      %s1136 = ssub.s32 128, 128
      %1137 = vsyncadd [#allocation7], %s1136
      %s1139 = sshll.u32 [#allocation6], 4
      %s1140 = int_to_ptr.vmem [resolvable:$true] %s1139
      %1142 = dma.vmem_to_hbm [thread:$0]  %s1140, 128, %s10, [#allocation7]
    $region53: #{tpu_custom_call.1} parent=1 // pred_fallthru
      _
    // Predicated region
    $region54: #{tpu_custom_call.1} parent=1 // pred_check
      _
    $region55: #{tpu_custom_call.1} parent=1 // pred_check_branch
      %1144 = sbr.rel (0) target = $region57
    $region56: #{tpu_custom_call.1} parent=1 // pred_region
      %1145 = dma.done [#allocation7], 128
    $region57: #{tpu_custom_call.1} parent=1 // pred_fallthru
      _
    %1146 = vsyncpa [#allocation7], 1

</llo_original>
